<compile_context>
chip_gen: v7x
topology: tpu7x:2x2x1
jax: 0.10.0
libtpu: 0.0.40
codegen_flags: <defaults>
</compile_context>

<pallas_src>
import functools

import jax
import jax.numpy as jnp
from jax.experimental import pallas as pl
from jax.experimental.pallas import tpu as pltpu


def cross_attention_kernel(x_ref, ctx_ref, bias_ref, wq_ref, wkv_ref, wo_ref,
                           bo_ref, o_ref, *, n, J, heads):
    """One batch block (bb batch elements) per grid step.

    x_ref   : (bb*n, dim)   query rows, batch folded into the row dim
    ctx_ref : (bb*J, dim)   flattened context rows, J = m * context_len
    bias_ref: (bb, 1, J)    beta * repeat(doc_similarities, context_len) (f32)
    wq_ref  : (dim, dim)    to_q weight with the attention scale folded in
    wkv_ref : (dim, 2*dim)  to_kv weight (k | v along the output axis)
    wo_ref  : (dim, dim)    to_out weight
    bo_ref  : (1, dim)      to_out bias (f32)
    o_ref   : (bb*n, dim)   output rows
    """
    dim = x_ref.shape[-1]
    d = dim // heads
    bb = x_ref.shape[0] // n
    cdt = wq_ref.dtype                      # MXU compute dtype (bf16 default)

    # ---- fused, lane-dense projections over the whole batch block ----
    # (one weight push each; scale is already folded into wq on the host)
    q_all = jnp.dot(x_ref[...], wq_ref[...], preferred_element_type=cdt)      # (bb*n, dim)
    kv_all = jnp.dot(ctx_ref[...], wkv_ref[...], preferred_element_type=cdt)  # (bb*J, 2*dim)
    k_all = kv_all[:, :dim]                 # lane-tile aligned when dim % 128 == 0
    v_all = kv_all[:, dim:]

    # ---- per-head layout (only where unavoidable: scores / attn@v).
    #      Transposes are hoisted out of the per-batch loop; lane axis (d)
    #      stays fixed. ----
    q_h = q_all.reshape(bb * n, heads, d).transpose(1, 0, 2)   # (h, bb*n, d)
    k_h = k_all.reshape(bb * J, heads, d).transpose(1, 0, 2)   # (h, bb*J, d)
    v_h = v_all.reshape(bb * J, heads, d).transpose(1, 0, 2)   # (h, bb*J, d)

    # ---- attention core: block-diagonal in batch, so it runs per batch
    #      element; per-iteration intermediates are small ((h, n, J) f32). ----
    ov_blocks = []
    for ib in range(bb):
        qb = q_h[:, ib * n:(ib + 1) * n, :]                    # (h, n, d)
        kb = k_h[:, ib * J:(ib + 1) * J, :]                    # (h, J, d)
        vb = v_h[:, ib * J:(ib + 1) * J, :]                    # (h, J, d)

        s = jnp.einsum('hid,hjd->hij', qb, kb,
                       preferred_element_type=jnp.float32)     # (h, n, J) f32
        s = s + bias_ref[ib]                                   # (1, J) broadcast
        # TODO(synk): mask / context_mask additive -inf masking would go here.
        s = s - jnp.max(s, axis=-1, keepdims=True)
        p = jnp.exp(s)
        attn = p * pl.reciprocal(jnp.sum(p, axis=-1, keepdims=True),
                                 approx=True)
        ov_blocks.append(jnp.einsum('hij,hjd->hid', attn.astype(cdt), vb,
                                    preferred_element_type=cdt))  # (h, n, d)

    ov = ov_blocks[0] if bb == 1 else jnp.concatenate(ov_blocks, axis=1)  # (h, bb*n, d)

    # ---- merge heads back onto the lane axis, fused output projection ----
    ov_rows = ov.transpose(1, 0, 2).reshape(bb * n, dim)        # (bb*n, dim)
    y = jnp.dot(ov_rows, wo_ref[...], preferred_element_type=jnp.float32)
    y = y + bo_ref[...]
    o_ref[...] = y.astype(o_ref.dtype)


def _num_tensorcores():
    """2 TensorCores/chip on v7x, 1 on v5e/v6e.  Best-effort query; pass
    batch_block explicitly under AOT / mock devices."""
    try:
        kind = jax.devices()[0].device_kind.lower()
    except Exception:
        return 1
    return 2 if ("v7" in kind or "7x" in kind) else 1


def _largest_divisor_leq(b, cap):
    cap = max(1, min(b, cap))
    for cand in range(cap, 0, -1):
        if b % cand == 0:
            return cand
    return 1


def _derive_batch_block_cap(b, n, J, dim, itemsize, vmem_budget_bytes,
                            unroll_cap=8):
    """Largest per-step batch block that fits the VMEM budget (double-buffered
    activations + resident weights), capped by the static-unroll limit."""
    per_b = 2 * ((2 * n * dim + J * dim) * itemsize + J * 4)   # x + out + ctx + bias
    w_bytes = 2 * ((2 * dim * dim + dim * 2 * dim) * itemsize + dim * 4)
    avail = max(vmem_budget_bytes - w_bytes, per_b)
    return int(max(1, min(unroll_cap, avail // per_b)))


def cross_attention(x, context, doc_similarities, params, heads, *,
                    compute_dtype=jnp.bfloat16, batch_block=None):
    """Pallas wrapper. x:(b,n,dim) context:(b,m,cl,dim) doc_similarities:(b,m)."""
    wq, wkv, wo, bo, beta = params
    b, n, dim = x.shape
    _, m, cl, _ = context.shape
    J = m * cl
    assert dim % heads == 0
    scale = dim ** (-0.5)

    # --- host-side parameter prep (one-time weight work): fold the attention
    #     scale into Wq and cast weights to the MXU compute dtype. ---
    wq_c = (wq * scale).astype(compute_dtype)          # (dim, dim)
    wkv_c = wkv.astype(compute_dtype)                  # (dim, 2*dim)
    wo_c = wo.astype(compute_dtype)                    # (dim, dim)
    bo2 = bo.reshape(1, dim).astype(jnp.float32)
    beta_s = jnp.asarray(beta, jnp.float32).reshape(())

    # Additive doc-similarity bias: beta * repeat(sim, cl) -> (b, 1, J) f32.
    bias = (jnp.repeat(doc_similarities.astype(jnp.float32), cl, axis=1)
            * beta_s).reshape(b, 1, J)

    # Activations with the batch folded into the matmul row dimension.
    x2 = x.reshape(b * n, dim).astype(compute_dtype)
    ctx2 = context.reshape(b * J, dim).astype(compute_dtype)

    # VMEM-budgeted batch blocking.  48 MiB stays under v7x's 64 MiB physical
    # VMEM and raises v5e's 16 MiB scoped default.
    vmem_limit = 48 * 1024 * 1024
    itemsize = jnp.dtype(compute_dtype).itemsize
    if batch_block is None:
        cap = _derive_batch_block_cap(b, n, J, dim, itemsize,
                                      vmem_budget_bytes=(3 * vmem_limit) // 4)
        # keep >= n_cores grid steps so multi-TensorCore chips stay fed
        cap = min(cap, max(1, b // _num_tensorcores()))
        batch_block = _largest_divisor_leq(b, cap)
    elif b % batch_block:
        # pick the largest divisor <= requested instead of collapsing to 1
        batch_block = _largest_divisor_leq(b, batch_block)
    bb = batch_block
    nblk = b // bb

    kernel = functools.partial(cross_attention_kernel, n=n, J=J, heads=heads)

    out = pl.pallas_call(
        kernel,
        out_shape=jax.ShapeDtypeStruct((b * n, dim), x.dtype),
        grid_spec=pltpu.PrefetchScalarGridSpec(
            num_scalar_prefetch=0,
            grid=(nblk,),
            in_specs=[
                pl.BlockSpec((bb * n, dim), lambda i: (i, 0)),       # x rows
                pl.BlockSpec((bb * J, dim), lambda i: (i, 0)),       # context rows
                pl.BlockSpec((bb, 1, J), lambda i: (i, 0, 0)),       # doc-sim bias
                pl.BlockSpec((dim, dim), lambda i: (0, 0)),          # wq * scale
                pl.BlockSpec((dim, 2 * dim), lambda i: (0, 0)),      # wkv
                pl.BlockSpec((dim, dim), lambda i: (0, 0)),          # wo
                pl.BlockSpec((1, dim), lambda i: (0, 0)),            # bo
            ],
            out_specs=pl.BlockSpec((bb * n, dim), lambda i: (i, 0)),
        ),
        compiler_params=pltpu.CompilerParams(
            dimension_semantics=("parallel",),
            vmem_limit_bytes=vmem_limit),
    )(x2, ctx2, bias, wq_c, wkv_c, wo_c, bo2)
    return out.reshape(b, n, dim)


def cross_attention_reference(x, context, doc_similarities, params, heads):
    """Pure-JAX f32 reference mirroring the PyTorch forward exactly."""
    wq, wkv, wo, bo, beta = params
    b, n, dim = x.shape
    _, m, cl, _ = context.shape
    d = dim // heads
    scale = dim ** (-0.5)

    q = x @ wq
    qh = q.reshape(b, n, heads, d).transpose(0, 2, 1, 3)               # b h n d

    ctx = context.reshape(b, m * cl, dim)
    kv = ctx @ wkv
    k, v = kv[..., :dim], kv[..., dim:]                                # (kv h d) split
    kh = k.reshape(b, m * cl, heads, d).transpose(0, 2, 1, 3)
    vh = v.reshape(b, m * cl, heads, d).transpose(0, 2, 1, 3)

    sim = jnp.repeat(doc_similarities, cl, axis=1)[:, None, None, :] * beta[0]

    dots = jnp.einsum('bhid,bhjd->bhij', qh, kh) * scale + sim
    attn = jax.nn.softmax(dots, axis=-1)
    out = jnp.einsum('bhij,bhjd->bhid', attn, vh)
    out = out.transpose(0, 2, 1, 3).reshape(b, n, dim)
    return out @ wo + bo


if __name__ == "__main__":
    # small shapes consistent with the module
    b, n, dim, heads = 2, 8, 64, 8
    m, context_len = 2, 8

    key = jax.random.PRNGKey(0)
    kx, kc, ks, k1, k2, k3, k4 = jax.random.split(key, 7)

    x = jax.random.normal(kx, (b, n, dim), jnp.float32)
    context = jax.random.normal(kc, (b, m, context_len, dim), jnp.float32)
    doc_similarities = jax.random.normal(ks, (b, m), jnp.float32)

    # deterministic parameter init (nn.Linear-like scale)
    wq = jax.random.normal(k1, (dim, dim), jnp.float32) * (1.0 / dim ** 0.5)
    wkv = jax.random.normal(k2, (dim, 2 * dim), jnp.float32) * (1.0 / dim ** 0.5)
    wo = jax.random.normal(k3, (dim, dim), jnp.float32) * (1.0 / dim ** 0.5)
    bo = jax.random.normal(k4, (1, dim), jnp.float32) * 0.01
    beta = jnp.array([1.0], jnp.float32)   # nn.Parameter(torch.tensor(1.0))
    params = (wq, wkv, wo, bo, beta)

    ref = jax.block_until_ready(
        cross_attention_reference(x, context, doc_similarities, params, heads))

    # 1) f32 compute path, whole batch in one grid step: tight tolerance.
    out_f32 = jax.block_until_ready(
        cross_attention(x, context, doc_similarities, params, heads,
                        compute_dtype=jnp.float32, batch_block=b))
    assert out_f32.shape == (b, n, dim)
    assert jnp.allclose(out_f32, ref, atol=5e-3, rtol=5e-3), (
        f"f32 max abs err {jnp.max(jnp.abs(out_f32 - ref))}")

    # 2) bf16 MXU path, one batch element per grid step (2-core style layout):
    #    bf16 inputs vs f32 reference -> looser tolerance.
    out_bf16_split = jax.block_until_ready(
        cross_attention(x, context, doc_similarities, params, heads,
                        compute_dtype=jnp.bfloat16, batch_block=1))
    assert jnp.allclose(out_bf16_split, ref, atol=5e-2, rtol=5e-2), (
        f"bf16(split) max abs err {jnp.max(jnp.abs(out_bf16_split - ref))}")

    # 3) default config: bf16 + VMEM/core-count derived batch blocking.
    out = jax.block_until_ready(
        cross_attention(x, context, doc_similarities, params, heads))
    assert out.shape == (b, n, dim)
    assert jnp.allclose(out, ref, atol=5e-2, rtol=5e-2), (
        f"default max abs err {jnp.max(jnp.abs(out - ref))}")

    print("KERNEL_OK")
</pallas_src>

<mosaic_0001>
module attributes {stable_mosaic.version = 11 : i64} {
  func.func @cross_attention_kernel(%arg0: i32, %arg1: memref<16x64xf32, #tpu.memory_space<vmem>>, %arg2: memref<32x64xf32, #tpu.memory_space<vmem>>, %arg3: memref<2x1x16xf32, #tpu.memory_space<vmem>>, %arg4: memref<64x64xf32, #tpu.memory_space<vmem>>, %arg5: memref<64x128xf32, #tpu.memory_space<vmem>>, %arg6: memref<64x64xf32, #tpu.memory_space<vmem>>, %arg7: memref<1x64xf32, #tpu.memory_space<vmem>>, %arg8: memref<16x64xf32, #tpu.memory_space<vmem>>) attributes {dimension_semantics = [#tpu.dimension_semantics<parallel>], iteration_bounds = array<i64: 1>, scalar_prefetch = 0 : i64, scratch_operands = 0 : i64, tpu.core_type = #tpu.core_type<tc>, window_params = [{transform_indices = @transform_0, window_bounds = array<i64: 16, 64>}, {transform_indices = @transform_1, window_bounds = array<i64: 32, 64>}, {transform_indices = @transform_2, window_bounds = array<i64: 2, 1, 16>}, {pipeline_mode = #tpu.pipeline_mode<synchronous>, transform_indices = @transform_3, window_bounds = array<i64: 64, 64>}, {pipeline_mode = #tpu.pipeline_mode<synchronous>, transform_indices = @transform_4, window_bounds = array<i64: 64, 128>}, {pipeline_mode = #tpu.pipeline_mode<synchronous>, transform_indices = @transform_5, window_bounds = array<i64: 64, 64>}, {pipeline_mode = #tpu.pipeline_mode<synchronous>, transform_indices = @transform_6, window_bounds = array<i64: 1, 64>}, {transform_indices = @transform_7, window_bounds = array<i64: 16, 64>}]} {
    %c0 = arith.constant 0 : index
    %c0_0 = arith.constant 0 : index
    %0 = vector.load %arg1[%c0, %c0_0] : memref<16x64xf32, #tpu.memory_space<vmem>>, vector<16x64xf32>
    %c0_1 = arith.constant 0 : index
    %c0_2 = arith.constant 0 : index
    %1 = vector.load %arg4[%c0_1, %c0_2] : memref<64x64xf32, #tpu.memory_space<vmem>>, vector<64x64xf32>
    %cst = arith.constant dense<0.000000e+00> : vector<16x64xf32>
    %2 = tpu.matmul %0, %1, %cst {dimension_numbers = #tpu.dot_dimension_numbers<[1], [0], [0], [1], [0, 0, 1, 1], [], []>} : vector<16x64xf32>, vector<64x64xf32>, vector<16x64xf32> -> vector<16x64xf32>
    %c0_3 = arith.constant 0 : index
    %c0_4 = arith.constant 0 : index
    %3 = vector.load %arg2[%c0_3, %c0_4] : memref<32x64xf32, #tpu.memory_space<vmem>>, vector<32x64xf32>
    %c0_5 = arith.constant 0 : index
    %c0_6 = arith.constant 0 : index
    %4 = vector.load %arg5[%c0_5, %c0_6] : memref<64x128xf32, #tpu.memory_space<vmem>>, vector<64x128xf32>
    %cst_7 = arith.constant dense<0.000000e+00> : vector<32x128xf32>
    %5 = tpu.matmul %3, %4, %cst_7 {dimension_numbers = #tpu.dot_dimension_numbers<[1], [0], [0], [1], [0, 0, 1, 1], [], []>} : vector<32x64xf32>, vector<64x128xf32>, vector<32x128xf32> -> vector<32x128xf32>
    %6 = vector.extract_strided_slice %5 {offsets = [0, 0], sizes = [32, 64], strides = [1, 1]} : vector<32x128xf32> to vector<32x64xf32>
    %7 = vector.extract_strided_slice %5 {offsets = [0, 64], sizes = [32, 64], strides = [1, 1]} : vector<32x128xf32> to vector<32x64xf32>
    %8 = vector.shape_cast %2 : vector<16x64xf32> to vector<16x8x8xf32>
    %9 = tpu.transpose %8, [1, 0, 2] : vector<16x8x8xf32> -> vector<8x16x8xf32>
    %10 = vector.shape_cast %6 : vector<32x64xf32> to vector<32x8x8xf32>
    %11 = tpu.transpose %10, [1, 0, 2] : vector<32x8x8xf32> -> vector<8x32x8xf32>
    %12 = vector.shape_cast %7 : vector<32x64xf32> to vector<32x8x8xf32>
    %13 = tpu.transpose %12, [1, 0, 2] : vector<32x8x8xf32> -> vector<8x32x8xf32>
    %14 = vector.extract_strided_slice %9 {offsets = [0, 0, 0], sizes = [8, 8, 8], strides = [1, 1, 1]} : vector<8x16x8xf32> to vector<8x8x8xf32>
    %15 = vector.extract_strided_slice %11 {offsets = [0, 0, 0], sizes = [8, 16, 8], strides = [1, 1, 1]} : vector<8x32x8xf32> to vector<8x16x8xf32>
    %16 = vector.extract_strided_slice %13 {offsets = [0, 0, 0], sizes = [8, 16, 8], strides = [1, 1, 1]} : vector<8x32x8xf32> to vector<8x16x8xf32>
    "tpu.trace_start"() <{level = 10 : i32, message = "hid,hjd->hij"}> : () -> ()
    %cst_8 = arith.constant dense<0.000000e+00> : vector<8x8x16xf32>
    %17 = tpu.matmul %14, %15, %cst_8 {dimension_numbers = #tpu.dot_dimension_numbers<[2], [2], [1], [1], [0, 0, 0, 1, 1, 1], [0], [0]>} : vector<8x8x8xf32>, vector<8x16x8xf32>, vector<8x8x16xf32> -> vector<8x8x16xf32>
    "tpu.trace_stop"() : () -> ()
    %c0_9 = arith.constant 0 : index
    %c0_10 = arith.constant 0 : index
    %c0_11 = arith.constant 0 : index
    %18 = vector.load %arg3[%c0_9, %c0_10, %c0_11] : memref<2x1x16xf32, #tpu.memory_space<vmem>>, vector<1x1x16xf32>
    %19 = vector.shape_cast %18 : vector<1x1x16xf32> to vector<1x16xf32>
    %20 = vector.shape_cast %19 : vector<1x16xf32> to vector<1x1x16xf32>
    %21 = vector.broadcast %20 : vector<1x1x16xf32> to vector<8x8x16xf32>
    %22 = arith.addf %17, %21 : vector<8x8x16xf32>
    %cst_12 = arith.constant dense<0xFF800000> : vector<8x8xf32>
    %23 = vector.multi_reduction <maximumf>, %22, %cst_12 [2] : vector<8x8x16xf32> to vector<8x8xf32>
    %24 = vector.shape_cast %23 : vector<8x8xf32> to vector<8x8x1xf32>
    %25 = vector.broadcast %24 : vector<8x8x1xf32> to vector<8x8x16xf32>
    %26 = arith.subf %22, %25 : vector<8x8x16xf32>
    %27 = math.exp %26 : vector<8x8x16xf32>
    %cst_13 = arith.constant dense<0.000000e+00> : vector<8x8xf32>
    %28 = vector.multi_reduction <add>, %27, %cst_13 [2] : vector<8x8x16xf32> to vector<8x8xf32>
    %29 = vector.shape_cast %28 : vector<8x8xf32> to vector<8x8x1xf32>
    %30 = tpu.reciprocal %29 {approx = true} : vector<8x8x1xf32> -> vector<8x8x1xf32>
    %31 = vector.broadcast %30 : vector<8x8x1xf32> to vector<8x8x16xf32>
    %32 = arith.mulf %27, %31 : vector<8x8x16xf32>
    "tpu.trace_start"() <{level = 10 : i32, message = "hij,hjd->hid"}> : () -> ()
    %cst_14 = arith.constant dense<0.000000e+00> : vector<8x8x8xf32>
    %33 = tpu.matmul %32, %16, %cst_14 {dimension_numbers = #tpu.dot_dimension_numbers<[2], [1], [1], [2], [0, 0, 0, 1, 1, 2], [0], [0]>} : vector<8x8x16xf32>, vector<8x16x8xf32>, vector<8x8x8xf32> -> vector<8x8x8xf32>
    "tpu.trace_stop"() : () -> ()
    %34 = vector.extract_strided_slice %9 {offsets = [0, 8, 0], sizes = [8, 8, 8], strides = [1, 1, 1]} : vector<8x16x8xf32> to vector<8x8x8xf32>
    %35 = vector.extract_strided_slice %11 {offsets = [0, 16, 0], sizes = [8, 16, 8], strides = [1, 1, 1]} : vector<8x32x8xf32> to vector<8x16x8xf32>
    %36 = vector.extract_strided_slice %13 {offsets = [0, 16, 0], sizes = [8, 16, 8], strides = [1, 1, 1]} : vector<8x32x8xf32> to vector<8x16x8xf32>
    "tpu.trace_start"() <{level = 10 : i32, message = "hid,hjd->hij"}> : () -> ()
    %cst_15 = arith.constant dense<0.000000e+00> : vector<8x8x16xf32>
    %37 = tpu.matmul %34, %35, %cst_15 {dimension_numbers = #tpu.dot_dimension_numbers<[2], [2], [1], [1], [0, 0, 0, 1, 1, 1], [0], [0]>} : vector<8x8x8xf32>, vector<8x16x8xf32>, vector<8x8x16xf32> -> vector<8x8x16xf32>
    "tpu.trace_stop"() : () -> ()
    %c1 = arith.constant 1 : index
    %c0_16 = arith.constant 0 : index
    %c0_17 = arith.constant 0 : index
    %38 = vector.load %arg3[%c1, %c0_16, %c0_17] : memref<2x1x16xf32, #tpu.memory_space<vmem>>, vector<1x1x16xf32>
    %39 = vector.shape_cast %38 : vector<1x1x16xf32> to vector<1x16xf32>
    %40 = vector.shape_cast %39 : vector<1x16xf32> to vector<1x1x16xf32>
    %41 = vector.broadcast %40 : vector<1x1x16xf32> to vector<8x8x16xf32>
    %42 = arith.addf %37, %41 : vector<8x8x16xf32>
    %cst_18 = arith.constant dense<0xFF800000> : vector<8x8xf32>
    %43 = vector.multi_reduction <maximumf>, %42, %cst_18 [2] : vector<8x8x16xf32> to vector<8x8xf32>
    %44 = vector.shape_cast %43 : vector<8x8xf32> to vector<8x8x1xf32>
    %45 = vector.broadcast %44 : vector<8x8x1xf32> to vector<8x8x16xf32>
    %46 = arith.subf %42, %45 : vector<8x8x16xf32>
    %47 = math.exp %46 : vector<8x8x16xf32>
    %cst_19 = arith.constant dense<0.000000e+00> : vector<8x8xf32>
    %48 = vector.multi_reduction <add>, %47, %cst_19 [2] : vector<8x8x16xf32> to vector<8x8xf32>
    %49 = vector.shape_cast %48 : vector<8x8xf32> to vector<8x8x1xf32>
    %50 = tpu.reciprocal %49 {approx = true} : vector<8x8x1xf32> -> vector<8x8x1xf32>
    %51 = vector.broadcast %50 : vector<8x8x1xf32> to vector<8x8x16xf32>
    %52 = arith.mulf %47, %51 : vector<8x8x16xf32>
    "tpu.trace_start"() <{level = 10 : i32, message = "hij,hjd->hid"}> : () -> ()
    %cst_20 = arith.constant dense<0.000000e+00> : vector<8x8x8xf32>
    %53 = tpu.matmul %52, %36, %cst_20 {dimension_numbers = #tpu.dot_dimension_numbers<[2], [1], [1], [2], [0, 0, 0, 1, 1, 2], [0], [0]>} : vector<8x8x16xf32>, vector<8x16x8xf32>, vector<8x8x8xf32> -> vector<8x8x8xf32>
    "tpu.trace_stop"() : () -> ()
    %54 = tpu.concatenate %33, %53 in 1 : vector<8x8x8xf32>, vector<8x8x8xf32> -> vector<8x16x8xf32>
    %55 = tpu.transpose %54, [1, 0, 2] : vector<8x16x8xf32> -> vector<16x8x8xf32>
    %56 = vector.shape_cast %55 : vector<16x8x8xf32> to vector<16x64xf32>
    %c0_21 = arith.constant 0 : index
    %c0_22 = arith.constant 0 : index
    %57 = vector.load %arg6[%c0_21, %c0_22] : memref<64x64xf32, #tpu.memory_space<vmem>>, vector<64x64xf32>
    %cst_23 = arith.constant dense<0.000000e+00> : vector<16x64xf32>
    %58 = tpu.matmul %56, %57, %cst_23 {dimension_numbers = #tpu.dot_dimension_numbers<[1], [0], [0], [1], [0, 0, 1, 1], [], []>} : vector<16x64xf32>, vector<64x64xf32>, vector<16x64xf32> -> vector<16x64xf32>
    %c0_24 = arith.constant 0 : index
    %c0_25 = arith.constant 0 : index
    %59 = vector.load %arg7[%c0_24, %c0_25] : memref<1x64xf32, #tpu.memory_space<vmem>>, vector<1x64xf32>
    %60 = vector.broadcast %59 : vector<1x64xf32> to vector<16x64xf32>
    %61 = arith.addf %58, %60 : vector<16x64xf32>
    %c0_26 = arith.constant 0 : index
    %c0_27 = arith.constant 0 : index
    %62 = vector.load %arg8[%c0_26, %c0_27] : memref<16x64xf32, #tpu.memory_space<vmem>>, vector<16x64xf32>
    tpu.vector_store %arg8[%c0_26, %c0_27], %61 {strides = array<i32>} : memref<16x64xf32, #tpu.memory_space<vmem>>, vector<16x64xf32>,
    return
  }
  func.func @transform_0(%arg0: i32) -> (i32, i32) {
    %c0_i32 = arith.constant 0 : i32
    %c0_i32_0 = arith.constant 0 : i32
    return %arg0, %c0_i32 : i32, i32
  }
  func.func @transform_1(%arg0: i32) -> (i32, i32) {
    %c0_i32 = arith.constant 0 : i32
    %c0_i32_0 = arith.constant 0 : i32
    return %arg0, %c0_i32 : i32, i32
  }
  func.func @transform_2(%arg0: i32) -> (i32, i32, i32) {
    %c0_i32 = arith.constant 0 : i32
    %c0_i32_0 = arith.constant 0 : i32
    %c0_i32_1 = arith.constant 0 : i32
    return %arg0, %c0_i32, %c0_i32_0 : i32, i32, i32
  }
  func.func @transform_3(%arg0: i32) -> (i32, i32) {
    %c0_i32 = arith.constant 0 : i32
    %c0_i32_0 = arith.constant 0 : i32
    %c0_i32_1 = arith.constant 0 : i32
    return %c0_i32, %c0_i32_0 : i32, i32
  }
  func.func @transform_4(%arg0: i32) -> (i32, i32) {
    %c0_i32 = arith.constant 0 : i32
    %c0_i32_0 = arith.constant 0 : i32
    %c0_i32_1 = arith.constant 0 : i32
    return %c0_i32, %c0_i32_0 : i32, i32
  }
  func.func @transform_5(%arg0: i32) -> (i32, i32) {
    %c0_i32 = arith.constant 0 : i32
    %c0_i32_0 = arith.constant 0 : i32
    %c0_i32_1 = arith.constant 0 : i32
    return %c0_i32, %c0_i32_0 : i32, i32
  }
  func.func @transform_6(%arg0: i32) -> (i32, i32) {
    %c0_i32 = arith.constant 0 : i32
    %c0_i32_0 = arith.constant 0 : i32
    %c0_i32_1 = arith.constant 0 : i32
    return %c0_i32, %c0_i32_0 : i32, i32
  }
  func.func @transform_7(%arg0: i32) -> (i32, i32) {
    %c0_i32 = arith.constant 0 : i32
    %c0_i32_0 = arith.constant 0 : i32
    return %arg0, %c0_i32 : i32, i32
  }
}

</mosaic_0001>

<llo_original>
// kernel: tpu_custom_call.1
$region0: #{tpu_custom_call.1}
  #allocation0 [shape = 'u32[]', space=smem, size = 0x4, offset = 0x4, fixed_abs, tag = 'smem constant byte address 0x4 - core index']
  #allocation1 [shape = 'u32[144,128]{1,0:T(1,128)}', space=vmem, size = 0x12000, scoped, tag = 'internal scratch']
  %s0 = inlined_call_operand.hbm [shape: f32[16,64], index: 0, kind: input, shape index: {}]
  %s1 = inlined_call_operand.hbm [shape: f32[32,64], index: 1, kind: input, shape index: {}]
  %s2 = inlined_call_operand.vmem [shape: f32[2,1,16], index: 2, kind: input, shape index: {}]
  %s3 = inlined_call_operand.hbm [shape: f32[64,64], index: 3, kind: input, shape index: {}]
  %s4 = inlined_call_operand.hbm [shape: f32[64,128], index: 4, kind: input, shape index: {}]
  %s5 = inlined_call_operand.hbm [shape: f32[64,64], index: 5, kind: input, shape index: {}]
  %s6 = inlined_call_operand.vmem [shape: f32[1,64], index: 6, kind: input, shape index: {}]
  %s7 = inlined_call_operand.hbm [shape: f32[16,64], index: 7, kind: output, shape index: {}]
  %s8 = sld [smem:[#allocation0]]
  $region58: #{tpu_custom_call.1} parent=0
    _
  %s10 = ssub.s32 1, %s8
  %s11 = scalar_select 0, %s10, %s8
  $region1: #{tpu_custom_call.1} parent=0
    #allocation2 [shape = 'u8[8192]{0}', space=vmem, size = 0x2000, scoped, tag = 'input window, operand 0, single buffered']
    #allocation3 [shape = 's32[1]{0}', space=sflag, size = 0x4, scoped, tag = 'scoped memory for tpu_custom_call.1']
    #allocation4 [shape = 's32[1]{0}', space=sflag, size = 0x4, scoped, tag = 'scoped memory for tpu_custom_call.1']
    #allocation5 [shape = 'u8[16384]{0}', space=vmem, size = 0x4000, scoped, tag = 'input window, operand 1, single buffered']
    #allocation6 [shape = 's32[1]{0}', space=sflag, size = 0x4, scoped, tag = 'scoped memory for tpu_custom_call.1']
    #allocation7 [shape = 'u8[32768]{0}', space=vmem, size = 0x8000, scoped, tag = 'input window, operand 3, single buffered']
    #allocation8 [shape = 'u8[32768]{0}', space=vmem, size = 0x8000, scoped, tag = 'input window, operand 4, single buffered']
    #allocation9 [shape = 's32[1]{0}', space=sflag, size = 0x4, scoped, tag = 'scoped memory for tpu_custom_call.1']
    #allocation10 [shape = 'u8[32768]{0}', space=vmem, size = 0x8000, scoped, tag = 'input window, operand 5, single buffered']
    #allocation11 [shape = 'u8[8192]{0}', space=vmem, size = 0x2000, scoped, tag = 'output window, operand 0, single buffered']
    %12 = vsyncpa [#allocation3], 0
    %13 = vsyncpa [#allocation6], 0
    %14 = vsyncpa [#allocation9], 0
    %15 = vsyncpa [#allocation4], 0
    // Predicated region
    $region2: #{tpu_custom_call.1} parent=1 // pred_check
      _
    $region3: #{tpu_custom_call.1} parent=1 // pred_check_branch
      %17 = sbr.rel (0) target = $region5
    $region4: #{tpu_custom_call.1} parent=1 // pred_region
      %s19 = ssub.s32 256, 256
      %20 = vsyncadd [#allocation3], %s19
      %s21 = sshll.u32 [#allocation2], 4
      %s22 = int_to_ptr.vmem [resolvable:$true] %s21
      %27 = dma.hbm_to_vmem [thread:$0]  %s0, 256, %s22, [#allocation3], 128, 128, 8
    $region5: #{tpu_custom_call.1} parent=1 // pred_fallthru
      _
    // Predicated region
    $region6: #{tpu_custom_call.1} parent=1 // pred_check
      _
    $region7: #{tpu_custom_call.1} parent=1 // pred_check_branch
      %29 = sbr.rel (0) target = $region9
    $region8: #{tpu_custom_call.1} parent=1 // pred_region
      %s31 = ssub.s32 512, 512
      %32 = vsyncadd [#allocation6], %s31
      %s33 = sshll.u32 [#allocation5], 4
      %s34 = int_to_ptr.vmem [resolvable:$true] %s33
      %39 = dma.hbm_to_vmem [thread:$0]  %s1, 512, %s34, [#allocation6], 128, 128, 8
    $region9: #{tpu_custom_call.1} parent=1 // pred_fallthru
      _
    // Predicated region
    $region10: #{tpu_custom_call.1} parent=1 // pred_check
      _
    $region11: #{tpu_custom_call.1} parent=1 // pred_check_branch
      %41 = sbr.rel (0) target = $region13
    $region12: #{tpu_custom_call.1} parent=1 // pred_region
      _
    $region13: #{tpu_custom_call.1} parent=1 // pred_fallthru
      _
    // Predicated region
    $region14: #{tpu_custom_call.1} parent=1 // pred_check
      _
    $region15: #{tpu_custom_call.1} parent=1 // pred_check_branch
      %43 = sbr.rel (0) target = $region17
    $region16: #{tpu_custom_call.1} parent=1 // pred_region
      %s45 = ssub.s32 1024, 1024
      %46 = vsyncadd [#allocation6], %s45
      %s47 = sshll.u32 [#allocation7], 4
      %s48 = int_to_ptr.vmem [resolvable:$true] %s47
      %53 = dma.hbm_to_vmem [thread:$0]  %s3, 1024, %s48, [#allocation6], 128, 128, 8
    $region17: #{tpu_custom_call.1} parent=1 // pred_fallthru
      _
    // Predicated region
    $region18: #{tpu_custom_call.1} parent=1 // pred_check
      _
    $region19: #{tpu_custom_call.1} parent=1 // pred_check_branch
      %55 = sbr.rel (0) target = $region21
    $region20: #{tpu_custom_call.1} parent=1 // pred_region
      %s57 = ssub.s32 1024, 1024
      %58 = vsyncadd [#allocation9], %s57
      %s59 = sshll.u32 [#allocation8], 4
      %s60 = int_to_ptr.vmem [resolvable:$true] %s59
      %65 = dma.hbm_to_vmem [thread:$0]  %s4, 1024, %s60, [#allocation9], 128, 128, 8
    $region21: #{tpu_custom_call.1} parent=1 // pred_fallthru
      _
    // Predicated region
    $region22: #{tpu_custom_call.1} parent=1 // pred_check
      _
    $region23: #{tpu_custom_call.1} parent=1 // pred_check_branch
      %67 = sbr.rel (0) target = $region25
    $region24: #{tpu_custom_call.1} parent=1 // pred_region
      %s69 = ssub.s32 1024, 1024
      %70 = vsyncadd [#allocation9], %s69
      %s71 = sshll.u32 [#allocation10], 4
      %s72 = int_to_ptr.vmem [resolvable:$true] %s71
      %77 = dma.hbm_to_vmem [thread:$0]  %s5, 1024, %s72, [#allocation9], 128, 128, 8
    $region25: #{tpu_custom_call.1} parent=1 // pred_fallthru
      _
    // Predicated region
    $region26: #{tpu_custom_call.1} parent=1 // pred_check
      _
    $region27: #{tpu_custom_call.1} parent=1 // pred_check_branch
      %79 = sbr.rel (0) target = $region29
    $region28: #{tpu_custom_call.1} parent=1 // pred_region
      _
    $region29: #{tpu_custom_call.1} parent=1 // pred_fallthru
      _
    // Predicated region
    $region30: #{tpu_custom_call.1} parent=1 // pred_check
      _
    $region31: #{tpu_custom_call.1} parent=1 // pred_check_branch
      %81 = sbr.rel (0) target = $region33
    $region32: #{tpu_custom_call.1} parent=1 // pred_region
      %82 = dma.done [#allocation3], 256
    $region33: #{tpu_custom_call.1} parent=1 // pred_fallthru
      _
    // Predicated region
    $region34: #{tpu_custom_call.1} parent=1 // pred_check
      _
    $region35: #{tpu_custom_call.1} parent=1 // pred_check_branch
      %84 = sbr.rel (0) target = $region37
    $region36: #{tpu_custom_call.1} parent=1 // pred_region
      %85 = dma.done [#allocation6], 512
    $region37: #{tpu_custom_call.1} parent=1 // pred_fallthru
      _
    // Predicated region
    $region38: #{tpu_custom_call.1} parent=1 // pred_check
      _
    $region39: #{tpu_custom_call.1} parent=1 // pred_check_branch
      %87 = sbr.rel (0) target = $region41
    $region40: #{tpu_custom_call.1} parent=1 // pred_region
      %88 = dma.done [#allocation6], 1024
    $region41: #{tpu_custom_call.1} parent=1 // pred_fallthru
      _
    // Predicated region
    $region42: #{tpu_custom_call.1} parent=1 // pred_check
      _
    $region43: #{tpu_custom_call.1} parent=1 // pred_check_branch
      %90 = sbr.rel (0) target = $region45
    $region44: #{tpu_custom_call.1} parent=1 // pred_region
      %91 = dma.done [#allocation9], 1024
    $region45: #{tpu_custom_call.1} parent=1 // pred_fallthru
      _
    // Predicated region
    $region46: #{tpu_custom_call.1} parent=1 // pred_check
      _
    $region47: #{tpu_custom_call.1} parent=1 // pred_check_branch
      %93 = sbr.rel (0) target = $region49
    $region48: #{tpu_custom_call.1} parent=1 // pred_region
      %94 = dma.done [#allocation9], 1024
    $region49: #{tpu_custom_call.1} parent=1 // pred_fallthru
      _
    %v95 = vld [vmem:[#allocation2] sm:$0xff]
    %v96 = vld [vmem:[#allocation2 + $0x8] sm:$0xff]
    %v97 = vld [vmem:[#allocation7] sm:$0xff]
    %v98 = vld [vmem:[#allocation7 + $0x8] sm:$0xff]
    %v99 = vld [vmem:[#allocation7 + $0x10] sm:$0xff]
    %v100 = vld [vmem:[#allocation7 + $0x18] sm:$0xff]
    %v101 = vld [vmem:[#allocation7 + $0x20] sm:$0xff]
    %v102 = vld [vmem:[#allocation7 + $0x28] sm:$0xff]
    %v103 = vld [vmem:[#allocation7 + $0x30] sm:$0xff]
    %v104 = vld [vmem:[#allocation7 + $0x38] sm:$0xff]
    %vm105 = vcmask 523264
    %v107 = vsel %vm105, %v95, 0
    %v110 = vsel %vm105, %v96, 0
    %112 = vmatprep.subr.mxu0 0.0
    %113 = vmatpush1.msra.mxu0 %v97
    %114 = vmatprep.subr.mxu0 0.0
    %115 = vmatpush1.msra.mxu0 %v98
    %116 = vmatprep.subr.mxu0 0.0
    %117 = vmatpush1.msra.mxu0 %v99
    %118 = vmatprep.subr.mxu0 0.0
    %119 = vmatpush1.msra.mxu0 %v100
    %120 = vmatprep.subr.mxu0 0.0
    %121 = vmatpush1.msra.mxu0 %v101
    %122 = vmatprep.subr.mxu0 0.0
    %123 = vmatpush1.msra.mxu0 %v102
    %124 = vmatprep.subr.mxu0 0.0
    %125 = vmatpush1.msra.mxu0 %v103
    %126 = vmatprep.subr.mxu0 0.0
    %127 = vmatpush1.msra.mxu0 %v104
    %128 = vmatprep.subr.mxu0 0.0
    %129 = vmatpush1.msra.mxu0 0.0
    %130 = vmatprep.subr.mxu0 0.0
    %131 = vmatpush1.msra.mxu0 0.0
    %132 = vmatprep.subr.mxu0 0.0
    %133 = vmatpush1.msra.mxu0 0.0
    %134 = vmatprep.subr.mxu0 0.0
    %135 = vmatpush1.msra.mxu0 0.0
    %136 = vmatprep.subr.mxu0 0.0
    %137 = vmatpush1.msra.mxu0 0.0
    %138 = vmatprep.subr.mxu0 0.0
    %139 = vmatpush1.msra.mxu0 0.0
    %140 = vmatprep.subr.mxu0 0.0
    %141 = vmatpush1.msra.mxu0 0.0
    %142 = vmatprep.subr.mxu0 0.0
    %143 = vmatpush1.msra.mxu0 0.0
    %144 = vmatprep.subr.mxu0 0.0
    %145 = vmatpush1.msra.mxu0 0.0
    %146 = vmatprep.subr.mxu0 0.0
    %147 = vmatpush1.msra.mxu0 0.0
    %148 = vmatprep.subr.mxu0 0.0
    %149 = vmatpush1.msra.mxu0 0.0
    %150 = vmatprep.subr.mxu0 0.0
    %151 = vmatpush1.msra.mxu0 0.0
    %152 = vmatprep.subr.mxu0 0.0
    %153 = vmatpush1.msra.mxu0 0.0
    %154 = vmatprep.subr.mxu0 0.0
    %155 = vmatpush1.msra.mxu0 0.0
    %156 = vmatprep.subr.mxu0 0.0
    %157 = vmatpush1.msra.mxu0 0.0
    %158 = vmatprep.subr.mxu0 0.0
    %159 = vmatpush1.msra.mxu0 0.0
    %160 = vmatprep.subr.mxu0 0.0
    %161 = vmatpush1.msra.mxu0 0.0
    %162 = vmatprep.subr.mxu0 0.0
    %163 = vmatpush1.msra.mxu0 0.0
    %164 = vmatprep.subr.mxu0 0.0
    %165 = vmatpush1.msra.mxu0 0.0
    %166 = vmatprep.subr.mxu0 0.0
    %167 = vmatpush1.msra.mxu0 0.0
    %168 = vmatprep.subr.mxu0 0.0
    %169 = vmatpush1.msra.mxu0 0.0
    %170 = vmatprep.subr.mxu0 0.0
    %171 = vmatpush1.msra.mxu0 0.0
    %172 = vmatprep.subr.mxu0 0.0
    %173 = vmatpush1.msra.mxu0 0.0
    %174 = vmatprep.subr.mxu0 0.0
    %175 = vmatpush1.msra.mxu0 0.0
    %176 = vmatprep.mubr.f32.mxu0 0.0
    %177 = vmatmul.mubr.f32.gmra.mrb[0].mxu0 %v107
    %v178 = vpop.f32.mrb[0].mxu0
    %v179 = vadd.f32 0.0, %v178
    %v180 = vpop.f32.mrb[0].mxu0
    %181 = vmatprep.mubr.f32.mxu0 0.0
    %182 = vmatmul.mubr.f32.gmra.mrb[0].mxu0 %v110
    %v183 = vpop.f32.mrb[0].mxu0
    %v184 = vadd.f32 0.0, %v183
    %v185 = vpop.f32.mrb[0].mxu0
    %186 = vdwg.mxu0
    %v187 = vld [vmem:[#allocation5] sm:$0xff]
    %v188 = vld [vmem:[#allocation5 + $0x8] sm:$0xff]
    %v189 = vld [vmem:[#allocation5 + $0x10] sm:$0xff]
    %v190 = vld [vmem:[#allocation5 + $0x18] sm:$0xff]
    %v191 = vld [vmem:[#allocation8] sm:$0xff]
    %v192 = vld [vmem:[#allocation8 + $0x8] sm:$0xff]
    %v193 = vld [vmem:[#allocation8 + $0x10] sm:$0xff]
    %v194 = vld [vmem:[#allocation8 + $0x18] sm:$0xff]
    %v195 = vld [vmem:[#allocation8 + $0x20] sm:$0xff]
    %v196 = vld [vmem:[#allocation8 + $0x28] sm:$0xff]
    %v197 = vld [vmem:[#allocation8 + $0x30] sm:$0xff]
    %v198 = vld [vmem:[#allocation8 + $0x38] sm:$0xff]
    %v200 = vsel %vm105, %v187, 0
    %v203 = vsel %vm105, %v188, 0
    %v206 = vsel %vm105, %v189, 0
    %v209 = vsel %vm105, %v190, 0
    %211 = vmatprep.subr.mxu0 0.0
    %212 = vmatpush1.msra.mxu0 %v191
    %213 = vmatprep.subr.mxu0 0.0
    %214 = vmatpush1.msra.mxu0 %v192
    %215 = vmatprep.subr.mxu0 0.0
    %216 = vmatpush1.msra.mxu0 %v193
    %217 = vmatprep.subr.mxu0 0.0
    %218 = vmatpush1.msra.mxu0 %v194
    %219 = vmatprep.subr.mxu0 0.0
    %220 = vmatpush1.msra.mxu0 %v195
    %221 = vmatprep.subr.mxu0 0.0
    %222 = vmatpush1.msra.mxu0 %v196
    %223 = vmatprep.subr.mxu0 0.0
    %224 = vmatpush1.msra.mxu0 %v197
    %225 = vmatprep.subr.mxu0 0.0
    %226 = vmatpush1.msra.mxu0 %v198
    %227 = vmatprep.subr.mxu0 0.0
    %228 = vmatpush1.msra.mxu0 0.0
    %229 = vmatprep.subr.mxu0 0.0
    %230 = vmatpush1.msra.mxu0 0.0
    %231 = vmatprep.subr.mxu0 0.0
    %232 = vmatpush1.msra.mxu0 0.0
    %233 = vmatprep.subr.mxu0 0.0
    %234 = vmatpush1.msra.mxu0 0.0
    %235 = vmatprep.subr.mxu0 0.0
    %236 = vmatpush1.msra.mxu0 0.0
    %237 = vmatprep.subr.mxu0 0.0
    %238 = vmatpush1.msra.mxu0 0.0
    %239 = vmatprep.subr.mxu0 0.0
    %240 = vmatpush1.msra.mxu0 0.0
    %241 = vmatprep.subr.mxu0 0.0
    %242 = vmatpush1.msra.mxu0 0.0
    %243 = vmatprep.subr.mxu0 0.0
    %244 = vmatpush1.msra.mxu0 0.0
    %245 = vmatprep.subr.mxu0 0.0
    %246 = vmatpush1.msra.mxu0 0.0
    %247 = vmatprep.subr.mxu0 0.0
    %248 = vmatpush1.msra.mxu0 0.0
    %249 = vmatprep.subr.mxu0 0.0
    %250 = vmatpush1.msra.mxu0 0.0
    %251 = vmatprep.subr.mxu0 0.0
    %252 = vmatpush1.msra.mxu0 0.0
    %253 = vmatprep.subr.mxu0 0.0
    %254 = vmatpush1.msra.mxu0 0.0
    %255 = vmatprep.subr.mxu0 0.0
    %256 = vmatpush1.msra.mxu0 0.0
    %257 = vmatprep.subr.mxu0 0.0
    %258 = vmatpush1.msra.mxu0 0.0
    %259 = vmatprep.subr.mxu0 0.0
    %260 = vmatpush1.msra.mxu0 0.0
    %261 = vmatprep.subr.mxu0 0.0
    %262 = vmatpush1.msra.mxu0 0.0
    %263 = vmatprep.subr.mxu0 0.0
    %264 = vmatpush1.msra.mxu0 0.0
    %265 = vmatprep.subr.mxu0 0.0
    %266 = vmatpush1.msra.mxu0 0.0
    %267 = vmatprep.subr.mxu0 0.0
    %268 = vmatpush1.msra.mxu0 0.0
    %269 = vmatprep.subr.mxu0 0.0
    %270 = vmatpush1.msra.mxu0 0.0
    %271 = vmatprep.subr.mxu0 0.0
    %272 = vmatpush1.msra.mxu0 0.0
    %273 = vmatprep.subr.mxu0 0.0
    %274 = vmatpush1.msra.mxu0 0.0
    %275 = vmatprep.mubr.f32.mxu0 0.0
    %276 = vmatmul.mubr.f32.gmra.mrb[0].mxu0 %v200
    %v277 = vpop.f32.mrb[0].mxu0
    %v278 = vadd.f32 0.0, %v277
    %v279 = vpop.f32.mrb[0].mxu0
    %280 = vmatprep.mubr.f32.mxu0 0.0
    %281 = vmatmul.mubr.f32.gmra.mrb[0].mxu0 %v203
    %v282 = vpop.f32.mrb[0].mxu0
    %v283 = vadd.f32 0.0, %v282
    %v284 = vpop.f32.mrb[0].mxu0
    %285 = vmatprep.mubr.f32.mxu0 0.0
    %286 = vmatmul.mubr.f32.gmra.mrb[0].mxu0 %v206
    %v287 = vpop.f32.mrb[0].mxu0
    %v288 = vadd.f32 0.0, %v287
    %v289 = vpop.f32.mrb[0].mxu0
    %290 = vmatprep.mubr.f32.mxu0 0.0
    %291 = vmatmul.mubr.f32.gmra.mrb[0].mxu0 %v209
    %v292 = vpop.f32.mrb[0].mxu0
    %v293 = vadd.f32 0.0, %v292
    %v294 = vpop.f32.mrb[0].mxu0
    %295 = vdwg.mxu0
    %298 = vrot.lane.b32.xlu0 %v179, 120
    %v299 = vpop.permute.xlu0 %298
    %300 = vrot.lane.b32.xlu0 %v184, 120
    %v301 = vpop.permute.xlu0 %300
    %304 = vrot.lane.b32.xlu0 %v179, 112
    %v305 = vpop.permute.xlu0 %304
    %306 = vrot.lane.b32.xlu0 %v184, 112
    %v307 = vpop.permute.xlu0 %306
    %310 = vrot.lane.b32.xlu0 %v179, 104
    %v311 = vpop.permute.xlu0 %310
    %312 = vrot.lane.b32.xlu0 %v184, 104
    %v313 = vpop.permute.xlu0 %312
    %316 = vrot.lane.b32.xlu0 %v179, 96
    %v317 = vpop.permute.xlu0 %316
    %318 = vrot.lane.b32.xlu0 %v184, 96
    %v319 = vpop.permute.xlu0 %318
    %322 = vrot.lane.b32.xlu0 %v179, 88
    %v323 = vpop.permute.xlu0 %322
    %324 = vrot.lane.b32.xlu0 %v184, 88
    %v325 = vpop.permute.xlu0 %324
    %328 = vrot.lane.b32.xlu0 %v179, 80
    %v329 = vpop.permute.xlu0 %328
    %330 = vrot.lane.b32.xlu0 %v184, 80
    %v331 = vpop.permute.xlu0 %330
    %334 = vrot.lane.b32.xlu0 %v179, 72
    %v335 = vpop.permute.xlu0 %334
    %336 = vrot.lane.b32.xlu0 %v184, 72
    %v337 = vpop.permute.xlu0 %336
    %v340 = vcombine.low %v179, %v305
    %v341 = vcombine.high %v179, %v305
    %v343 = vunpack.c.l.s4 1983009808
    %v344 = vunpack.c.0.s8 %v343
    %v345 = vlaneseq
    %v346 = vshrl.u32 %v345, 7
    %v347 = vsub.s32 %v344, %v346
    %v348 = vrot.slane %v340, %v347
    %v350 = vunpack.c.l.s4 1983009808
    %v351 = vunpack.c.0.s8 %v350
    %v352 = vlaneseq
    %v353 = vshrl.u32 %v352, 7
    %v354 = vsub.s32 %v351, %v353
    %v355 = vrot.slane %v341, %v354
    %v356 = vcombine.low %v299, %v311
    %v357 = vcombine.high %v299, %v311
    %v359 = vunpack.c.l.s4 1983009808
    %v360 = vunpack.c.0.s8 %v359
    %v361 = vlaneseq
    %v362 = vshrl.u32 %v361, 7
    %v363 = vsub.s32 %v360, %v362
    %v364 = vrot.slane %v356, %v363
    %v366 = vunpack.c.l.s4 1983009808
    %v367 = vunpack.c.0.s8 %v366
    %v368 = vlaneseq
    %v369 = vshrl.u32 %v368, 7
    %v370 = vsub.s32 %v367, %v369
    %v371 = vrot.slane %v357, %v370
    %v372 = vcombine.low %v317, %v329
    %v373 = vcombine.high %v317, %v329
    %v375 = vunpack.c.l.s4 1983009808
    %v376 = vunpack.c.0.s8 %v375
    %v377 = vlaneseq
    %v378 = vshrl.u32 %v377, 7
    %v379 = vsub.s32 %v376, %v378
    %v380 = vrot.slane %v372, %v379
    %v382 = vunpack.c.l.s4 1983009808
    %v383 = vunpack.c.0.s8 %v382
    %v384 = vlaneseq
    %v385 = vshrl.u32 %v384, 7
    %v386 = vsub.s32 %v383, %v385
    %v387 = vrot.slane %v373, %v386
    %v388 = vcombine.low %v323, %v335
    %v389 = vcombine.high %v323, %v335
    %v391 = vunpack.c.l.s4 1983009808
    %v392 = vunpack.c.0.s8 %v391
    %v393 = vlaneseq
    %v394 = vshrl.u32 %v393, 7
    %v395 = vsub.s32 %v392, %v394
    %v396 = vrot.slane %v388, %v395
    %v398 = vunpack.c.l.s4 1983009808
    %v399 = vunpack.c.0.s8 %v398
    %v400 = vlaneseq
    %v401 = vshrl.u32 %v400, 7
    %v402 = vsub.s32 %v399, %v401
    %v403 = vrot.slane %v389, %v402
    %v404 = vcombine.low %v348, %v364
    %v405 = vcombine.high %v348, %v364
    %v407 = vunpack.c.l.s4 1934713408
    %v408 = vunpack.c.0.s8 %v407
    %v409 = vlaneseq
    %v410 = vshrl.u32 %v409, 7
    %v411 = vsub.s32 %v408, %v410
    %v412 = vrot.slane %v404, %v411
    %v414 = vunpack.c.l.s4 1934713408
    %v415 = vunpack.c.0.s8 %v414
    %v416 = vlaneseq
    %v417 = vshrl.u32 %v416, 7
    %v418 = vsub.s32 %v415, %v417
    %v419 = vrot.slane %v405, %v418
    %v420 = vcombine.low %v355, %v371
    %v421 = vcombine.high %v355, %v371
    %v423 = vunpack.c.l.s4 1934713408
    %v424 = vunpack.c.0.s8 %v423
    %v425 = vlaneseq
    %v426 = vshrl.u32 %v425, 7
    %v427 = vsub.s32 %v424, %v426
    %v428 = vrot.slane %v420, %v427
    %v430 = vunpack.c.l.s4 1934713408
    %v431 = vunpack.c.0.s8 %v430
    %v432 = vlaneseq
    %v433 = vshrl.u32 %v432, 7
    %v434 = vsub.s32 %v431, %v433
    %v435 = vrot.slane %v421, %v434
    %v436 = vcombine.low %v380, %v396
    %v437 = vcombine.high %v380, %v396
    %v439 = vunpack.c.l.s4 1934713408
    %v440 = vunpack.c.0.s8 %v439
    %v441 = vlaneseq
    %v442 = vshrl.u32 %v441, 7
    %v443 = vsub.s32 %v440, %v442
    %v444 = vrot.slane %v436, %v443
    %v446 = vunpack.c.l.s4 1934713408
    %v447 = vunpack.c.0.s8 %v446
    %v448 = vlaneseq
    %v449 = vshrl.u32 %v448, 7
    %v450 = vsub.s32 %v447, %v449
    %v451 = vrot.slane %v437, %v450
    %v452 = vcombine.low %v387, %v403
    %v453 = vcombine.high %v387, %v403
    %v455 = vunpack.c.l.s4 1934713408
    %v456 = vunpack.c.0.s8 %v455
    %v457 = vlaneseq
    %v458 = vshrl.u32 %v457, 7
    %v459 = vsub.s32 %v456, %v458
    %v460 = vrot.slane %v452, %v459
    %v462 = vunpack.c.l.s4 1934713408
    %v463 = vunpack.c.0.s8 %v462
    %v464 = vlaneseq
    %v465 = vshrl.u32 %v464, 7
    %v466 = vsub.s32 %v463, %v465
    %v467 = vrot.slane %v453, %v466
    %v468 = vcombine.low %v412, %v444
    %v469 = vcombine.high %v412, %v444
    %v470 = vcombine.low %v419, %v451
    %v471 = vcombine.high %v419, %v451
    %v472 = vcombine.low %v428, %v460
    %v473 = vcombine.high %v428, %v460
    %v474 = vcombine.low %v435, %v467
    %v475 = vcombine.high %v435, %v467
    %v476 = vcombine.low %v184, %v307
    %v477 = vcombine.high %v184, %v307
    %v479 = vunpack.c.l.s4 1983009808
    %v480 = vunpack.c.0.s8 %v479
    %v481 = vlaneseq
    %v482 = vshrl.u32 %v481, 7
    %v483 = vsub.s32 %v480, %v482
    %v484 = vrot.slane %v476, %v483
    %v486 = vunpack.c.l.s4 1983009808
    %v487 = vunpack.c.0.s8 %v486
    %v488 = vlaneseq
    %v489 = vshrl.u32 %v488, 7
    %v490 = vsub.s32 %v487, %v489
    %v491 = vrot.slane %v477, %v490
    %v492 = vcombine.low %v301, %v313
    %v493 = vcombine.high %v301, %v313
    %v495 = vunpack.c.l.s4 1983009808
    %v496 = vunpack.c.0.s8 %v495
    %v497 = vlaneseq
    %v498 = vshrl.u32 %v497, 7
    %v499 = vsub.s32 %v496, %v498
    %v500 = vrot.slane %v492, %v499
    %v502 = vunpack.c.l.s4 1983009808
    %v503 = vunpack.c.0.s8 %v502
    %v504 = vlaneseq
    %v505 = vshrl.u32 %v504, 7
    %v506 = vsub.s32 %v503, %v505
    %v507 = vrot.slane %v493, %v506
    %v508 = vcombine.low %v319, %v331
    %v509 = vcombine.high %v319, %v331
    %v511 = vunpack.c.l.s4 1983009808
    %v512 = vunpack.c.0.s8 %v511
    %v513 = vlaneseq
    %v514 = vshrl.u32 %v513, 7
    %v515 = vsub.s32 %v512, %v514
    %v516 = vrot.slane %v508, %v515
    %v518 = vunpack.c.l.s4 1983009808
    %v519 = vunpack.c.0.s8 %v518
    %v520 = vlaneseq
    %v521 = vshrl.u32 %v520, 7
    %v522 = vsub.s32 %v519, %v521
    %v523 = vrot.slane %v509, %v522
    %v524 = vcombine.low %v325, %v337
    %v525 = vcombine.high %v325, %v337
    %v527 = vunpack.c.l.s4 1983009808
    %v528 = vunpack.c.0.s8 %v527
    %v529 = vlaneseq
    %v530 = vshrl.u32 %v529, 7
    %v531 = vsub.s32 %v528, %v530
    %v532 = vrot.slane %v524, %v531
    %v534 = vunpack.c.l.s4 1983009808
    %v535 = vunpack.c.0.s8 %v534
    %v536 = vlaneseq
    %v537 = vshrl.u32 %v536, 7
    %v538 = vsub.s32 %v535, %v537
    %v539 = vrot.slane %v525, %v538
    %v540 = vcombine.low %v484, %v500
    %v541 = vcombine.high %v484, %v500
    %v543 = vunpack.c.l.s4 1934713408
    %v544 = vunpack.c.0.s8 %v543
    %v545 = vlaneseq
    %v546 = vshrl.u32 %v545, 7
    %v547 = vsub.s32 %v544, %v546
    %v548 = vrot.slane %v540, %v547
    %v550 = vunpack.c.l.s4 1934713408
    %v551 = vunpack.c.0.s8 %v550
    %v552 = vlaneseq
    %v553 = vshrl.u32 %v552, 7
    %v554 = vsub.s32 %v551, %v553
    %v555 = vrot.slane %v541, %v554
    %v556 = vcombine.low %v491, %v507
    %v557 = vcombine.high %v491, %v507
    %v559 = vunpack.c.l.s4 1934713408
    %v560 = vunpack.c.0.s8 %v559
    %v561 = vlaneseq
    %v562 = vshrl.u32 %v561, 7
    %v563 = vsub.s32 %v560, %v562
    %v564 = vrot.slane %v556, %v563
    %v566 = vunpack.c.l.s4 1934713408
    %v567 = vunpack.c.0.s8 %v566
    %v568 = vlaneseq
    %v569 = vshrl.u32 %v568, 7
    %v570 = vsub.s32 %v567, %v569
    %v571 = vrot.slane %v557, %v570
    %v572 = vcombine.low %v516, %v532
    %v573 = vcombine.high %v516, %v532
    %v575 = vunpack.c.l.s4 1934713408
    %v576 = vunpack.c.0.s8 %v575
    %v577 = vlaneseq
    %v578 = vshrl.u32 %v577, 7
    %v579 = vsub.s32 %v576, %v578
    %v580 = vrot.slane %v572, %v579
    %v582 = vunpack.c.l.s4 1934713408
    %v583 = vunpack.c.0.s8 %v582
    %v584 = vlaneseq
    %v585 = vshrl.u32 %v584, 7
    %v586 = vsub.s32 %v583, %v585
    %v587 = vrot.slane %v573, %v586
    %v588 = vcombine.low %v523, %v539
    %v589 = vcombine.high %v523, %v539
    %v591 = vunpack.c.l.s4 1934713408
    %v592 = vunpack.c.0.s8 %v591
    %v593 = vlaneseq
    %v594 = vshrl.u32 %v593, 7
    %v595 = vsub.s32 %v592, %v594
    %v596 = vrot.slane %v588, %v595
    %v598 = vunpack.c.l.s4 1934713408
    %v599 = vunpack.c.0.s8 %v598
    %v600 = vlaneseq
    %v601 = vshrl.u32 %v600, 7
    %v602 = vsub.s32 %v599, %v601
    %v603 = vrot.slane %v589, %v602
    %v604 = vcombine.low %v548, %v580
    %v605 = vcombine.high %v548, %v580
    %v606 = vcombine.low %v555, %v587
    %v607 = vcombine.high %v555, %v587
    %v608 = vcombine.low %v564, %v596
    %v609 = vcombine.high %v564, %v596
    %v610 = vcombine.low %v571, %v603
    %v611 = vcombine.high %v571, %v603
    %v612 = vcombine.low %v468, %v470
    %v613 = vcombine.high %v468, %v470
    %v615 = vunpack.c.l.s4 1983009808
    %v616 = vunpack.c.0.s8 %v615
    %v617 = vlaneseq
    %v618 = vshrl.u32 %v617, 7
    %v619 = vsub.s32 %v616, %v618
    %v620 = vrot.slane %v612, %v619
    %v622 = vunpack.c.l.s4 1983009808
    %v623 = vunpack.c.0.s8 %v622
    %v624 = vlaneseq
    %v625 = vshrl.u32 %v624, 7
    %v626 = vsub.s32 %v623, %v625
    %v627 = vrot.slane %v613, %v626
    %v628 = vcombine.low %v469, %v471
    %v629 = vcombine.high %v469, %v471
    %v631 = vunpack.c.l.s4 1983009808
    %v632 = vunpack.c.0.s8 %v631
    %v633 = vlaneseq
    %v634 = vshrl.u32 %v633, 7
    %v635 = vsub.s32 %v632, %v634
    %v636 = vrot.slane %v628, %v635
    %v638 = vunpack.c.l.s4 1983009808
    %v639 = vunpack.c.0.s8 %v638
    %v640 = vlaneseq
    %v641 = vshrl.u32 %v640, 7
    %v642 = vsub.s32 %v639, %v641
    %v643 = vrot.slane %v629, %v642
    %v644 = vcombine.low %v472, %v474
    %v645 = vcombine.high %v472, %v474
    %v647 = vunpack.c.l.s4 1983009808
    %v648 = vunpack.c.0.s8 %v647
    %v649 = vlaneseq
    %v650 = vshrl.u32 %v649, 7
    %v651 = vsub.s32 %v648, %v650
    %v652 = vrot.slane %v644, %v651
    %v654 = vunpack.c.l.s4 1983009808
    %v655 = vunpack.c.0.s8 %v654
    %v656 = vlaneseq
    %v657 = vshrl.u32 %v656, 7
    %v658 = vsub.s32 %v655, %v657
    %v659 = vrot.slane %v645, %v658
    %v660 = vcombine.low %v473, %v475
    %v661 = vcombine.high %v473, %v475
    %v663 = vunpack.c.l.s4 1983009808
    %v664 = vunpack.c.0.s8 %v663
    %v665 = vlaneseq
    %v666 = vshrl.u32 %v665, 7
    %v667 = vsub.s32 %v664, %v666
    %v668 = vrot.slane %v660, %v667
    %v670 = vunpack.c.l.s4 1983009808
    %v671 = vunpack.c.0.s8 %v670
    %v672 = vlaneseq
    %v673 = vshrl.u32 %v672, 7
    %v674 = vsub.s32 %v671, %v673
    %v675 = vrot.slane %v661, %v674
    %v676 = vcombine.low %v620, %v636
    %v677 = vcombine.high %v620, %v636
    %v679 = vunpack.c.l.s4 1934713408
    %v680 = vunpack.c.0.s8 %v679
    %v681 = vlaneseq
    %v682 = vshrl.u32 %v681, 7
    %v683 = vsub.s32 %v680, %v682
    %v684 = vrot.slane %v676, %v683
    %v686 = vunpack.c.l.s4 1934713408
    %v687 = vunpack.c.0.s8 %v686
    %v688 = vlaneseq
    %v689 = vshrl.u32 %v688, 7
    %v690 = vsub.s32 %v687, %v689
    %v691 = vrot.slane %v677, %v690
    %v692 = vcombine.low %v627, %v643
    %v693 = vcombine.high %v627, %v643
    %v695 = vunpack.c.l.s4 1934713408
    %v696 = vunpack.c.0.s8 %v695
    %v697 = vlaneseq
    %v698 = vshrl.u32 %v697, 7
    %v699 = vsub.s32 %v696, %v698
    %v700 = vrot.slane %v692, %v699
    %v702 = vunpack.c.l.s4 1934713408
    %v703 = vunpack.c.0.s8 %v702
    %v704 = vlaneseq
    %v705 = vshrl.u32 %v704, 7
    %v706 = vsub.s32 %v703, %v705
    %v707 = vrot.slane %v693, %v706
    %v708 = vcombine.low %v652, %v668
    %v709 = vcombine.high %v652, %v668
    %v711 = vunpack.c.l.s4 1934713408
    %v712 = vunpack.c.0.s8 %v711
    %v713 = vlaneseq
    %v714 = vshrl.u32 %v713, 7
    %v715 = vsub.s32 %v712, %v714
    %v716 = vrot.slane %v708, %v715
    %v718 = vunpack.c.l.s4 1934713408
    %v719 = vunpack.c.0.s8 %v718
    %v720 = vlaneseq
    %v721 = vshrl.u32 %v720, 7
    %v722 = vsub.s32 %v719, %v721
    %v723 = vrot.slane %v709, %v722
    %v724 = vcombine.low %v659, %v675
    %v725 = vcombine.high %v659, %v675
    %v727 = vunpack.c.l.s4 1934713408
    %v728 = vunpack.c.0.s8 %v727
    %v729 = vlaneseq
    %v730 = vshrl.u32 %v729, 7
    %v731 = vsub.s32 %v728, %v730
    %v732 = vrot.slane %v724, %v731
    %v734 = vunpack.c.l.s4 1934713408
    %v735 = vunpack.c.0.s8 %v734
    %v736 = vlaneseq
    %v737 = vshrl.u32 %v736, 7
    %v738 = vsub.s32 %v735, %v737
    %v739 = vrot.slane %v725, %v738
    %v740 = vcombine.low %v684, %v716
    %v741 = vcombine.high %v684, %v716
    %v742 = vcombine.low %v691, %v723
    %v743 = vcombine.high %v691, %v723
    %v744 = vcombine.low %v700, %v732
    %v745 = vcombine.high %v700, %v732
    %v746 = vcombine.low %v707, %v739
    %v747 = vcombine.high %v707, %v739
    %v748 = vcombine.low %v604, %v606
    %v749 = vcombine.high %v604, %v606
    %v751 = vunpack.c.l.s4 1983009808
    %v752 = vunpack.c.0.s8 %v751
    %v753 = vlaneseq
    %v754 = vshrl.u32 %v753, 7
    %v755 = vsub.s32 %v752, %v754
    %v756 = vrot.slane %v748, %v755
    %v758 = vunpack.c.l.s4 1983009808
    %v759 = vunpack.c.0.s8 %v758
    %v760 = vlaneseq
    %v761 = vshrl.u32 %v760, 7
    %v762 = vsub.s32 %v759, %v761
    %v763 = vrot.slane %v749, %v762
    %v764 = vcombine.low %v605, %v607
    %v765 = vcombine.high %v605, %v607
    %v767 = vunpack.c.l.s4 1983009808
    %v768 = vunpack.c.0.s8 %v767
    %v769 = vlaneseq
    %v770 = vshrl.u32 %v769, 7
    %v771 = vsub.s32 %v768, %v770
    %v772 = vrot.slane %v764, %v771
    %v774 = vunpack.c.l.s4 1983009808
    %v775 = vunpack.c.0.s8 %v774
    %v776 = vlaneseq
    %v777 = vshrl.u32 %v776, 7
    %v778 = vsub.s32 %v775, %v777
    %v779 = vrot.slane %v765, %v778
    %v780 = vcombine.low %v608, %v610
    %v781 = vcombine.high %v608, %v610
    %v783 = vunpack.c.l.s4 1983009808
    %v784 = vunpack.c.0.s8 %v783
    %v785 = vlaneseq
    %v786 = vshrl.u32 %v785, 7
    %v787 = vsub.s32 %v784, %v786
    %v788 = vrot.slane %v780, %v787
    %v790 = vunpack.c.l.s4 1983009808
    %v791 = vunpack.c.0.s8 %v790
    %v792 = vlaneseq
    %v793 = vshrl.u32 %v792, 7
    %v794 = vsub.s32 %v791, %v793
    %v795 = vrot.slane %v781, %v794
    %v796 = vcombine.low %v609, %v611
    %v797 = vcombine.high %v609, %v611
    %v799 = vunpack.c.l.s4 1983009808
    %v800 = vunpack.c.0.s8 %v799
    %v801 = vlaneseq
    %v802 = vshrl.u32 %v801, 7
    %v803 = vsub.s32 %v800, %v802
    %v804 = vrot.slane %v796, %v803
    %v806 = vunpack.c.l.s4 1983009808
    %v807 = vunpack.c.0.s8 %v806
    %v808 = vlaneseq
    %v809 = vshrl.u32 %v808, 7
    %v810 = vsub.s32 %v807, %v809
    %v811 = vrot.slane %v797, %v810
    %v812 = vcombine.low %v756, %v772
    %v813 = vcombine.high %v756, %v772
    %v815 = vunpack.c.l.s4 1934713408
    %v816 = vunpack.c.0.s8 %v815
    %v817 = vlaneseq
    %v818 = vshrl.u32 %v817, 7
    %v819 = vsub.s32 %v816, %v818
    %v820 = vrot.slane %v812, %v819
    %v822 = vunpack.c.l.s4 1934713408
    %v823 = vunpack.c.0.s8 %v822
    %v824 = vlaneseq
    %v825 = vshrl.u32 %v824, 7
    %v826 = vsub.s32 %v823, %v825
    %v827 = vrot.slane %v813, %v826
    %v828 = vcombine.low %v763, %v779
    %v829 = vcombine.high %v763, %v779
    %v831 = vunpack.c.l.s4 1934713408
    %v832 = vunpack.c.0.s8 %v831
    %v833 = vlaneseq
    %v834 = vshrl.u32 %v833, 7
    %v835 = vsub.s32 %v832, %v834
    %v836 = vrot.slane %v828, %v835
    %v838 = vunpack.c.l.s4 1934713408
    %v839 = vunpack.c.0.s8 %v838
    %v840 = vlaneseq
    %v841 = vshrl.u32 %v840, 7
    %v842 = vsub.s32 %v839, %v841
    %v843 = vrot.slane %v829, %v842
    %v844 = vcombine.low %v788, %v804
    %v845 = vcombine.high %v788, %v804
    %v847 = vunpack.c.l.s4 1934713408
    %v848 = vunpack.c.0.s8 %v847
    %v849 = vlaneseq
    %v850 = vshrl.u32 %v849, 7
    %v851 = vsub.s32 %v848, %v850
    %v852 = vrot.slane %v844, %v851
    %v854 = vunpack.c.l.s4 1934713408
    %v855 = vunpack.c.0.s8 %v854
    %v856 = vlaneseq
    %v857 = vshrl.u32 %v856, 7
    %v858 = vsub.s32 %v855, %v857
    %v859 = vrot.slane %v845, %v858
    %v860 = vcombine.low %v795, %v811
    %v861 = vcombine.high %v795, %v811
    %v863 = vunpack.c.l.s4 1934713408
    %v864 = vunpack.c.0.s8 %v863
    %v865 = vlaneseq
    %v866 = vshrl.u32 %v865, 7
    %v867 = vsub.s32 %v864, %v866
    %v868 = vrot.slane %v860, %v867
    %v870 = vunpack.c.l.s4 1934713408
    %v871 = vunpack.c.0.s8 %v870
    %v872 = vlaneseq
    %v873 = vshrl.u32 %v872, 7
    %v874 = vsub.s32 %v871, %v873
    %v875 = vrot.slane %v861, %v874
    %v876 = vcombine.low %v820, %v852
    %v877 = vcombine.high %v820, %v852
    %v878 = vcombine.low %v827, %v859
    %v879 = vcombine.high %v827, %v859
    %v880 = vcombine.low %v836, %v868
    %v881 = vcombine.high %v836, %v868
    %v882 = vcombine.low %v843, %v875
    %v883 = vcombine.high %v843, %v875
    %888 = vrot.lane.b32.xlu0 %v278, 120
    %v889 = vpop.permute.xlu0 %888
    %890 = vrot.lane.b32.xlu0 %v283, 120
    %v891 = vpop.permute.xlu0 %890
    %892 = vrot.lane.b32.xlu0 %v288, 120
    %v893 = vpop.permute.xlu0 %892
    %894 = vrot.lane.b32.xlu0 %v293, 120
    %v895 = vpop.permute.xlu0 %894
    %900 = vrot.lane.b32.xlu0 %v278, 112
    %v901 = vpop.permute.xlu0 %900
    %902 = vrot.lane.b32.xlu0 %v283, 112
    %v903 = vpop.permute.xlu0 %902
    %904 = vrot.lane.b32.xlu0 %v288, 112
    %v905 = vpop.permute.xlu0 %904
    %906 = vrot.lane.b32.xlu0 %v293, 112
    %v907 = vpop.permute.xlu0 %906
    %912 = vrot.lane.b32.xlu0 %v278, 104
    %v913 = vpop.permute.xlu0 %912
    %914 = vrot.lane.b32.xlu0 %v283, 104
    %v915 = vpop.permute.xlu0 %914
    %916 = vrot.lane.b32.xlu0 %v288, 104
    %v917 = vpop.permute.xlu0 %916
    %918 = vrot.lane.b32.xlu0 %v293, 104
    %v919 = vpop.permute.xlu0 %918
    %924 = vrot.lane.b32.xlu0 %v278, 96
    %v925 = vpop.permute.xlu0 %924
    %926 = vrot.lane.b32.xlu0 %v283, 96
    %v927 = vpop.permute.xlu0 %926
    %928 = vrot.lane.b32.xlu0 %v288, 96
    %v929 = vpop.permute.xlu0 %928
    %930 = vrot.lane.b32.xlu0 %v293, 96
    %v931 = vpop.permute.xlu0 %930
    %936 = vrot.lane.b32.xlu0 %v278, 88
    %v937 = vpop.permute.xlu0 %936
    %938 = vrot.lane.b32.xlu0 %v283, 88
    %v939 = vpop.permute.xlu0 %938
    %940 = vrot.lane.b32.xlu0 %v288, 88
    %v941 = vpop.permute.xlu0 %940
    %942 = vrot.lane.b32.xlu0 %v293, 88
    %v943 = vpop.permute.xlu0 %942
    %948 = vrot.lane.b32.xlu0 %v278, 80
    %v949 = vpop.permute.xlu0 %948
    %950 = vrot.lane.b32.xlu0 %v283, 80
    %v951 = vpop.permute.xlu0 %950
    %952 = vrot.lane.b32.xlu0 %v288, 80
    %v953 = vpop.permute.xlu0 %952
    %954 = vrot.lane.b32.xlu0 %v293, 80
    %v955 = vpop.permute.xlu0 %954
    %960 = vrot.lane.b32.xlu0 %v278, 72
    %v961 = vpop.permute.xlu0 %960
    %962 = vrot.lane.b32.xlu0 %v283, 72
    %v963 = vpop.permute.xlu0 %962
    %964 = vrot.lane.b32.xlu0 %v288, 72
    %v965 = vpop.permute.xlu0 %964
    %966 = vrot.lane.b32.xlu0 %v293, 72
    %v967 = vpop.permute.xlu0 %966
    %v972 = vcombine.low %v278, %v901
    %v973 = vcombine.high %v278, %v901
    %v975 = vunpack.c.l.s4 1983009808
    %v976 = vunpack.c.0.s8 %v975
    %v977 = vlaneseq
    %v978 = vshrl.u32 %v977, 7
    %v979 = vsub.s32 %v976, %v978
    %v980 = vrot.slane %v972, %v979
    %v982 = vunpack.c.l.s4 1983009808
    %v983 = vunpack.c.0.s8 %v982
    %v984 = vlaneseq
    %v985 = vshrl.u32 %v984, 7
    %v986 = vsub.s32 %v983, %v985
    %v987 = vrot.slane %v973, %v986
    %v988 = vcombine.low %v889, %v913
    %v989 = vcombine.high %v889, %v913
    %v991 = vunpack.c.l.s4 1983009808
    %v992 = vunpack.c.0.s8 %v991
    %v993 = vlaneseq
    %v994 = vshrl.u32 %v993, 7
    %v995 = vsub.s32 %v992, %v994
    %v996 = vrot.slane %v988, %v995
    %v998 = vunpack.c.l.s4 1983009808
    %v999 = vunpack.c.0.s8 %v998
    %v1000 = vlaneseq
    %v1001 = vshrl.u32 %v1000, 7
    %v1002 = vsub.s32 %v999, %v1001
    %v1003 = vrot.slane %v989, %v1002
    %v1004 = vcombine.low %v925, %v949
    %v1005 = vcombine.high %v925, %v949
    %v1007 = vunpack.c.l.s4 1983009808
    %v1008 = vunpack.c.0.s8 %v1007
    %v1009 = vlaneseq
    %v1010 = vshrl.u32 %v1009, 7
    %v1011 = vsub.s32 %v1008, %v1010
    %v1012 = vrot.slane %v1004, %v1011
    %v1014 = vunpack.c.l.s4 1983009808
    %v1015 = vunpack.c.0.s8 %v1014
    %v1016 = vlaneseq
    %v1017 = vshrl.u32 %v1016, 7
    %v1018 = vsub.s32 %v1015, %v1017
    %v1019 = vrot.slane %v1005, %v1018
    %v1020 = vcombine.low %v937, %v961
    %v1021 = vcombine.high %v937, %v961
    %v1023 = vunpack.c.l.s4 1983009808
    %v1024 = vunpack.c.0.s8 %v1023
    %v1025 = vlaneseq
    %v1026 = vshrl.u32 %v1025, 7
    %v1027 = vsub.s32 %v1024, %v1026
    %v1028 = vrot.slane %v1020, %v1027
    %v1030 = vunpack.c.l.s4 1983009808
    %v1031 = vunpack.c.0.s8 %v1030
    %v1032 = vlaneseq
    %v1033 = vshrl.u32 %v1032, 7
    %v1034 = vsub.s32 %v1031, %v1033
    %v1035 = vrot.slane %v1021, %v1034
    %v1036 = vcombine.low %v980, %v996
    %v1037 = vcombine.high %v980, %v996
    %v1039 = vunpack.c.l.s4 1934713408
    %v1040 = vunpack.c.0.s8 %v1039
    %v1041 = vlaneseq
    %v1042 = vshrl.u32 %v1041, 7
    %v1043 = vsub.s32 %v1040, %v1042
    %v1044 = vrot.slane %v1036, %v1043
    %v1046 = vunpack.c.l.s4 1934713408
    %v1047 = vunpack.c.0.s8 %v1046
    %v1048 = vlaneseq
    %v1049 = vshrl.u32 %v1048, 7
    %v1050 = vsub.s32 %v1047, %v1049
    %v1051 = vrot.slane %v1037, %v1050
    %v1052 = vcombine.low %v987, %v1003
    %v1053 = vcombine.high %v987, %v1003
    %v1055 = vunpack.c.l.s4 1934713408
    %v1056 = vunpack.c.0.s8 %v1055
    %v1057 = vlaneseq
    %v1058 = vshrl.u32 %v1057, 7
    %v1059 = vsub.s32 %v1056, %v1058
    %v1060 = vrot.slane %v1052, %v1059
    %v1062 = vunpack.c.l.s4 1934713408
    %v1063 = vunpack.c.0.s8 %v1062
    %v1064 = vlaneseq
    %v1065 = vshrl.u32 %v1064, 7
    %v1066 = vsub.s32 %v1063, %v1065
    %v1067 = vrot.slane %v1053, %v1066
    %v1068 = vcombine.low %v1012, %v1028
    %v1069 = vcombine.high %v1012, %v1028
    %v1071 = vunpack.c.l.s4 1934713408
    %v1072 = vunpack.c.0.s8 %v1071
    %v1073 = vlaneseq
    %v1074 = vshrl.u32 %v1073, 7
    %v1075 = vsub.s32 %v1072, %v1074
    %v1076 = vrot.slane %v1068, %v1075
    %v1078 = vunpack.c.l.s4 1934713408
    %v1079 = vunpack.c.0.s8 %v1078
    %v1080 = vlaneseq
    %v1081 = vshrl.u32 %v1080, 7
    %v1082 = vsub.s32 %v1079, %v1081
    %v1083 = vrot.slane %v1069, %v1082
    %v1084 = vcombine.low %v1019, %v1035
    %v1085 = vcombine.high %v1019, %v1035
    %v1087 = vunpack.c.l.s4 1934713408
    %v1088 = vunpack.c.0.s8 %v1087
    %v1089 = vlaneseq
    %v1090 = vshrl.u32 %v1089, 7
    %v1091 = vsub.s32 %v1088, %v1090
    %v1092 = vrot.slane %v1084, %v1091
    %v1094 = vunpack.c.l.s4 1934713408
    %v1095 = vunpack.c.0.s8 %v1094
    %v1096 = vlaneseq
    %v1097 = vshrl.u32 %v1096, 7
    %v1098 = vsub.s32 %v1095, %v1097
    %v1099 = vrot.slane %v1085, %v1098
    %v1100 = vcombine.low %v1044, %v1076
    %v1101 = vcombine.high %v1044, %v1076
    %v1102 = vcombine.low %v1051, %v1083
    %v1103 = vcombine.high %v1051, %v1083
    %v1104 = vcombine.low %v1060, %v1092
    %v1105 = vcombine.high %v1060, %v1092
    %v1106 = vcombine.low %v1067, %v1099
    %v1107 = vcombine.high %v1067, %v1099
    %v1108 = vcombine.low %v283, %v903
    %v1109 = vcombine.high %v283, %v903
    %v1111 = vunpack.c.l.s4 1983009808
    %v1112 = vunpack.c.0.s8 %v1111
    %v1113 = vlaneseq
    %v1114 = vshrl.u32 %v1113, 7
    %v1115 = vsub.s32 %v1112, %v1114
    %v1116 = vrot.slane %v1108, %v1115
    %v1118 = vunpack.c.l.s4 1983009808
    %v1119 = vunpack.c.0.s8 %v1118
    %v1120 = vlaneseq
    %v1121 = vshrl.u32 %v1120, 7
    %v1122 = vsub.s32 %v1119, %v1121
    %v1123 = vrot.slane %v1109, %v1122
    %v1124 = vcombine.low %v891, %v915
    %v1125 = vcombine.high %v891, %v915
    %v1127 = vunpack.c.l.s4 1983009808
    %v1128 = vunpack.c.0.s8 %v1127
    %v1129 = vlaneseq
    %v1130 = vshrl.u32 %v1129, 7
    %v1131 = vsub.s32 %v1128, %v1130
    %v1132 = vrot.slane %v1124, %v1131
    %v1134 = vunpack.c.l.s4 1983009808
    %v1135 = vunpack.c.0.s8 %v1134
    %v1136 = vlaneseq
    %v1137 = vshrl.u32 %v1136, 7
    %v1138 = vsub.s32 %v1135, %v1137
    %v1139 = vrot.slane %v1125, %v1138
    %v1140 = vcombine.low %v927, %v951
    %v1141 = vcombine.high %v927, %v951
    %v1143 = vunpack.c.l.s4 1983009808
    %v1144 = vunpack.c.0.s8 %v1143
    %v1145 = vlaneseq
    %v1146 = vshrl.u32 %v1145, 7
    %v1147 = vsub.s32 %v1144, %v1146
    %v1148 = vrot.slane %v1140, %v1147
    %v1150 = vunpack.c.l.s4 1983009808
    %v1151 = vunpack.c.0.s8 %v1150
    %v1152 = vlaneseq
    %v1153 = vshrl.u32 %v1152, 7
    %v1154 = vsub.s32 %v1151, %v1153
    %v1155 = vrot.slane %v1141, %v1154
    %v1156 = vcombine.low %v939, %v963
    %v1157 = vcombine.high %v939, %v963
    %v1159 = vunpack.c.l.s4 1983009808
    %v1160 = vunpack.c.0.s8 %v1159
    %v1161 = vlaneseq
    %v1162 = vshrl.u32 %v1161, 7
    %v1163 = vsub.s32 %v1160, %v1162
    %v1164 = vrot.slane %v1156, %v1163
    %v1166 = vunpack.c.l.s4 1983009808
    %v1167 = vunpack.c.0.s8 %v1166
    %v1168 = vlaneseq
    %v1169 = vshrl.u32 %v1168, 7
    %v1170 = vsub.s32 %v1167, %v1169
    %v1171 = vrot.slane %v1157, %v1170
    %v1172 = vcombine.low %v1116, %v1132
    %v1173 = vcombine.high %v1116, %v1132
    %v1175 = vunpack.c.l.s4 1934713408
    %v1176 = vunpack.c.0.s8 %v1175
    %v1177 = vlaneseq
    %v1178 = vshrl.u32 %v1177, 7
    %v1179 = vsub.s32 %v1176, %v1178
    %v1180 = vrot.slane %v1172, %v1179
    %v1182 = vunpack.c.l.s4 1934713408
    %v1183 = vunpack.c.0.s8 %v1182
    %v1184 = vlaneseq
    %v1185 = vshrl.u32 %v1184, 7
    %v1186 = vsub.s32 %v1183, %v1185
    %v1187 = vrot.slane %v1173, %v1186
    %v1188 = vcombine.low %v1123, %v1139
    %v1189 = vcombine.high %v1123, %v1139
    %v1191 = vunpack.c.l.s4 1934713408
    %v1192 = vunpack.c.0.s8 %v1191
    %v1193 = vlaneseq
    %v1194 = vshrl.u32 %v1193, 7
    %v1195 = vsub.s32 %v1192, %v1194
    %v1196 = vrot.slane %v1188, %v1195
    %v1198 = vunpack.c.l.s4 1934713408
    %v1199 = vunpack.c.0.s8 %v1198
    %v1200 = vlaneseq
    %v1201 = vshrl.u32 %v1200, 7
    %v1202 = vsub.s32 %v1199, %v1201
    %v1203 = vrot.slane %v1189, %v1202
    %v1204 = vcombine.low %v1148, %v1164
    %v1205 = vcombine.high %v1148, %v1164
    %v1207 = vunpack.c.l.s4 1934713408
    %v1208 = vunpack.c.0.s8 %v1207
    %v1209 = vlaneseq
    %v1210 = vshrl.u32 %v1209, 7
    %v1211 = vsub.s32 %v1208, %v1210
    %v1212 = vrot.slane %v1204, %v1211
    %v1214 = vunpack.c.l.s4 1934713408
    %v1215 = vunpack.c.0.s8 %v1214
    %v1216 = vlaneseq
    %v1217 = vshrl.u32 %v1216, 7
    %v1218 = vsub.s32 %v1215, %v1217
    %v1219 = vrot.slane %v1205, %v1218
    %v1220 = vcombine.low %v1155, %v1171
    %v1221 = vcombine.high %v1155, %v1171
    %v1223 = vunpack.c.l.s4 1934713408
    %v1224 = vunpack.c.0.s8 %v1223
    %v1225 = vlaneseq
    %v1226 = vshrl.u32 %v1225, 7
    %v1227 = vsub.s32 %v1224, %v1226
    %v1228 = vrot.slane %v1220, %v1227
    %v1230 = vunpack.c.l.s4 1934713408
    %v1231 = vunpack.c.0.s8 %v1230
    %v1232 = vlaneseq
    %v1233 = vshrl.u32 %v1232, 7
    %v1234 = vsub.s32 %v1231, %v1233
    %v1235 = vrot.slane %v1221, %v1234
    %v1236 = vcombine.low %v1180, %v1212
    %v1237 = vcombine.high %v1180, %v1212
    %v1238 = vcombine.low %v1187, %v1219
    %v1239 = vcombine.high %v1187, %v1219
    %v1240 = vcombine.low %v1196, %v1228
    %v1241 = vcombine.high %v1196, %v1228
    %v1242 = vcombine.low %v1203, %v1235
    %v1243 = vcombine.high %v1203, %v1235
    %v1244 = vcombine.low %v288, %v905
    %v1245 = vcombine.high %v288, %v905
    %v1247 = vunpack.c.l.s4 1983009808
    %v1248 = vunpack.c.0.s8 %v1247
    %v1249 = vlaneseq
    %v1250 = vshrl.u32 %v1249, 7
    %v1251 = vsub.s32 %v1248, %v1250
    %v1252 = vrot.slane %v1244, %v1251
    %v1254 = vunpack.c.l.s4 1983009808
    %v1255 = vunpack.c.0.s8 %v1254
    %v1256 = vlaneseq
    %v1257 = vshrl.u32 %v1256, 7
    %v1258 = vsub.s32 %v1255, %v1257
    %v1259 = vrot.slane %v1245, %v1258
    %v1260 = vcombine.low %v893, %v917
    %v1261 = vcombine.high %v893, %v917
    %v1263 = vunpack.c.l.s4 1983009808
    %v1264 = vunpack.c.0.s8 %v1263
    %v1265 = vlaneseq
    %v1266 = vshrl.u32 %v1265, 7
    %v1267 = vsub.s32 %v1264, %v1266
    %v1268 = vrot.slane %v1260, %v1267
    %v1270 = vunpack.c.l.s4 1983009808
    %v1271 = vunpack.c.0.s8 %v1270
    %v1272 = vlaneseq
    %v1273 = vshrl.u32 %v1272, 7
    %v1274 = vsub.s32 %v1271, %v1273
    %v1275 = vrot.slane %v1261, %v1274
    %v1276 = vcombine.low %v929, %v953
    %v1277 = vcombine.high %v929, %v953
    %v1279 = vunpack.c.l.s4 1983009808
    %v1280 = vunpack.c.0.s8 %v1279
    %v1281 = vlaneseq
    %v1282 = vshrl.u32 %v1281, 7
    %v1283 = vsub.s32 %v1280, %v1282
    %v1284 = vrot.slane %v1276, %v1283
    %v1286 = vunpack.c.l.s4 1983009808
    %v1287 = vunpack.c.0.s8 %v1286
    %v1288 = vlaneseq
    %v1289 = vshrl.u32 %v1288, 7
    %v1290 = vsub.s32 %v1287, %v1289
    %v1291 = vrot.slane %v1277, %v1290
    %v1292 = vcombine.low %v941, %v965
    %v1293 = vcombine.high %v941, %v965
    %v1295 = vunpack.c.l.s4 1983009808
    %v1296 = vunpack.c.0.s8 %v1295
    %v1297 = vlaneseq
    %v1298 = vshrl.u32 %v1297, 7
    %v1299 = vsub.s32 %v1296, %v1298
    %v1300 = vrot.slane %v1292, %v1299
    %v1302 = vunpack.c.l.s4 1983009808
    %v1303 = vunpack.c.0.s8 %v1302
    %v1304 = vlaneseq
    %v1305 = vshrl.u32 %v1304, 7
    %v1306 = vsub.s32 %v1303, %v1305
    %v1307 = vrot.slane %v1293, %v1306
    %v1308 = vcombine.low %v1252, %v1268
    %v1309 = vcombine.high %v1252, %v1268
    %v1311 = vunpack.c.l.s4 1934713408
    %v1312 = vunpack.c.0.s8 %v1311
    %v1313 = vlaneseq
    %v1314 = vshrl.u32 %v1313, 7
    %v1315 = vsub.s32 %v1312, %v1314
    %v1316 = vrot.slane %v1308, %v1315
    %v1318 = vunpack.c.l.s4 1934713408
    %v1319 = vunpack.c.0.s8 %v1318
    %v1320 = vlaneseq
    %v1321 = vshrl.u32 %v1320, 7
    %v1322 = vsub.s32 %v1319, %v1321
    %v1323 = vrot.slane %v1309, %v1322
    %v1324 = vcombine.low %v1259, %v1275
    %v1325 = vcombine.high %v1259, %v1275
    %v1327 = vunpack.c.l.s4 1934713408
    %v1328 = vunpack.c.0.s8 %v1327
    %v1329 = vlaneseq
    %v1330 = vshrl.u32 %v1329, 7
    %v1331 = vsub.s32 %v1328, %v1330
    %v1332 = vrot.slane %v1324, %v1331
    %v1334 = vunpack.c.l.s4 1934713408
    %v1335 = vunpack.c.0.s8 %v1334
    %v1336 = vlaneseq
    %v1337 = vshrl.u32 %v1336, 7
    %v1338 = vsub.s32 %v1335, %v1337
    %v1339 = vrot.slane %v1325, %v1338
    %v1340 = vcombine.low %v1284, %v1300
    %v1341 = vcombine.high %v1284, %v1300
    %v1343 = vunpack.c.l.s4 1934713408
    %v1344 = vunpack.c.0.s8 %v1343
    %v1345 = vlaneseq
    %v1346 = vshrl.u32 %v1345, 7
    %v1347 = vsub.s32 %v1344, %v1346
    %v1348 = vrot.slane %v1340, %v1347
    %v1350 = vunpack.c.l.s4 1934713408
    %v1351 = vunpack.c.0.s8 %v1350
    %v1352 = vlaneseq
    %v1353 = vshrl.u32 %v1352, 7
    %v1354 = vsub.s32 %v1351, %v1353
    %v1355 = vrot.slane %v1341, %v1354
    %v1356 = vcombine.low %v1291, %v1307
    %v1357 = vcombine.high %v1291, %v1307
    %v1359 = vunpack.c.l.s4 1934713408
    %v1360 = vunpack.c.0.s8 %v1359
    %v1361 = vlaneseq
    %v1362 = vshrl.u32 %v1361, 7
    %v1363 = vsub.s32 %v1360, %v1362
    %v1364 = vrot.slane %v1356, %v1363
    %v1366 = vunpack.c.l.s4 1934713408
    %v1367 = vunpack.c.0.s8 %v1366
    %v1368 = vlaneseq
    %v1369 = vshrl.u32 %v1368, 7
    %v1370 = vsub.s32 %v1367, %v1369
    %v1371 = vrot.slane %v1357, %v1370
    %v1372 = vcombine.low %v1316, %v1348
    %v1373 = vcombine.high %v1316, %v1348
    %v1374 = vcombine.low %v1323, %v1355
    %v1375 = vcombine.high %v1323, %v1355
    %v1376 = vcombine.low %v1332, %v1364
    %v1377 = vcombine.high %v1332, %v1364
    %v1378 = vcombine.low %v1339, %v1371
    %v1379 = vcombine.high %v1339, %v1371
    %v1380 = vcombine.low %v293, %v907
    %v1381 = vcombine.high %v293, %v907
    %v1383 = vunpack.c.l.s4 1983009808
    %v1384 = vunpack.c.0.s8 %v1383
    %v1385 = vlaneseq
    %v1386 = vshrl.u32 %v1385, 7
    %v1387 = vsub.s32 %v1384, %v1386
    %v1388 = vrot.slane %v1380, %v1387
    %v1390 = vunpack.c.l.s4 1983009808
    %v1391 = vunpack.c.0.s8 %v1390
    %v1392 = vlaneseq
    %v1393 = vshrl.u32 %v1392, 7
    %v1394 = vsub.s32 %v1391, %v1393
    %v1395 = vrot.slane %v1381, %v1394
    %v1396 = vcombine.low %v895, %v919
    %v1397 = vcombine.high %v895, %v919
    %v1399 = vunpack.c.l.s4 1983009808
    %v1400 = vunpack.c.0.s8 %v1399
    %v1401 = vlaneseq
    %v1402 = vshrl.u32 %v1401, 7
    %v1403 = vsub.s32 %v1400, %v1402
    %v1404 = vrot.slane %v1396, %v1403
    %v1406 = vunpack.c.l.s4 1983009808
    %v1407 = vunpack.c.0.s8 %v1406
    %v1408 = vlaneseq
    %v1409 = vshrl.u32 %v1408, 7
    %v1410 = vsub.s32 %v1407, %v1409
    %v1411 = vrot.slane %v1397, %v1410
    %v1412 = vcombine.low %v931, %v955
    %v1413 = vcombine.high %v931, %v955
    %v1415 = vunpack.c.l.s4 1983009808
    %v1416 = vunpack.c.0.s8 %v1415
    %v1417 = vlaneseq
    %v1418 = vshrl.u32 %v1417, 7
    %v1419 = vsub.s32 %v1416, %v1418
    %v1420 = vrot.slane %v1412, %v1419
    %v1422 = vunpack.c.l.s4 1983009808
    %v1423 = vunpack.c.0.s8 %v1422
    %v1424 = vlaneseq
    %v1425 = vshrl.u32 %v1424, 7
    %v1426 = vsub.s32 %v1423, %v1425
    %v1427 = vrot.slane %v1413, %v1426
    %v1428 = vcombine.low %v943, %v967
    %v1429 = vcombine.high %v943, %v967
    %v1431 = vunpack.c.l.s4 1983009808
    %v1432 = vunpack.c.0.s8 %v1431
    %v1433 = vlaneseq
    %v1434 = vshrl.u32 %v1433, 7
    %v1435 = vsub.s32 %v1432, %v1434
    %v1436 = vrot.slane %v1428, %v1435
    %v1438 = vunpack.c.l.s4 1983009808
    %v1439 = vunpack.c.0.s8 %v1438
    %v1440 = vlaneseq
    %v1441 = vshrl.u32 %v1440, 7
    %v1442 = vsub.s32 %v1439, %v1441
    %v1443 = vrot.slane %v1429, %v1442
    %v1444 = vcombine.low %v1388, %v1404
    %v1445 = vcombine.high %v1388, %v1404
    %v1447 = vunpack.c.l.s4 1934713408
    %v1448 = vunpack.c.0.s8 %v1447
    %v1449 = vlaneseq
    %v1450 = vshrl.u32 %v1449, 7
    %v1451 = vsub.s32 %v1448, %v1450
    %v1452 = vrot.slane %v1444, %v1451
    %v1454 = vunpack.c.l.s4 1934713408
    %v1455 = vunpack.c.0.s8 %v1454
    %v1456 = vlaneseq
    %v1457 = vshrl.u32 %v1456, 7
    %v1458 = vsub.s32 %v1455, %v1457
    %v1459 = vrot.slane %v1445, %v1458
    %v1460 = vcombine.low %v1395, %v1411
    %v1461 = vcombine.high %v1395, %v1411
    %v1463 = vunpack.c.l.s4 1934713408
    %v1464 = vunpack.c.0.s8 %v1463
    %v1465 = vlaneseq
    %v1466 = vshrl.u32 %v1465, 7
    %v1467 = vsub.s32 %v1464, %v1466
    %v1468 = vrot.slane %v1460, %v1467
    %v1470 = vunpack.c.l.s4 1934713408
    %v1471 = vunpack.c.0.s8 %v1470
    %v1472 = vlaneseq
    %v1473 = vshrl.u32 %v1472, 7
    %v1474 = vsub.s32 %v1471, %v1473
    %v1475 = vrot.slane %v1461, %v1474
    %v1476 = vcombine.low %v1420, %v1436
    %v1477 = vcombine.high %v1420, %v1436
    %v1479 = vunpack.c.l.s4 1934713408
    %v1480 = vunpack.c.0.s8 %v1479
    %v1481 = vlaneseq
    %v1482 = vshrl.u32 %v1481, 7
    %v1483 = vsub.s32 %v1480, %v1482
    %v1484 = vrot.slane %v1476, %v1483
    %v1486 = vunpack.c.l.s4 1934713408
    %v1487 = vunpack.c.0.s8 %v1486
    %v1488 = vlaneseq
    %v1489 = vshrl.u32 %v1488, 7
    %v1490 = vsub.s32 %v1487, %v1489
    %v1491 = vrot.slane %v1477, %v1490
    %v1492 = vcombine.low %v1427, %v1443
    %v1493 = vcombine.high %v1427, %v1443
    %v1495 = vunpack.c.l.s4 1934713408
    %v1496 = vunpack.c.0.s8 %v1495
    %v1497 = vlaneseq
    %v1498 = vshrl.u32 %v1497, 7
    %v1499 = vsub.s32 %v1496, %v1498
    %v1500 = vrot.slane %v1492, %v1499
    %v1502 = vunpack.c.l.s4 1934713408
    %v1503 = vunpack.c.0.s8 %v1502
    %v1504 = vlaneseq
    %v1505 = vshrl.u32 %v1504, 7
    %v1506 = vsub.s32 %v1503, %v1505
    %v1507 = vrot.slane %v1493, %v1506
    %v1508 = vcombine.low %v1452, %v1484
    %v1509 = vcombine.high %v1452, %v1484
    %v1510 = vcombine.low %v1459, %v1491
    %v1511 = vcombine.high %v1459, %v1491
    %v1512 = vcombine.low %v1468, %v1500
    %v1513 = vcombine.high %v1468, %v1500
    %v1514 = vcombine.low %v1475, %v1507
    %v1515 = vcombine.high %v1475, %v1507
    %v1516 = vcombine.low %v1100, %v1102
    %v1517 = vcombine.high %v1100, %v1102
    %v1519 = vunpack.c.l.s4 1983009808
    %v1520 = vunpack.c.0.s8 %v1519
    %v1521 = vlaneseq
    %v1522 = vshrl.u32 %v1521, 7
    %v1523 = vsub.s32 %v1520, %v1522
    %v1524 = vrot.slane %v1516, %v1523
    %v1526 = vunpack.c.l.s4 1983009808
    %v1527 = vunpack.c.0.s8 %v1526
    %v1528 = vlaneseq
    %v1529 = vshrl.u32 %v1528, 7
    %v1530 = vsub.s32 %v1527, %v1529
    %v1531 = vrot.slane %v1517, %v1530
    %v1532 = vcombine.low %v1101, %v1103
    %v1533 = vcombine.high %v1101, %v1103
    %v1535 = vunpack.c.l.s4 1983009808
    %v1536 = vunpack.c.0.s8 %v1535
    %v1537 = vlaneseq
    %v1538 = vshrl.u32 %v1537, 7
    %v1539 = vsub.s32 %v1536, %v1538
    %v1540 = vrot.slane %v1532, %v1539
    %v1542 = vunpack.c.l.s4 1983009808
    %v1543 = vunpack.c.0.s8 %v1542
    %v1544 = vlaneseq
    %v1545 = vshrl.u32 %v1544, 7
    %v1546 = vsub.s32 %v1543, %v1545
    %v1547 = vrot.slane %v1533, %v1546
    %v1548 = vcombine.low %v1104, %v1106
    %v1549 = vcombine.high %v1104, %v1106
    %v1551 = vunpack.c.l.s4 1983009808
    %v1552 = vunpack.c.0.s8 %v1551
    %v1553 = vlaneseq
    %v1554 = vshrl.u32 %v1553, 7
    %v1555 = vsub.s32 %v1552, %v1554
    %v1556 = vrot.slane %v1548, %v1555
    %v1558 = vunpack.c.l.s4 1983009808
    %v1559 = vunpack.c.0.s8 %v1558
    %v1560 = vlaneseq
    %v1561 = vshrl.u32 %v1560, 7
    %v1562 = vsub.s32 %v1559, %v1561
    %v1563 = vrot.slane %v1549, %v1562
    %v1564 = vcombine.low %v1105, %v1107
    %v1565 = vcombine.high %v1105, %v1107
    %v1567 = vunpack.c.l.s4 1983009808
    %v1568 = vunpack.c.0.s8 %v1567
    %v1569 = vlaneseq
    %v1570 = vshrl.u32 %v1569, 7
    %v1571 = vsub.s32 %v1568, %v1570
    %v1572 = vrot.slane %v1564, %v1571
    %v1574 = vunpack.c.l.s4 1983009808
    %v1575 = vunpack.c.0.s8 %v1574
    %v1576 = vlaneseq
    %v1577 = vshrl.u32 %v1576, 7
    %v1578 = vsub.s32 %v1575, %v1577
    %v1579 = vrot.slane %v1565, %v1578
    %v1580 = vcombine.low %v1524, %v1540
    %v1581 = vcombine.high %v1524, %v1540
    %v1583 = vunpack.c.l.s4 1934713408
    %v1584 = vunpack.c.0.s8 %v1583
    %v1585 = vlaneseq
    %v1586 = vshrl.u32 %v1585, 7
    %v1587 = vsub.s32 %v1584, %v1586
    %v1588 = vrot.slane %v1580, %v1587
    %v1590 = vunpack.c.l.s4 1934713408
    %v1591 = vunpack.c.0.s8 %v1590
    %v1592 = vlaneseq
    %v1593 = vshrl.u32 %v1592, 7
    %v1594 = vsub.s32 %v1591, %v1593
    %v1595 = vrot.slane %v1581, %v1594
    %v1596 = vcombine.low %v1531, %v1547
    %v1597 = vcombine.high %v1531, %v1547
    %v1599 = vunpack.c.l.s4 1934713408
    %v1600 = vunpack.c.0.s8 %v1599
    %v1601 = vlaneseq
    %v1602 = vshrl.u32 %v1601, 7
    %v1603 = vsub.s32 %v1600, %v1602
    %v1604 = vrot.slane %v1596, %v1603
    %v1606 = vunpack.c.l.s4 1934713408
    %v1607 = vunpack.c.0.s8 %v1606
    %v1608 = vlaneseq
    %v1609 = vshrl.u32 %v1608, 7
    %v1610 = vsub.s32 %v1607, %v1609
    %v1611 = vrot.slane %v1597, %v1610
    %v1612 = vcombine.low %v1556, %v1572
    %v1613 = vcombine.high %v1556, %v1572
    %v1615 = vunpack.c.l.s4 1934713408
    %v1616 = vunpack.c.0.s8 %v1615
    %v1617 = vlaneseq
    %v1618 = vshrl.u32 %v1617, 7
    %v1619 = vsub.s32 %v1616, %v1618
    %v1620 = vrot.slane %v1612, %v1619
    %v1622 = vunpack.c.l.s4 1934713408
    %v1623 = vunpack.c.0.s8 %v1622
    %v1624 = vlaneseq
    %v1625 = vshrl.u32 %v1624, 7
    %v1626 = vsub.s32 %v1623, %v1625
    %v1627 = vrot.slane %v1613, %v1626
    %v1628 = vcombine.low %v1563, %v1579
    %v1629 = vcombine.high %v1563, %v1579
    %v1631 = vunpack.c.l.s4 1934713408
    %v1632 = vunpack.c.0.s8 %v1631
    %v1633 = vlaneseq
    %v1634 = vshrl.u32 %v1633, 7
    %v1635 = vsub.s32 %v1632, %v1634
    %v1636 = vrot.slane %v1628, %v1635
    %v1638 = vunpack.c.l.s4 1934713408
    %v1639 = vunpack.c.0.s8 %v1638
    %v1640 = vlaneseq
    %v1641 = vshrl.u32 %v1640, 7
    %v1642 = vsub.s32 %v1639, %v1641
    %v1643 = vrot.slane %v1629, %v1642
    %v1644 = vcombine.low %v1588, %v1620
    %v1645 = vcombine.high %v1588, %v1620
    %v1646 = vcombine.low %v1595, %v1627
    %v1647 = vcombine.high %v1595, %v1627
    %v1648 = vcombine.low %v1604, %v1636
    %v1649 = vcombine.high %v1604, %v1636
    %v1650 = vcombine.low %v1611, %v1643
    %v1651 = vcombine.high %v1611, %v1643
    %v1652 = vcombine.low %v1236, %v1238
    %v1653 = vcombine.high %v1236, %v1238
    %v1655 = vunpack.c.l.s4 1983009808
    %v1656 = vunpack.c.0.s8 %v1655
    %v1657 = vlaneseq
    %v1658 = vshrl.u32 %v1657, 7
    %v1659 = vsub.s32 %v1656, %v1658
    %v1660 = vrot.slane %v1652, %v1659
    %v1662 = vunpack.c.l.s4 1983009808
    %v1663 = vunpack.c.0.s8 %v1662
    %v1664 = vlaneseq
    %v1665 = vshrl.u32 %v1664, 7
    %v1666 = vsub.s32 %v1663, %v1665
    %v1667 = vrot.slane %v1653, %v1666
    %v1668 = vcombine.low %v1237, %v1239
    %v1669 = vcombine.high %v1237, %v1239
    %v1671 = vunpack.c.l.s4 1983009808
    %v1672 = vunpack.c.0.s8 %v1671
    %v1673 = vlaneseq
    %v1674 = vshrl.u32 %v1673, 7
    %v1675 = vsub.s32 %v1672, %v1674
    %v1676 = vrot.slane %v1668, %v1675
    %v1678 = vunpack.c.l.s4 1983009808
    %v1679 = vunpack.c.0.s8 %v1678
    %v1680 = vlaneseq
    %v1681 = vshrl.u32 %v1680, 7
    %v1682 = vsub.s32 %v1679, %v1681
    %v1683 = vrot.slane %v1669, %v1682
    %v1684 = vcombine.low %v1240, %v1242
    %v1685 = vcombine.high %v1240, %v1242
    %v1687 = vunpack.c.l.s4 1983009808
    %v1688 = vunpack.c.0.s8 %v1687
    %v1689 = vlaneseq
    %v1690 = vshrl.u32 %v1689, 7
    %v1691 = vsub.s32 %v1688, %v1690
    %v1692 = vrot.slane %v1684, %v1691
    %v1694 = vunpack.c.l.s4 1983009808
    %v1695 = vunpack.c.0.s8 %v1694
    %v1696 = vlaneseq
    %v1697 = vshrl.u32 %v1696, 7
    %v1698 = vsub.s32 %v1695, %v1697
    %v1699 = vrot.slane %v1685, %v1698
    %v1700 = vcombine.low %v1241, %v1243
    %v1701 = vcombine.high %v1241, %v1243
    %v1703 = vunpack.c.l.s4 1983009808
    %v1704 = vunpack.c.0.s8 %v1703
    %v1705 = vlaneseq
    %v1706 = vshrl.u32 %v1705, 7
    %v1707 = vsub.s32 %v1704, %v1706
    %v1708 = vrot.slane %v1700, %v1707
    %v1710 = vunpack.c.l.s4 1983009808
    %v1711 = vunpack.c.0.s8 %v1710
    %v1712 = vlaneseq
    %v1713 = vshrl.u32 %v1712, 7
    %v1714 = vsub.s32 %v1711, %v1713
    %v1715 = vrot.slane %v1701, %v1714
    %v1716 = vcombine.low %v1660, %v1676
    %v1717 = vcombine.high %v1660, %v1676
    %v1719 = vunpack.c.l.s4 1934713408
    %v1720 = vunpack.c.0.s8 %v1719
    %v1721 = vlaneseq
    %v1722 = vshrl.u32 %v1721, 7
    %v1723 = vsub.s32 %v1720, %v1722
    %v1724 = vrot.slane %v1716, %v1723
    %v1726 = vunpack.c.l.s4 1934713408
    %v1727 = vunpack.c.0.s8 %v1726
    %v1728 = vlaneseq
    %v1729 = vshrl.u32 %v1728, 7
    %v1730 = vsub.s32 %v1727, %v1729
    %v1731 = vrot.slane %v1717, %v1730
    %v1732 = vcombine.low %v1667, %v1683
    %v1733 = vcombine.high %v1667, %v1683
    %v1735 = vunpack.c.l.s4 1934713408
    %v1736 = vunpack.c.0.s8 %v1735
    %v1737 = vlaneseq
    %v1738 = vshrl.u32 %v1737, 7
    %v1739 = vsub.s32 %v1736, %v1738
    %v1740 = vrot.slane %v1732, %v1739
    %v1742 = vunpack.c.l.s4 1934713408
    %v1743 = vunpack.c.0.s8 %v1742
    %v1744 = vlaneseq
    %v1745 = vshrl.u32 %v1744, 7
    %v1746 = vsub.s32 %v1743, %v1745
    %v1747 = vrot.slane %v1733, %v1746
    %v1748 = vcombine.low %v1692, %v1708
    %v1749 = vcombine.high %v1692, %v1708
    %v1751 = vunpack.c.l.s4 1934713408
    %v1752 = vunpack.c.0.s8 %v1751
    %v1753 = vlaneseq
    %v1754 = vshrl.u32 %v1753, 7
    %v1755 = vsub.s32 %v1752, %v1754
    %v1756 = vrot.slane %v1748, %v1755
    %v1758 = vunpack.c.l.s4 1934713408
    %v1759 = vunpack.c.0.s8 %v1758
    %v1760 = vlaneseq
    %v1761 = vshrl.u32 %v1760, 7
    %v1762 = vsub.s32 %v1759, %v1761
    %v1763 = vrot.slane %v1749, %v1762
    %v1764 = vcombine.low %v1699, %v1715
    %v1765 = vcombine.high %v1699, %v1715
    %v1767 = vunpack.c.l.s4 1934713408
    %v1768 = vunpack.c.0.s8 %v1767
    %v1769 = vlaneseq
    %v1770 = vshrl.u32 %v1769, 7
    %v1771 = vsub.s32 %v1768, %v1770
    %v1772 = vrot.slane %v1764, %v1771
    %v1774 = vunpack.c.l.s4 1934713408
    %v1775 = vunpack.c.0.s8 %v1774
    %v1776 = vlaneseq
    %v1777 = vshrl.u32 %v1776, 7
    %v1778 = vsub.s32 %v1775, %v1777
    %v1779 = vrot.slane %v1765, %v1778
    %v1780 = vcombine.low %v1724, %v1756
    %v1781 = vcombine.high %v1724, %v1756
    %v1782 = vcombine.low %v1731, %v1763
    %v1783 = vcombine.high %v1731, %v1763
    %v1784 = vcombine.low %v1740, %v1772
    %v1785 = vcombine.high %v1740, %v1772
    %v1786 = vcombine.low %v1747, %v1779
    %v1787 = vcombine.high %v1747, %v1779
    %v1788 = vcombine.low %v1372, %v1374
    %v1789 = vcombine.high %v1372, %v1374
    %v1791 = vunpack.c.l.s4 1983009808
    %v1792 = vunpack.c.0.s8 %v1791
    %v1793 = vlaneseq
    %v1794 = vshrl.u32 %v1793, 7
    %v1795 = vsub.s32 %v1792, %v1794
    %v1796 = vrot.slane %v1788, %v1795
    %v1798 = vunpack.c.l.s4 1983009808
    %v1799 = vunpack.c.0.s8 %v1798
    %v1800 = vlaneseq
    %v1801 = vshrl.u32 %v1800, 7
    %v1802 = vsub.s32 %v1799, %v1801
    %v1803 = vrot.slane %v1789, %v1802
    %v1804 = vcombine.low %v1373, %v1375
    %v1805 = vcombine.high %v1373, %v1375
    %v1807 = vunpack.c.l.s4 1983009808
    %v1808 = vunpack.c.0.s8 %v1807
    %v1809 = vlaneseq
    %v1810 = vshrl.u32 %v1809, 7
    %v1811 = vsub.s32 %v1808, %v1810
    %v1812 = vrot.slane %v1804, %v1811
    %v1814 = vunpack.c.l.s4 1983009808
    %v1815 = vunpack.c.0.s8 %v1814
    %v1816 = vlaneseq
    %v1817 = vshrl.u32 %v1816, 7
    %v1818 = vsub.s32 %v1815, %v1817
    %v1819 = vrot.slane %v1805, %v1818
    %v1820 = vcombine.low %v1376, %v1378
    %v1821 = vcombine.high %v1376, %v1378
    %v1823 = vunpack.c.l.s4 1983009808
    %v1824 = vunpack.c.0.s8 %v1823
    %v1825 = vlaneseq
    %v1826 = vshrl.u32 %v1825, 7
    %v1827 = vsub.s32 %v1824, %v1826
    %v1828 = vrot.slane %v1820, %v1827
    %v1830 = vunpack.c.l.s4 1983009808
    %v1831 = vunpack.c.0.s8 %v1830
    %v1832 = vlaneseq
    %v1833 = vshrl.u32 %v1832, 7
    %v1834 = vsub.s32 %v1831, %v1833
    %v1835 = vrot.slane %v1821, %v1834
    %v1836 = vcombine.low %v1377, %v1379
    %v1837 = vcombine.high %v1377, %v1379
    %v1839 = vunpack.c.l.s4 1983009808
    %v1840 = vunpack.c.0.s8 %v1839
    %v1841 = vlaneseq
    %v1842 = vshrl.u32 %v1841, 7
    %v1843 = vsub.s32 %v1840, %v1842
    %v1844 = vrot.slane %v1836, %v1843
    %v1846 = vunpack.c.l.s4 1983009808
    %v1847 = vunpack.c.0.s8 %v1846
    %v1848 = vlaneseq
    %v1849 = vshrl.u32 %v1848, 7
    %v1850 = vsub.s32 %v1847, %v1849
    %v1851 = vrot.slane %v1837, %v1850
    %v1852 = vcombine.low %v1796, %v1812
    %v1853 = vcombine.high %v1796, %v1812
    %v1855 = vunpack.c.l.s4 1934713408
    %v1856 = vunpack.c.0.s8 %v1855
    %v1857 = vlaneseq
    %v1858 = vshrl.u32 %v1857, 7
    %v1859 = vsub.s32 %v1856, %v1858
    %v1860 = vrot.slane %v1852, %v1859
    %v1862 = vunpack.c.l.s4 1934713408
    %v1863 = vunpack.c.0.s8 %v1862
    %v1864 = vlaneseq
    %v1865 = vshrl.u32 %v1864, 7
    %v1866 = vsub.s32 %v1863, %v1865
    %v1867 = vrot.slane %v1853, %v1866
    %v1868 = vcombine.low %v1803, %v1819
    %v1869 = vcombine.high %v1803, %v1819
    %v1871 = vunpack.c.l.s4 1934713408
    %v1872 = vunpack.c.0.s8 %v1871
    %v1873 = vlaneseq
    %v1874 = vshrl.u32 %v1873, 7
    %v1875 = vsub.s32 %v1872, %v1874
    %v1876 = vrot.slane %v1868, %v1875
    %v1878 = vunpack.c.l.s4 1934713408
    %v1879 = vunpack.c.0.s8 %v1878
    %v1880 = vlaneseq
    %v1881 = vshrl.u32 %v1880, 7
    %v1882 = vsub.s32 %v1879, %v1881
    %v1883 = vrot.slane %v1869, %v1882
    %v1884 = vcombine.low %v1828, %v1844
    %v1885 = vcombine.high %v1828, %v1844
    %v1887 = vunpack.c.l.s4 1934713408
    %v1888 = vunpack.c.0.s8 %v1887
    %v1889 = vlaneseq
    %v1890 = vshrl.u32 %v1889, 7
    %v1891 = vsub.s32 %v1888, %v1890
    %v1892 = vrot.slane %v1884, %v1891
    %v1894 = vunpack.c.l.s4 1934713408
    %v1895 = vunpack.c.0.s8 %v1894
    %v1896 = vlaneseq
    %v1897 = vshrl.u32 %v1896, 7
    %v1898 = vsub.s32 %v1895, %v1897
    %v1899 = vrot.slane %v1885, %v1898
    %v1900 = vcombine.low %v1835, %v1851
    %v1901 = vcombine.high %v1835, %v1851
    %v1903 = vunpack.c.l.s4 1934713408
    %v1904 = vunpack.c.0.s8 %v1903
    %v1905 = vlaneseq
    %v1906 = vshrl.u32 %v1905, 7
    %v1907 = vsub.s32 %v1904, %v1906
    %v1908 = vrot.slane %v1900, %v1907
    %v1910 = vunpack.c.l.s4 1934713408
    %v1911 = vunpack.c.0.s8 %v1910
    %v1912 = vlaneseq
    %v1913 = vshrl.u32 %v1912, 7
    %v1914 = vsub.s32 %v1911, %v1913
    %v1915 = vrot.slane %v1901, %v1914
    %v1916 = vcombine.low %v1860, %v1892
    %v1917 = vcombine.high %v1860, %v1892
    %v1918 = vcombine.low %v1867, %v1899
    %v1919 = vcombine.high %v1867, %v1899
    %v1920 = vcombine.low %v1876, %v1908
    %v1921 = vcombine.high %v1876, %v1908
    %v1922 = vcombine.low %v1883, %v1915
    %v1923 = vcombine.high %v1883, %v1915
    %v1924 = vcombine.low %v1508, %v1510
    %v1925 = vcombine.high %v1508, %v1510
    %v1927 = vunpack.c.l.s4 1983009808
    %v1928 = vunpack.c.0.s8 %v1927
    %v1929 = vlaneseq
    %v1930 = vshrl.u32 %v1929, 7
    %v1931 = vsub.s32 %v1928, %v1930
    %v1932 = vrot.slane %v1924, %v1931
    %v1934 = vunpack.c.l.s4 1983009808
    %v1935 = vunpack.c.0.s8 %v1934
    %v1936 = vlaneseq
    %v1937 = vshrl.u32 %v1936, 7
    %v1938 = vsub.s32 %v1935, %v1937
    %v1939 = vrot.slane %v1925, %v1938
    %v1940 = vcombine.low %v1509, %v1511
    %v1941 = vcombine.high %v1509, %v1511
    %v1943 = vunpack.c.l.s4 1983009808
    %v1944 = vunpack.c.0.s8 %v1943
    %v1945 = vlaneseq
    %v1946 = vshrl.u32 %v1945, 7
    %v1947 = vsub.s32 %v1944, %v1946
    %v1948 = vrot.slane %v1940, %v1947
    %v1950 = vunpack.c.l.s4 1983009808
    %v1951 = vunpack.c.0.s8 %v1950
    %v1952 = vlaneseq
    %v1953 = vshrl.u32 %v1952, 7
    %v1954 = vsub.s32 %v1951, %v1953
    %v1955 = vrot.slane %v1941, %v1954
    %v1956 = vcombine.low %v1512, %v1514
    %v1957 = vcombine.high %v1512, %v1514
    %v1959 = vunpack.c.l.s4 1983009808
    %v1960 = vunpack.c.0.s8 %v1959
    %v1961 = vlaneseq
    %v1962 = vshrl.u32 %v1961, 7
    %v1963 = vsub.s32 %v1960, %v1962
    %v1964 = vrot.slane %v1956, %v1963
    %v1966 = vunpack.c.l.s4 1983009808
    %v1967 = vunpack.c.0.s8 %v1966
    %v1968 = vlaneseq
    %v1969 = vshrl.u32 %v1968, 7
    %v1970 = vsub.s32 %v1967, %v1969
    %v1971 = vrot.slane %v1957, %v1970
    %v1972 = vcombine.low %v1513, %v1515
    %v1973 = vcombine.high %v1513, %v1515
    %v1975 = vunpack.c.l.s4 1983009808
    %v1976 = vunpack.c.0.s8 %v1975
    %v1977 = vlaneseq
    %v1978 = vshrl.u32 %v1977, 7
    %v1979 = vsub.s32 %v1976, %v1978
    %v1980 = vrot.slane %v1972, %v1979
    %v1982 = vunpack.c.l.s4 1983009808
    %v1983 = vunpack.c.0.s8 %v1982
    %v1984 = vlaneseq
    %v1985 = vshrl.u32 %v1984, 7
    %v1986 = vsub.s32 %v1983, %v1985
    %v1987 = vrot.slane %v1973, %v1986
    %v1988 = vcombine.low %v1932, %v1948
    %v1989 = vcombine.high %v1932, %v1948
    %v1991 = vunpack.c.l.s4 1934713408
    %v1992 = vunpack.c.0.s8 %v1991
    %v1993 = vlaneseq
    %v1994 = vshrl.u32 %v1993, 7
    %v1995 = vsub.s32 %v1992, %v1994
    %v1996 = vrot.slane %v1988, %v1995
    %v1998 = vunpack.c.l.s4 1934713408
    %v1999 = vunpack.c.0.s8 %v1998
    %v2000 = vlaneseq
    %v2001 = vshrl.u32 %v2000, 7
    %v2002 = vsub.s32 %v1999, %v2001
    %v2003 = vrot.slane %v1989, %v2002
    %v2004 = vcombine.low %v1939, %v1955
    %v2005 = vcombine.high %v1939, %v1955
    %v2007 = vunpack.c.l.s4 1934713408
    %v2008 = vunpack.c.0.s8 %v2007
    %v2009 = vlaneseq
    %v2010 = vshrl.u32 %v2009, 7
    %v2011 = vsub.s32 %v2008, %v2010
    %v2012 = vrot.slane %v2004, %v2011
    %v2014 = vunpack.c.l.s4 1934713408
    %v2015 = vunpack.c.0.s8 %v2014
    %v2016 = vlaneseq
    %v2017 = vshrl.u32 %v2016, 7
    %v2018 = vsub.s32 %v2015, %v2017
    %v2019 = vrot.slane %v2005, %v2018
    %v2020 = vcombine.low %v1964, %v1980
    %v2021 = vcombine.high %v1964, %v1980
    %v2023 = vunpack.c.l.s4 1934713408
    %v2024 = vunpack.c.0.s8 %v2023
    %v2025 = vlaneseq
    %v2026 = vshrl.u32 %v2025, 7
    %v2027 = vsub.s32 %v2024, %v2026
    %v2028 = vrot.slane %v2020, %v2027
    %v2030 = vunpack.c.l.s4 1934713408
    %v2031 = vunpack.c.0.s8 %v2030
    %v2032 = vlaneseq
    %v2033 = vshrl.u32 %v2032, 7
    %v2034 = vsub.s32 %v2031, %v2033
    %v2035 = vrot.slane %v2021, %v2034
    %v2036 = vcombine.low %v1971, %v1987
    %v2037 = vcombine.high %v1971, %v1987
    %v2039 = vunpack.c.l.s4 1934713408
    %v2040 = vunpack.c.0.s8 %v2039
    %v2041 = vlaneseq
    %v2042 = vshrl.u32 %v2041, 7
    %v2043 = vsub.s32 %v2040, %v2042
    %v2044 = vrot.slane %v2036, %v2043
    %v2046 = vunpack.c.l.s4 1934713408
    %v2047 = vunpack.c.0.s8 %v2046
    %v2048 = vlaneseq
    %v2049 = vshrl.u32 %v2048, 7
    %v2050 = vsub.s32 %v2047, %v2049
    %v2051 = vrot.slane %v2037, %v2050
    %v2052 = vcombine.low %v1996, %v2028
    %v2053 = vcombine.high %v1996, %v2028
    %v2054 = vcombine.low %v2003, %v2035
    %v2055 = vcombine.high %v2003, %v2035
    %v2056 = vcombine.low %v2012, %v2044
    %v2057 = vcombine.high %v2012, %v2044
    %v2058 = vcombine.low %v2019, %v2051
    %v2059 = vcombine.high %v2019, %v2051
    %2060 = vrot.lane.b32.xlu0 %v278, 64
    %v2061 = vpop.permute.xlu0 %2060
    %2062 = vrot.lane.b32.xlu0 %v283, 64
    %v2063 = vpop.permute.xlu0 %2062
    %2064 = vrot.lane.b32.xlu0 %v288, 64
    %v2065 = vpop.permute.xlu0 %2064
    %2066 = vrot.lane.b32.xlu0 %v293, 64
    %v2067 = vpop.permute.xlu0 %2066
    %2068 = vrot.lane.b32.xlu0 %v889, 64
    %v2069 = vpop.permute.xlu0 %2068
    %2070 = vrot.lane.b32.xlu0 %v891, 64
    %v2071 = vpop.permute.xlu0 %2070
    %2072 = vrot.lane.b32.xlu0 %v893, 64
    %v2073 = vpop.permute.xlu0 %2072
    %2074 = vrot.lane.b32.xlu0 %v895, 64
    %v2075 = vpop.permute.xlu0 %2074
    %2076 = vrot.lane.b32.xlu0 %v901, 64
    %v2077 = vpop.permute.xlu0 %2076
    %2078 = vrot.lane.b32.xlu0 %v903, 64
    %v2079 = vpop.permute.xlu0 %2078
    %2080 = vrot.lane.b32.xlu0 %v905, 64
    %v2081 = vpop.permute.xlu0 %2080
    %2082 = vrot.lane.b32.xlu0 %v907, 64
    %v2083 = vpop.permute.xlu0 %2082
    %2084 = vrot.lane.b32.xlu0 %v913, 64
    %v2085 = vpop.permute.xlu0 %2084
    %2086 = vrot.lane.b32.xlu0 %v915, 64
    %v2087 = vpop.permute.xlu0 %2086
    %2088 = vrot.lane.b32.xlu0 %v917, 64
    %v2089 = vpop.permute.xlu0 %2088
    %2090 = vrot.lane.b32.xlu0 %v919, 64
    %v2091 = vpop.permute.xlu0 %2090
    %2092 = vrot.lane.b32.xlu0 %v925, 64
    %v2093 = vpop.permute.xlu0 %2092
    %2094 = vrot.lane.b32.xlu0 %v927, 64
    %v2095 = vpop.permute.xlu0 %2094
    %2096 = vrot.lane.b32.xlu0 %v929, 64
    %v2097 = vpop.permute.xlu0 %2096
    %2098 = vrot.lane.b32.xlu0 %v931, 64
    %v2099 = vpop.permute.xlu0 %2098
    %2100 = vrot.lane.b32.xlu0 %v937, 64
    %v2101 = vpop.permute.xlu0 %2100
    %2102 = vrot.lane.b32.xlu0 %v939, 64
    %v2103 = vpop.permute.xlu0 %2102
    %2104 = vrot.lane.b32.xlu0 %v941, 64
    %v2105 = vpop.permute.xlu0 %2104
    %2106 = vrot.lane.b32.xlu0 %v943, 64
    %v2107 = vpop.permute.xlu0 %2106
    %2108 = vrot.lane.b32.xlu0 %v949, 64
    %v2109 = vpop.permute.xlu0 %2108
    %2110 = vrot.lane.b32.xlu0 %v951, 64
    %v2111 = vpop.permute.xlu0 %2110
    %2112 = vrot.lane.b32.xlu0 %v953, 64
    %v2113 = vpop.permute.xlu0 %2112
    %2114 = vrot.lane.b32.xlu0 %v955, 64
    %v2115 = vpop.permute.xlu0 %2114
    %2116 = vrot.lane.b32.xlu0 %v961, 64
    %v2117 = vpop.permute.xlu0 %2116
    %2118 = vrot.lane.b32.xlu0 %v963, 64
    %v2119 = vpop.permute.xlu0 %2118
    %2120 = vrot.lane.b32.xlu0 %v965, 64
    %v2121 = vpop.permute.xlu0 %2120
    %2122 = vrot.lane.b32.xlu0 %v967, 64
    %v2123 = vpop.permute.xlu0 %2122
    %v2156 = vcombine.low %v2061, %v2077
    %v2157 = vcombine.high %v2061, %v2077
    %v2159 = vunpack.c.l.s4 1983009808
    %v2160 = vunpack.c.0.s8 %v2159
    %v2161 = vlaneseq
    %v2162 = vshrl.u32 %v2161, 7
    %v2163 = vsub.s32 %v2160, %v2162
    %v2164 = vrot.slane %v2156, %v2163
    %v2166 = vunpack.c.l.s4 1983009808
    %v2167 = vunpack.c.0.s8 %v2166
    %v2168 = vlaneseq
    %v2169 = vshrl.u32 %v2168, 7
    %v2170 = vsub.s32 %v2167, %v2169
    %v2171 = vrot.slane %v2157, %v2170
    %v2172 = vcombine.low %v2069, %v2085
    %v2173 = vcombine.high %v2069, %v2085
    %v2175 = vunpack.c.l.s4 1983009808
    %v2176 = vunpack.c.0.s8 %v2175
    %v2177 = vlaneseq
    %v2178 = vshrl.u32 %v2177, 7
    %v2179 = vsub.s32 %v2176, %v2178
    %v2180 = vrot.slane %v2172, %v2179
    %v2182 = vunpack.c.l.s4 1983009808
    %v2183 = vunpack.c.0.s8 %v2182
    %v2184 = vlaneseq
    %v2185 = vshrl.u32 %v2184, 7
    %v2186 = vsub.s32 %v2183, %v2185
    %v2187 = vrot.slane %v2173, %v2186
    %v2188 = vcombine.low %v2093, %v2109
    %v2189 = vcombine.high %v2093, %v2109
    %v2191 = vunpack.c.l.s4 1983009808
    %v2192 = vunpack.c.0.s8 %v2191
    %v2193 = vlaneseq
    %v2194 = vshrl.u32 %v2193, 7
    %v2195 = vsub.s32 %v2192, %v2194
    %v2196 = vrot.slane %v2188, %v2195
    %v2198 = vunpack.c.l.s4 1983009808
    %v2199 = vunpack.c.0.s8 %v2198
    %v2200 = vlaneseq
    %v2201 = vshrl.u32 %v2200, 7
    %v2202 = vsub.s32 %v2199, %v2201
    %v2203 = vrot.slane %v2189, %v2202
    %v2204 = vcombine.low %v2101, %v2117
    %v2205 = vcombine.high %v2101, %v2117
    %v2207 = vunpack.c.l.s4 1983009808
    %v2208 = vunpack.c.0.s8 %v2207
    %v2209 = vlaneseq
    %v2210 = vshrl.u32 %v2209, 7
    %v2211 = vsub.s32 %v2208, %v2210
    %v2212 = vrot.slane %v2204, %v2211
    %v2214 = vunpack.c.l.s4 1983009808
    %v2215 = vunpack.c.0.s8 %v2214
    %v2216 = vlaneseq
    %v2217 = vshrl.u32 %v2216, 7
    %v2218 = vsub.s32 %v2215, %v2217
    %v2219 = vrot.slane %v2205, %v2218
    %v2220 = vcombine.low %v2164, %v2180
    %v2221 = vcombine.high %v2164, %v2180
    %v2223 = vunpack.c.l.s4 1934713408
    %v2224 = vunpack.c.0.s8 %v2223
    %v2225 = vlaneseq
    %v2226 = vshrl.u32 %v2225, 7
    %v2227 = vsub.s32 %v2224, %v2226
    %v2228 = vrot.slane %v2220, %v2227
    %v2230 = vunpack.c.l.s4 1934713408
    %v2231 = vunpack.c.0.s8 %v2230
    %v2232 = vlaneseq
    %v2233 = vshrl.u32 %v2232, 7
    %v2234 = vsub.s32 %v2231, %v2233
    %v2235 = vrot.slane %v2221, %v2234
    %v2236 = vcombine.low %v2171, %v2187
    %v2237 = vcombine.high %v2171, %v2187
    %v2239 = vunpack.c.l.s4 1934713408
    %v2240 = vunpack.c.0.s8 %v2239
    %v2241 = vlaneseq
    %v2242 = vshrl.u32 %v2241, 7
    %v2243 = vsub.s32 %v2240, %v2242
    %v2244 = vrot.slane %v2236, %v2243
    %v2246 = vunpack.c.l.s4 1934713408
    %v2247 = vunpack.c.0.s8 %v2246
    %v2248 = vlaneseq
    %v2249 = vshrl.u32 %v2248, 7
    %v2250 = vsub.s32 %v2247, %v2249
    %v2251 = vrot.slane %v2237, %v2250
    %v2252 = vcombine.low %v2196, %v2212
    %v2253 = vcombine.high %v2196, %v2212
    %v2255 = vunpack.c.l.s4 1934713408
    %v2256 = vunpack.c.0.s8 %v2255
    %v2257 = vlaneseq
    %v2258 = vshrl.u32 %v2257, 7
    %v2259 = vsub.s32 %v2256, %v2258
    %v2260 = vrot.slane %v2252, %v2259
    %v2262 = vunpack.c.l.s4 1934713408
    %v2263 = vunpack.c.0.s8 %v2262
    %v2264 = vlaneseq
    %v2265 = vshrl.u32 %v2264, 7
    %v2266 = vsub.s32 %v2263, %v2265
    %v2267 = vrot.slane %v2253, %v2266
    %v2268 = vcombine.low %v2203, %v2219
    %v2269 = vcombine.high %v2203, %v2219
    %v2271 = vunpack.c.l.s4 1934713408
    %v2272 = vunpack.c.0.s8 %v2271
    %v2273 = vlaneseq
    %v2274 = vshrl.u32 %v2273, 7
    %v2275 = vsub.s32 %v2272, %v2274
    %v2276 = vrot.slane %v2268, %v2275
    %v2278 = vunpack.c.l.s4 1934713408
    %v2279 = vunpack.c.0.s8 %v2278
    %v2280 = vlaneseq
    %v2281 = vshrl.u32 %v2280, 7
    %v2282 = vsub.s32 %v2279, %v2281
    %v2283 = vrot.slane %v2269, %v2282
    %v2284 = vcombine.low %v2228, %v2260
    %v2285 = vcombine.high %v2228, %v2260
    %v2286 = vcombine.low %v2235, %v2267
    %v2287 = vcombine.high %v2235, %v2267
    %v2288 = vcombine.low %v2244, %v2276
    %v2289 = vcombine.high %v2244, %v2276
    %v2290 = vcombine.low %v2251, %v2283
    %v2291 = vcombine.high %v2251, %v2283
    %v2292 = vcombine.low %v2063, %v2079
    %v2293 = vcombine.high %v2063, %v2079
    %v2295 = vunpack.c.l.s4 1983009808
    %v2296 = vunpack.c.0.s8 %v2295
    %v2297 = vlaneseq
    %v2298 = vshrl.u32 %v2297, 7
    %v2299 = vsub.s32 %v2296, %v2298
    %v2300 = vrot.slane %v2292, %v2299
    %v2302 = vunpack.c.l.s4 1983009808
    %v2303 = vunpack.c.0.s8 %v2302
    %v2304 = vlaneseq
    %v2305 = vshrl.u32 %v2304, 7
    %v2306 = vsub.s32 %v2303, %v2305
    %v2307 = vrot.slane %v2293, %v2306
    %v2308 = vcombine.low %v2071, %v2087
    %v2309 = vcombine.high %v2071, %v2087
    %v2311 = vunpack.c.l.s4 1983009808
    %v2312 = vunpack.c.0.s8 %v2311
    %v2313 = vlaneseq
    %v2314 = vshrl.u32 %v2313, 7
    %v2315 = vsub.s32 %v2312, %v2314
    %v2316 = vrot.slane %v2308, %v2315
    %v2318 = vunpack.c.l.s4 1983009808
    %v2319 = vunpack.c.0.s8 %v2318
    %v2320 = vlaneseq
    %v2321 = vshrl.u32 %v2320, 7
    %v2322 = vsub.s32 %v2319, %v2321
    %v2323 = vrot.slane %v2309, %v2322
    %v2324 = vcombine.low %v2095, %v2111
    %v2325 = vcombine.high %v2095, %v2111
    %v2327 = vunpack.c.l.s4 1983009808
    %v2328 = vunpack.c.0.s8 %v2327
    %v2329 = vlaneseq
    %v2330 = vshrl.u32 %v2329, 7
    %v2331 = vsub.s32 %v2328, %v2330
    %v2332 = vrot.slane %v2324, %v2331
    %v2334 = vunpack.c.l.s4 1983009808
    %v2335 = vunpack.c.0.s8 %v2334
    %v2336 = vlaneseq
    %v2337 = vshrl.u32 %v2336, 7
    %v2338 = vsub.s32 %v2335, %v2337
    %v2339 = vrot.slane %v2325, %v2338
    %v2340 = vcombine.low %v2103, %v2119
    %v2341 = vcombine.high %v2103, %v2119
    %v2343 = vunpack.c.l.s4 1983009808
    %v2344 = vunpack.c.0.s8 %v2343
    %v2345 = vlaneseq
    %v2346 = vshrl.u32 %v2345, 7
    %v2347 = vsub.s32 %v2344, %v2346
    %v2348 = vrot.slane %v2340, %v2347
    %v2350 = vunpack.c.l.s4 1983009808
    %v2351 = vunpack.c.0.s8 %v2350
    %v2352 = vlaneseq
    %v2353 = vshrl.u32 %v2352, 7
    %v2354 = vsub.s32 %v2351, %v2353
    %v2355 = vrot.slane %v2341, %v2354
    %v2356 = vcombine.low %v2300, %v2316
    %v2357 = vcombine.high %v2300, %v2316
    %v2359 = vunpack.c.l.s4 1934713408
    %v2360 = vunpack.c.0.s8 %v2359
    %v2361 = vlaneseq
    %v2362 = vshrl.u32 %v2361, 7
    %v2363 = vsub.s32 %v2360, %v2362
    %v2364 = vrot.slane %v2356, %v2363
    %v2366 = vunpack.c.l.s4 1934713408
    %v2367 = vunpack.c.0.s8 %v2366
    %v2368 = vlaneseq
    %v2369 = vshrl.u32 %v2368, 7
    %v2370 = vsub.s32 %v2367, %v2369
    %v2371 = vrot.slane %v2357, %v2370
    %v2372 = vcombine.low %v2307, %v2323
    %v2373 = vcombine.high %v2307, %v2323
    %v2375 = vunpack.c.l.s4 1934713408
    %v2376 = vunpack.c.0.s8 %v2375
    %v2377 = vlaneseq
    %v2378 = vshrl.u32 %v2377, 7
    %v2379 = vsub.s32 %v2376, %v2378
    %v2380 = vrot.slane %v2372, %v2379
    %v2382 = vunpack.c.l.s4 1934713408
    %v2383 = vunpack.c.0.s8 %v2382
    %v2384 = vlaneseq
    %v2385 = vshrl.u32 %v2384, 7
    %v2386 = vsub.s32 %v2383, %v2385
    %v2387 = vrot.slane %v2373, %v2386
    %v2388 = vcombine.low %v2332, %v2348
    %v2389 = vcombine.high %v2332, %v2348
    %v2391 = vunpack.c.l.s4 1934713408
    %v2392 = vunpack.c.0.s8 %v2391
    %v2393 = vlaneseq
    %v2394 = vshrl.u32 %v2393, 7
    %v2395 = vsub.s32 %v2392, %v2394
    %v2396 = vrot.slane %v2388, %v2395
    %v2398 = vunpack.c.l.s4 1934713408
    %v2399 = vunpack.c.0.s8 %v2398
    %v2400 = vlaneseq
    %v2401 = vshrl.u32 %v2400, 7
    %v2402 = vsub.s32 %v2399, %v2401
    %v2403 = vrot.slane %v2389, %v2402
    %v2404 = vcombine.low %v2339, %v2355
    %v2405 = vcombine.high %v2339, %v2355
    %v2407 = vunpack.c.l.s4 1934713408
    %v2408 = vunpack.c.0.s8 %v2407
    %v2409 = vlaneseq
    %v2410 = vshrl.u32 %v2409, 7
    %v2411 = vsub.s32 %v2408, %v2410
    %v2412 = vrot.slane %v2404, %v2411
    %v2414 = vunpack.c.l.s4 1934713408
    %v2415 = vunpack.c.0.s8 %v2414
    %v2416 = vlaneseq
    %v2417 = vshrl.u32 %v2416, 7
    %v2418 = vsub.s32 %v2415, %v2417
    %v2419 = vrot.slane %v2405, %v2418
    %v2420 = vcombine.low %v2364, %v2396
    %v2421 = vcombine.high %v2364, %v2396
    %v2422 = vcombine.low %v2371, %v2403
    %v2423 = vcombine.high %v2371, %v2403
    %v2424 = vcombine.low %v2380, %v2412
    %v2425 = vcombine.high %v2380, %v2412
    %v2426 = vcombine.low %v2387, %v2419
    %v2427 = vcombine.high %v2387, %v2419
    %v2428 = vcombine.low %v2065, %v2081
    %v2429 = vcombine.high %v2065, %v2081
    %v2431 = vunpack.c.l.s4 1983009808
    %v2432 = vunpack.c.0.s8 %v2431
    %v2433 = vlaneseq
    %v2434 = vshrl.u32 %v2433, 7
    %v2435 = vsub.s32 %v2432, %v2434
    %v2436 = vrot.slane %v2428, %v2435
    %v2438 = vunpack.c.l.s4 1983009808
    %v2439 = vunpack.c.0.s8 %v2438
    %v2440 = vlaneseq
    %v2441 = vshrl.u32 %v2440, 7
    %v2442 = vsub.s32 %v2439, %v2441
    %v2443 = vrot.slane %v2429, %v2442
    %v2444 = vcombine.low %v2073, %v2089
    %v2445 = vcombine.high %v2073, %v2089
    %v2447 = vunpack.c.l.s4 1983009808
    %v2448 = vunpack.c.0.s8 %v2447
    %v2449 = vlaneseq
    %v2450 = vshrl.u32 %v2449, 7
    %v2451 = vsub.s32 %v2448, %v2450
    %v2452 = vrot.slane %v2444, %v2451
    %v2454 = vunpack.c.l.s4 1983009808
    %v2455 = vunpack.c.0.s8 %v2454
    %v2456 = vlaneseq
    %v2457 = vshrl.u32 %v2456, 7
    %v2458 = vsub.s32 %v2455, %v2457
    %v2459 = vrot.slane %v2445, %v2458
    %v2460 = vcombine.low %v2097, %v2113
    %v2461 = vcombine.high %v2097, %v2113
    %v2463 = vunpack.c.l.s4 1983009808
    %v2464 = vunpack.c.0.s8 %v2463
    %v2465 = vlaneseq
    %v2466 = vshrl.u32 %v2465, 7
    %v2467 = vsub.s32 %v2464, %v2466
    %v2468 = vrot.slane %v2460, %v2467
    %v2470 = vunpack.c.l.s4 1983009808
    %v2471 = vunpack.c.0.s8 %v2470
    %v2472 = vlaneseq
    %v2473 = vshrl.u32 %v2472, 7
    %v2474 = vsub.s32 %v2471, %v2473
    %v2475 = vrot.slane %v2461, %v2474
    %v2476 = vcombine.low %v2105, %v2121
    %v2477 = vcombine.high %v2105, %v2121
    %v2479 = vunpack.c.l.s4 1983009808
    %v2480 = vunpack.c.0.s8 %v2479
    %v2481 = vlaneseq
    %v2482 = vshrl.u32 %v2481, 7
    %v2483 = vsub.s32 %v2480, %v2482
    %v2484 = vrot.slane %v2476, %v2483
    %v2486 = vunpack.c.l.s4 1983009808
    %v2487 = vunpack.c.0.s8 %v2486
    %v2488 = vlaneseq
    %v2489 = vshrl.u32 %v2488, 7
    %v2490 = vsub.s32 %v2487, %v2489
    %v2491 = vrot.slane %v2477, %v2490
    %v2492 = vcombine.low %v2436, %v2452
    %v2493 = vcombine.high %v2436, %v2452
    %v2495 = vunpack.c.l.s4 1934713408
    %v2496 = vunpack.c.0.s8 %v2495
    %v2497 = vlaneseq
    %v2498 = vshrl.u32 %v2497, 7
    %v2499 = vsub.s32 %v2496, %v2498
    %v2500 = vrot.slane %v2492, %v2499
    %v2502 = vunpack.c.l.s4 1934713408
    %v2503 = vunpack.c.0.s8 %v2502
    %v2504 = vlaneseq
    %v2505 = vshrl.u32 %v2504, 7
    %v2506 = vsub.s32 %v2503, %v2505
    %v2507 = vrot.slane %v2493, %v2506
    %v2508 = vcombine.low %v2443, %v2459
    %v2509 = vcombine.high %v2443, %v2459
    %v2511 = vunpack.c.l.s4 1934713408
    %v2512 = vunpack.c.0.s8 %v2511
    %v2513 = vlaneseq
    %v2514 = vshrl.u32 %v2513, 7
    %v2515 = vsub.s32 %v2512, %v2514
    %v2516 = vrot.slane %v2508, %v2515
    %v2518 = vunpack.c.l.s4 1934713408
    %v2519 = vunpack.c.0.s8 %v2518
    %v2520 = vlaneseq
    %v2521 = vshrl.u32 %v2520, 7
    %v2522 = vsub.s32 %v2519, %v2521
    %v2523 = vrot.slane %v2509, %v2522
    %v2524 = vcombine.low %v2468, %v2484
    %v2525 = vcombine.high %v2468, %v2484
    %v2527 = vunpack.c.l.s4 1934713408
    %v2528 = vunpack.c.0.s8 %v2527
    %v2529 = vlaneseq
    %v2530 = vshrl.u32 %v2529, 7
    %v2531 = vsub.s32 %v2528, %v2530
    %v2532 = vrot.slane %v2524, %v2531
    %v2534 = vunpack.c.l.s4 1934713408
    %v2535 = vunpack.c.0.s8 %v2534
    %v2536 = vlaneseq
    %v2537 = vshrl.u32 %v2536, 7
    %v2538 = vsub.s32 %v2535, %v2537
    %v2539 = vrot.slane %v2525, %v2538
    %v2540 = vcombine.low %v2475, %v2491
    %v2541 = vcombine.high %v2475, %v2491
    %v2543 = vunpack.c.l.s4 1934713408
    %v2544 = vunpack.c.0.s8 %v2543
    %v2545 = vlaneseq
    %v2546 = vshrl.u32 %v2545, 7
    %v2547 = vsub.s32 %v2544, %v2546
    %v2548 = vrot.slane %v2540, %v2547
    %v2550 = vunpack.c.l.s4 1934713408
    %v2551 = vunpack.c.0.s8 %v2550
    %v2552 = vlaneseq
    %v2553 = vshrl.u32 %v2552, 7
    %v2554 = vsub.s32 %v2551, %v2553
    %v2555 = vrot.slane %v2541, %v2554
    %v2556 = vcombine.low %v2500, %v2532
    %v2557 = vcombine.high %v2500, %v2532
    %v2558 = vcombine.low %v2507, %v2539
    %v2559 = vcombine.high %v2507, %v2539
    %v2560 = vcombine.low %v2516, %v2548
    %v2561 = vcombine.high %v2516, %v2548
    %v2562 = vcombine.low %v2523, %v2555
    %v2563 = vcombine.high %v2523, %v2555
    %v2564 = vcombine.low %v2067, %v2083
    %v2565 = vcombine.high %v2067, %v2083
    %v2567 = vunpack.c.l.s4 1983009808
    %v2568 = vunpack.c.0.s8 %v2567
    %v2569 = vlaneseq
    %v2570 = vshrl.u32 %v2569, 7
    %v2571 = vsub.s32 %v2568, %v2570
    %v2572 = vrot.slane %v2564, %v2571
    %v2574 = vunpack.c.l.s4 1983009808
    %v2575 = vunpack.c.0.s8 %v2574
    %v2576 = vlaneseq
    %v2577 = vshrl.u32 %v2576, 7
    %v2578 = vsub.s32 %v2575, %v2577
    %v2579 = vrot.slane %v2565, %v2578
    %v2580 = vcombine.low %v2075, %v2091
    %v2581 = vcombine.high %v2075, %v2091
    %v2583 = vunpack.c.l.s4 1983009808
    %v2584 = vunpack.c.0.s8 %v2583
    %v2585 = vlaneseq
    %v2586 = vshrl.u32 %v2585, 7
    %v2587 = vsub.s32 %v2584, %v2586
    %v2588 = vrot.slane %v2580, %v2587
    %v2590 = vunpack.c.l.s4 1983009808
    %v2591 = vunpack.c.0.s8 %v2590
    %v2592 = vlaneseq
    %v2593 = vshrl.u32 %v2592, 7
    %v2594 = vsub.s32 %v2591, %v2593
    %v2595 = vrot.slane %v2581, %v2594
    %v2596 = vcombine.low %v2099, %v2115
    %v2597 = vcombine.high %v2099, %v2115
    %v2599 = vunpack.c.l.s4 1983009808
    %v2600 = vunpack.c.0.s8 %v2599
    %v2601 = vlaneseq
    %v2602 = vshrl.u32 %v2601, 7
    %v2603 = vsub.s32 %v2600, %v2602
    %v2604 = vrot.slane %v2596, %v2603
    %v2606 = vunpack.c.l.s4 1983009808
    %v2607 = vunpack.c.0.s8 %v2606
    %v2608 = vlaneseq
    %v2609 = vshrl.u32 %v2608, 7
    %v2610 = vsub.s32 %v2607, %v2609
    %v2611 = vrot.slane %v2597, %v2610
    %v2612 = vcombine.low %v2107, %v2123
    %v2613 = vcombine.high %v2107, %v2123
    %v2615 = vunpack.c.l.s4 1983009808
    %v2616 = vunpack.c.0.s8 %v2615
    %v2617 = vlaneseq
    %v2618 = vshrl.u32 %v2617, 7
    %v2619 = vsub.s32 %v2616, %v2618
    %v2620 = vrot.slane %v2612, %v2619
    %v2622 = vunpack.c.l.s4 1983009808
    %v2623 = vunpack.c.0.s8 %v2622
    %v2624 = vlaneseq
    %v2625 = vshrl.u32 %v2624, 7
    %v2626 = vsub.s32 %v2623, %v2625
    %v2627 = vrot.slane %v2613, %v2626
    %v2628 = vcombine.low %v2572, %v2588
    %v2629 = vcombine.high %v2572, %v2588
    %v2631 = vunpack.c.l.s4 1934713408
    %v2632 = vunpack.c.0.s8 %v2631
    %v2633 = vlaneseq
    %v2634 = vshrl.u32 %v2633, 7
    %v2635 = vsub.s32 %v2632, %v2634
    %v2636 = vrot.slane %v2628, %v2635
    %v2638 = vunpack.c.l.s4 1934713408
    %v2639 = vunpack.c.0.s8 %v2638
    %v2640 = vlaneseq
    %v2641 = vshrl.u32 %v2640, 7
    %v2642 = vsub.s32 %v2639, %v2641
    %v2643 = vrot.slane %v2629, %v2642
    %v2644 = vcombine.low %v2579, %v2595
    %v2645 = vcombine.high %v2579, %v2595
    %v2647 = vunpack.c.l.s4 1934713408
    %v2648 = vunpack.c.0.s8 %v2647
    %v2649 = vlaneseq
    %v2650 = vshrl.u32 %v2649, 7
    %v2651 = vsub.s32 %v2648, %v2650
    %v2652 = vrot.slane %v2644, %v2651
    %v2654 = vunpack.c.l.s4 1934713408
    %v2655 = vunpack.c.0.s8 %v2654
    %v2656 = vlaneseq
    %v2657 = vshrl.u32 %v2656, 7
    %v2658 = vsub.s32 %v2655, %v2657
    %v2659 = vrot.slane %v2645, %v2658
    %v2660 = vcombine.low %v2604, %v2620
    %v2661 = vcombine.high %v2604, %v2620
    %v2663 = vunpack.c.l.s4 1934713408
    %v2664 = vunpack.c.0.s8 %v2663
    %v2665 = vlaneseq
    %v2666 = vshrl.u32 %v2665, 7
    %v2667 = vsub.s32 %v2664, %v2666
    %v2668 = vrot.slane %v2660, %v2667
    %v2670 = vunpack.c.l.s4 1934713408
    %v2671 = vunpack.c.0.s8 %v2670
    %v2672 = vlaneseq
    %v2673 = vshrl.u32 %v2672, 7
    %v2674 = vsub.s32 %v2671, %v2673
    %v2675 = vrot.slane %v2661, %v2674
    %v2676 = vcombine.low %v2611, %v2627
    %v2677 = vcombine.high %v2611, %v2627
    %v2679 = vunpack.c.l.s4 1934713408
    %v2680 = vunpack.c.0.s8 %v2679
    %v2681 = vlaneseq
    %v2682 = vshrl.u32 %v2681, 7
    %v2683 = vsub.s32 %v2680, %v2682
    %v2684 = vrot.slane %v2676, %v2683
    %v2686 = vunpack.c.l.s4 1934713408
    %v2687 = vunpack.c.0.s8 %v2686
    %v2688 = vlaneseq
    %v2689 = vshrl.u32 %v2688, 7
    %v2690 = vsub.s32 %v2687, %v2689
    %v2691 = vrot.slane %v2677, %v2690
    %v2692 = vcombine.low %v2636, %v2668
    %v2693 = vcombine.high %v2636, %v2668
    %v2694 = vcombine.low %v2643, %v2675
    %v2695 = vcombine.high %v2643, %v2675
    %v2696 = vcombine.low %v2652, %v2684
    %v2697 = vcombine.high %v2652, %v2684
    %v2698 = vcombine.low %v2659, %v2691
    %v2699 = vcombine.high %v2659, %v2691
    %v2700 = vcombine.low %v2284, %v2286
    %v2701 = vcombine.high %v2284, %v2286
    %v2703 = vunpack.c.l.s4 1983009808
    %v2704 = vunpack.c.0.s8 %v2703
    %v2705 = vlaneseq
    %v2706 = vshrl.u32 %v2705, 7
    %v2707 = vsub.s32 %v2704, %v2706
    %v2708 = vrot.slane %v2700, %v2707
    %v2710 = vunpack.c.l.s4 1983009808
    %v2711 = vunpack.c.0.s8 %v2710
    %v2712 = vlaneseq
    %v2713 = vshrl.u32 %v2712, 7
    %v2714 = vsub.s32 %v2711, %v2713
    %v2715 = vrot.slane %v2701, %v2714
    %v2716 = vcombine.low %v2285, %v2287
    %v2717 = vcombine.high %v2285, %v2287
    %v2719 = vunpack.c.l.s4 1983009808
    %v2720 = vunpack.c.0.s8 %v2719
    %v2721 = vlaneseq
    %v2722 = vshrl.u32 %v2721, 7
    %v2723 = vsub.s32 %v2720, %v2722
    %v2724 = vrot.slane %v2716, %v2723
    %v2726 = vunpack.c.l.s4 1983009808
    %v2727 = vunpack.c.0.s8 %v2726
    %v2728 = vlaneseq
    %v2729 = vshrl.u32 %v2728, 7
    %v2730 = vsub.s32 %v2727, %v2729
    %v2731 = vrot.slane %v2717, %v2730
    %v2732 = vcombine.low %v2288, %v2290
    %v2733 = vcombine.high %v2288, %v2290
    %v2735 = vunpack.c.l.s4 1983009808
    %v2736 = vunpack.c.0.s8 %v2735
    %v2737 = vlaneseq
    %v2738 = vshrl.u32 %v2737, 7
    %v2739 = vsub.s32 %v2736, %v2738
    %v2740 = vrot.slane %v2732, %v2739
    %v2742 = vunpack.c.l.s4 1983009808
    %v2743 = vunpack.c.0.s8 %v2742
    %v2744 = vlaneseq
    %v2745 = vshrl.u32 %v2744, 7
    %v2746 = vsub.s32 %v2743, %v2745
    %v2747 = vrot.slane %v2733, %v2746
    %v2748 = vcombine.low %v2289, %v2291
    %v2749 = vcombine.high %v2289, %v2291
    %v2751 = vunpack.c.l.s4 1983009808
    %v2752 = vunpack.c.0.s8 %v2751
    %v2753 = vlaneseq
    %v2754 = vshrl.u32 %v2753, 7
    %v2755 = vsub.s32 %v2752, %v2754
    %v2756 = vrot.slane %v2748, %v2755
    %v2758 = vunpack.c.l.s4 1983009808
    %v2759 = vunpack.c.0.s8 %v2758
    %v2760 = vlaneseq
    %v2761 = vshrl.u32 %v2760, 7
    %v2762 = vsub.s32 %v2759, %v2761
    %v2763 = vrot.slane %v2749, %v2762
    %v2764 = vcombine.low %v2708, %v2724
    %v2765 = vcombine.high %v2708, %v2724
    %v2767 = vunpack.c.l.s4 1934713408
    %v2768 = vunpack.c.0.s8 %v2767
    %v2769 = vlaneseq
    %v2770 = vshrl.u32 %v2769, 7
    %v2771 = vsub.s32 %v2768, %v2770
    %v2772 = vrot.slane %v2764, %v2771
    %v2774 = vunpack.c.l.s4 1934713408
    %v2775 = vunpack.c.0.s8 %v2774
    %v2776 = vlaneseq
    %v2777 = vshrl.u32 %v2776, 7
    %v2778 = vsub.s32 %v2775, %v2777
    %v2779 = vrot.slane %v2765, %v2778
    %v2780 = vcombine.low %v2715, %v2731
    %v2781 = vcombine.high %v2715, %v2731
    %v2783 = vunpack.c.l.s4 1934713408
    %v2784 = vunpack.c.0.s8 %v2783
    %v2785 = vlaneseq
    %v2786 = vshrl.u32 %v2785, 7
    %v2787 = vsub.s32 %v2784, %v2786
    %v2788 = vrot.slane %v2780, %v2787
    %v2790 = vunpack.c.l.s4 1934713408
    %v2791 = vunpack.c.0.s8 %v2790
    %v2792 = vlaneseq
    %v2793 = vshrl.u32 %v2792, 7
    %v2794 = vsub.s32 %v2791, %v2793
    %v2795 = vrot.slane %v2781, %v2794
    %v2796 = vcombine.low %v2740, %v2756
    %v2797 = vcombine.high %v2740, %v2756
    %v2799 = vunpack.c.l.s4 1934713408
    %v2800 = vunpack.c.0.s8 %v2799
    %v2801 = vlaneseq
    %v2802 = vshrl.u32 %v2801, 7
    %v2803 = vsub.s32 %v2800, %v2802
    %v2804 = vrot.slane %v2796, %v2803
    %v2806 = vunpack.c.l.s4 1934713408
    %v2807 = vunpack.c.0.s8 %v2806
    %v2808 = vlaneseq
    %v2809 = vshrl.u32 %v2808, 7
    %v2810 = vsub.s32 %v2807, %v2809
    %v2811 = vrot.slane %v2797, %v2810
    %v2812 = vcombine.low %v2747, %v2763
    %v2813 = vcombine.high %v2747, %v2763
    %v2815 = vunpack.c.l.s4 1934713408
    %v2816 = vunpack.c.0.s8 %v2815
    %v2817 = vlaneseq
    %v2818 = vshrl.u32 %v2817, 7
    %v2819 = vsub.s32 %v2816, %v2818
    %v2820 = vrot.slane %v2812, %v2819
    %v2822 = vunpack.c.l.s4 1934713408
    %v2823 = vunpack.c.0.s8 %v2822
    %v2824 = vlaneseq
    %v2825 = vshrl.u32 %v2824, 7
    %v2826 = vsub.s32 %v2823, %v2825
    %v2827 = vrot.slane %v2813, %v2826
    %v2828 = vcombine.low %v2772, %v2804
    %v2829 = vcombine.high %v2772, %v2804
    %v2830 = vcombine.low %v2779, %v2811
    %v2831 = vcombine.high %v2779, %v2811
    %v2832 = vcombine.low %v2788, %v2820
    %v2833 = vcombine.high %v2788, %v2820
    %v2834 = vcombine.low %v2795, %v2827
    %v2835 = vcombine.high %v2795, %v2827
    %v2836 = vcombine.low %v2420, %v2422
    %v2837 = vcombine.high %v2420, %v2422
    %v2839 = vunpack.c.l.s4 1983009808
    %v2840 = vunpack.c.0.s8 %v2839
    %v2841 = vlaneseq
    %v2842 = vshrl.u32 %v2841, 7
    %v2843 = vsub.s32 %v2840, %v2842
    %v2844 = vrot.slane %v2836, %v2843
    %v2846 = vunpack.c.l.s4 1983009808
    %v2847 = vunpack.c.0.s8 %v2846
    %v2848 = vlaneseq
    %v2849 = vshrl.u32 %v2848, 7
    %v2850 = vsub.s32 %v2847, %v2849
    %v2851 = vrot.slane %v2837, %v2850
    %v2852 = vcombine.low %v2421, %v2423
    %v2853 = vcombine.high %v2421, %v2423
    %v2855 = vunpack.c.l.s4 1983009808
    %v2856 = vunpack.c.0.s8 %v2855
    %v2857 = vlaneseq
    %v2858 = vshrl.u32 %v2857, 7
    %v2859 = vsub.s32 %v2856, %v2858
    %v2860 = vrot.slane %v2852, %v2859
    %v2862 = vunpack.c.l.s4 1983009808
    %v2863 = vunpack.c.0.s8 %v2862
    %v2864 = vlaneseq
    %v2865 = vshrl.u32 %v2864, 7
    %v2866 = vsub.s32 %v2863, %v2865
    %v2867 = vrot.slane %v2853, %v2866
    %v2868 = vcombine.low %v2424, %v2426
    %v2869 = vcombine.high %v2424, %v2426
    %v2871 = vunpack.c.l.s4 1983009808
    %v2872 = vunpack.c.0.s8 %v2871
    %v2873 = vlaneseq
    %v2874 = vshrl.u32 %v2873, 7
    %v2875 = vsub.s32 %v2872, %v2874
    %v2876 = vrot.slane %v2868, %v2875
    %v2878 = vunpack.c.l.s4 1983009808
    %v2879 = vunpack.c.0.s8 %v2878
    %v2880 = vlaneseq
    %v2881 = vshrl.u32 %v2880, 7
    %v2882 = vsub.s32 %v2879, %v2881
    %v2883 = vrot.slane %v2869, %v2882
    %v2884 = vcombine.low %v2425, %v2427
    %v2885 = vcombine.high %v2425, %v2427
    %v2887 = vunpack.c.l.s4 1983009808
    %v2888 = vunpack.c.0.s8 %v2887
    %v2889 = vlaneseq
    %v2890 = vshrl.u32 %v2889, 7
    %v2891 = vsub.s32 %v2888, %v2890
    %v2892 = vrot.slane %v2884, %v2891
    %v2894 = vunpack.c.l.s4 1983009808
    %v2895 = vunpack.c.0.s8 %v2894
    %v2896 = vlaneseq
    %v2897 = vshrl.u32 %v2896, 7
    %v2898 = vsub.s32 %v2895, %v2897
    %v2899 = vrot.slane %v2885, %v2898
    %v2900 = vcombine.low %v2844, %v2860
    %v2901 = vcombine.high %v2844, %v2860
    %v2903 = vunpack.c.l.s4 1934713408
    %v2904 = vunpack.c.0.s8 %v2903
    %v2905 = vlaneseq
    %v2906 = vshrl.u32 %v2905, 7
    %v2907 = vsub.s32 %v2904, %v2906
    %v2908 = vrot.slane %v2900, %v2907
    %v2910 = vunpack.c.l.s4 1934713408
    %v2911 = vunpack.c.0.s8 %v2910
    %v2912 = vlaneseq
    %v2913 = vshrl.u32 %v2912, 7
    %v2914 = vsub.s32 %v2911, %v2913
    %v2915 = vrot.slane %v2901, %v2914
    %v2916 = vcombine.low %v2851, %v2867
    %v2917 = vcombine.high %v2851, %v2867
    %v2919 = vunpack.c.l.s4 1934713408
    %v2920 = vunpack.c.0.s8 %v2919
    %v2921 = vlaneseq
    %v2922 = vshrl.u32 %v2921, 7
    %v2923 = vsub.s32 %v2920, %v2922
    %v2924 = vrot.slane %v2916, %v2923
    %v2926 = vunpack.c.l.s4 1934713408
    %v2927 = vunpack.c.0.s8 %v2926
    %v2928 = vlaneseq
    %v2929 = vshrl.u32 %v2928, 7
    %v2930 = vsub.s32 %v2927, %v2929
    %v2931 = vrot.slane %v2917, %v2930
    %v2932 = vcombine.low %v2876, %v2892
    %v2933 = vcombine.high %v2876, %v2892
    %v2935 = vunpack.c.l.s4 1934713408
    %v2936 = vunpack.c.0.s8 %v2935
    %v2937 = vlaneseq
    %v2938 = vshrl.u32 %v2937, 7
    %v2939 = vsub.s32 %v2936, %v2938
    %v2940 = vrot.slane %v2932, %v2939
    %v2942 = vunpack.c.l.s4 1934713408
    %v2943 = vunpack.c.0.s8 %v2942
    %v2944 = vlaneseq
    %v2945 = vshrl.u32 %v2944, 7
    %v2946 = vsub.s32 %v2943, %v2945
    %v2947 = vrot.slane %v2933, %v2946
    %v2948 = vcombine.low %v2883, %v2899
    %v2949 = vcombine.high %v2883, %v2899
    %v2951 = vunpack.c.l.s4 1934713408
    %v2952 = vunpack.c.0.s8 %v2951
    %v2953 = vlaneseq
    %v2954 = vshrl.u32 %v2953, 7
    %v2955 = vsub.s32 %v2952, %v2954
    %v2956 = vrot.slane %v2948, %v2955
    %v2958 = vunpack.c.l.s4 1934713408
    %v2959 = vunpack.c.0.s8 %v2958
    %v2960 = vlaneseq
    %v2961 = vshrl.u32 %v2960, 7
    %v2962 = vsub.s32 %v2959, %v2961
    %v2963 = vrot.slane %v2949, %v2962
    %v2964 = vcombine.low %v2908, %v2940
    %v2965 = vcombine.high %v2908, %v2940
    %v2966 = vcombine.low %v2915, %v2947
    %v2967 = vcombine.high %v2915, %v2947
    %v2968 = vcombine.low %v2924, %v2956
    %v2969 = vcombine.high %v2924, %v2956
    %v2970 = vcombine.low %v2931, %v2963
    %v2971 = vcombine.high %v2931, %v2963
    %v2972 = vcombine.low %v2556, %v2558
    %v2973 = vcombine.high %v2556, %v2558
    %v2975 = vunpack.c.l.s4 1983009808
    %v2976 = vunpack.c.0.s8 %v2975
    %v2977 = vlaneseq
    %v2978 = vshrl.u32 %v2977, 7
    %v2979 = vsub.s32 %v2976, %v2978
    %v2980 = vrot.slane %v2972, %v2979
    %v2982 = vunpack.c.l.s4 1983009808
    %v2983 = vunpack.c.0.s8 %v2982
    %v2984 = vlaneseq
    %v2985 = vshrl.u32 %v2984, 7
    %v2986 = vsub.s32 %v2983, %v2985
    %v2987 = vrot.slane %v2973, %v2986
    %v2988 = vcombine.low %v2557, %v2559
    %v2989 = vcombine.high %v2557, %v2559
    %v2991 = vunpack.c.l.s4 1983009808
    %v2992 = vunpack.c.0.s8 %v2991
    %v2993 = vlaneseq
    %v2994 = vshrl.u32 %v2993, 7
    %v2995 = vsub.s32 %v2992, %v2994
    %v2996 = vrot.slane %v2988, %v2995
    %v2998 = vunpack.c.l.s4 1983009808
    %v2999 = vunpack.c.0.s8 %v2998
    %v3000 = vlaneseq
    %v3001 = vshrl.u32 %v3000, 7
    %v3002 = vsub.s32 %v2999, %v3001
    %v3003 = vrot.slane %v2989, %v3002
    %v3004 = vcombine.low %v2560, %v2562
    %v3005 = vcombine.high %v2560, %v2562
    %v3007 = vunpack.c.l.s4 1983009808
    %v3008 = vunpack.c.0.s8 %v3007
    %v3009 = vlaneseq
    %v3010 = vshrl.u32 %v3009, 7
    %v3011 = vsub.s32 %v3008, %v3010
    %v3012 = vrot.slane %v3004, %v3011
    %v3014 = vunpack.c.l.s4 1983009808
    %v3015 = vunpack.c.0.s8 %v3014
    %v3016 = vlaneseq
    %v3017 = vshrl.u32 %v3016, 7
    %v3018 = vsub.s32 %v3015, %v3017
    %v3019 = vrot.slane %v3005, %v3018
    %v3020 = vcombine.low %v2561, %v2563
    %v3021 = vcombine.high %v2561, %v2563
    %v3023 = vunpack.c.l.s4 1983009808
    %v3024 = vunpack.c.0.s8 %v3023
    %v3025 = vlaneseq
    %v3026 = vshrl.u32 %v3025, 7
    %v3027 = vsub.s32 %v3024, %v3026
    %v3028 = vrot.slane %v3020, %v3027
    %v3030 = vunpack.c.l.s4 1983009808
    %v3031 = vunpack.c.0.s8 %v3030
    %v3032 = vlaneseq
    %v3033 = vshrl.u32 %v3032, 7
    %v3034 = vsub.s32 %v3031, %v3033
    %v3035 = vrot.slane %v3021, %v3034
    %v3036 = vcombine.low %v2980, %v2996
    %v3037 = vcombine.high %v2980, %v2996
    %v3039 = vunpack.c.l.s4 1934713408
    %v3040 = vunpack.c.0.s8 %v3039
    %v3041 = vlaneseq
    %v3042 = vshrl.u32 %v3041, 7
    %v3043 = vsub.s32 %v3040, %v3042
    %v3044 = vrot.slane %v3036, %v3043
    %v3046 = vunpack.c.l.s4 1934713408
    %v3047 = vunpack.c.0.s8 %v3046
    %v3048 = vlaneseq
    %v3049 = vshrl.u32 %v3048, 7
    %v3050 = vsub.s32 %v3047, %v3049
    %v3051 = vrot.slane %v3037, %v3050
    %v3052 = vcombine.low %v2987, %v3003
    %v3053 = vcombine.high %v2987, %v3003
    %v3055 = vunpack.c.l.s4 1934713408
    %v3056 = vunpack.c.0.s8 %v3055
    %v3057 = vlaneseq
    %v3058 = vshrl.u32 %v3057, 7
    %v3059 = vsub.s32 %v3056, %v3058
    %v3060 = vrot.slane %v3052, %v3059
    %v3062 = vunpack.c.l.s4 1934713408
    %v3063 = vunpack.c.0.s8 %v3062
    %v3064 = vlaneseq
    %v3065 = vshrl.u32 %v3064, 7
    %v3066 = vsub.s32 %v3063, %v3065
    %v3067 = vrot.slane %v3053, %v3066
    %v3068 = vcombine.low %v3012, %v3028
    %v3069 = vcombine.high %v3012, %v3028
    %v3071 = vunpack.c.l.s4 1934713408
    %v3072 = vunpack.c.0.s8 %v3071
    %v3073 = vlaneseq
    %v3074 = vshrl.u32 %v3073, 7
    %v3075 = vsub.s32 %v3072, %v3074
    %v3076 = vrot.slane %v3068, %v3075
    %v3078 = vunpack.c.l.s4 1934713408
    %v3079 = vunpack.c.0.s8 %v3078
    %v3080 = vlaneseq
    %v3081 = vshrl.u32 %v3080, 7
    %v3082 = vsub.s32 %v3079, %v3081
    %v3083 = vrot.slane %v3069, %v3082
    %v3084 = vcombine.low %v3019, %v3035
    %v3085 = vcombine.high %v3019, %v3035
    %v3087 = vunpack.c.l.s4 1934713408
    %v3088 = vunpack.c.0.s8 %v3087
    %v3089 = vlaneseq
    %v3090 = vshrl.u32 %v3089, 7
    %v3091 = vsub.s32 %v3088, %v3090
    %v3092 = vrot.slane %v3084, %v3091
    %v3094 = vunpack.c.l.s4 1934713408
    %v3095 = vunpack.c.0.s8 %v3094
    %v3096 = vlaneseq
    %v3097 = vshrl.u32 %v3096, 7
    %v3098 = vsub.s32 %v3095, %v3097
    %v3099 = vrot.slane %v3085, %v3098
    %v3100 = vcombine.low %v3044, %v3076
    %v3101 = vcombine.high %v3044, %v3076
    %v3102 = vcombine.low %v3051, %v3083
    %v3103 = vcombine.high %v3051, %v3083
    %v3104 = vcombine.low %v3060, %v3092
    %v3105 = vcombine.high %v3060, %v3092
    %v3106 = vcombine.low %v3067, %v3099
    %v3107 = vcombine.high %v3067, %v3099
    %v3108 = vcombine.low %v2692, %v2694
    %v3109 = vcombine.high %v2692, %v2694
    %v3111 = vunpack.c.l.s4 1983009808
    %v3112 = vunpack.c.0.s8 %v3111
    %v3113 = vlaneseq
    %v3114 = vshrl.u32 %v3113, 7
    %v3115 = vsub.s32 %v3112, %v3114
    %v3116 = vrot.slane %v3108, %v3115
    %v3118 = vunpack.c.l.s4 1983009808
    %v3119 = vunpack.c.0.s8 %v3118
    %v3120 = vlaneseq
    %v3121 = vshrl.u32 %v3120, 7
    %v3122 = vsub.s32 %v3119, %v3121
    %v3123 = vrot.slane %v3109, %v3122
    %v3124 = vcombine.low %v2693, %v2695
    %v3125 = vcombine.high %v2693, %v2695
    %v3127 = vunpack.c.l.s4 1983009808
    %v3128 = vunpack.c.0.s8 %v3127
    %v3129 = vlaneseq
    %v3130 = vshrl.u32 %v3129, 7
    %v3131 = vsub.s32 %v3128, %v3130
    %v3132 = vrot.slane %v3124, %v3131
    %v3134 = vunpack.c.l.s4 1983009808
    %v3135 = vunpack.c.0.s8 %v3134
    %v3136 = vlaneseq
    %v3137 = vshrl.u32 %v3136, 7
    %v3138 = vsub.s32 %v3135, %v3137
    %v3139 = vrot.slane %v3125, %v3138
    %v3140 = vcombine.low %v2696, %v2698
    %v3141 = vcombine.high %v2696, %v2698
    %v3143 = vunpack.c.l.s4 1983009808
    %v3144 = vunpack.c.0.s8 %v3143
    %v3145 = vlaneseq
    %v3146 = vshrl.u32 %v3145, 7
    %v3147 = vsub.s32 %v3144, %v3146
    %v3148 = vrot.slane %v3140, %v3147
    %v3150 = vunpack.c.l.s4 1983009808
    %v3151 = vunpack.c.0.s8 %v3150
    %v3152 = vlaneseq
    %v3153 = vshrl.u32 %v3152, 7
    %v3154 = vsub.s32 %v3151, %v3153
    %v3155 = vrot.slane %v3141, %v3154
    %v3156 = vcombine.low %v2697, %v2699
    %v3157 = vcombine.high %v2697, %v2699
    %v3159 = vunpack.c.l.s4 1983009808
    %v3160 = vunpack.c.0.s8 %v3159
    %v3161 = vlaneseq
    %v3162 = vshrl.u32 %v3161, 7
    %v3163 = vsub.s32 %v3160, %v3162
    %v3164 = vrot.slane %v3156, %v3163
    %v3166 = vunpack.c.l.s4 1983009808
    %v3167 = vunpack.c.0.s8 %v3166
    %v3168 = vlaneseq
    %v3169 = vshrl.u32 %v3168, 7
    %v3170 = vsub.s32 %v3167, %v3169
    %v3171 = vrot.slane %v3157, %v3170
    %v3172 = vcombine.low %v3116, %v3132
    %v3173 = vcombine.high %v3116, %v3132
    %v3175 = vunpack.c.l.s4 1934713408
    %v3176 = vunpack.c.0.s8 %v3175
    %v3177 = vlaneseq
    %v3178 = vshrl.u32 %v3177, 7
    %v3179 = vsub.s32 %v3176, %v3178
    %v3180 = vrot.slane %v3172, %v3179
    %v3182 = vunpack.c.l.s4 1934713408
    %v3183 = vunpack.c.0.s8 %v3182
    %v3184 = vlaneseq
    %v3185 = vshrl.u32 %v3184, 7
    %v3186 = vsub.s32 %v3183, %v3185
    %v3187 = vrot.slane %v3173, %v3186
    %v3188 = vcombine.low %v3123, %v3139
    %v3189 = vcombine.high %v3123, %v3139
    %v3191 = vunpack.c.l.s4 1934713408
    %v3192 = vunpack.c.0.s8 %v3191
    %v3193 = vlaneseq
    %v3194 = vshrl.u32 %v3193, 7
    %v3195 = vsub.s32 %v3192, %v3194
    %v3196 = vrot.slane %v3188, %v3195
    %v3198 = vunpack.c.l.s4 1934713408
    %v3199 = vunpack.c.0.s8 %v3198
    %v3200 = vlaneseq
    %v3201 = vshrl.u32 %v3200, 7
    %v3202 = vsub.s32 %v3199, %v3201
    %v3203 = vrot.slane %v3189, %v3202
    %v3204 = vcombine.low %v3148, %v3164
    %v3205 = vcombine.high %v3148, %v3164
    %v3207 = vunpack.c.l.s4 1934713408
    %v3208 = vunpack.c.0.s8 %v3207
    %v3209 = vlaneseq
    %v3210 = vshrl.u32 %v3209, 7
    %v3211 = vsub.s32 %v3208, %v3210
    %v3212 = vrot.slane %v3204, %v3211
    %v3214 = vunpack.c.l.s4 1934713408
    %v3215 = vunpack.c.0.s8 %v3214
    %v3216 = vlaneseq
    %v3217 = vshrl.u32 %v3216, 7
    %v3218 = vsub.s32 %v3215, %v3217
    %v3219 = vrot.slane %v3205, %v3218
    %v3220 = vcombine.low %v3155, %v3171
    %v3221 = vcombine.high %v3155, %v3171
    %v3223 = vunpack.c.l.s4 1934713408
    %v3224 = vunpack.c.0.s8 %v3223
    %v3225 = vlaneseq
    %v3226 = vshrl.u32 %v3225, 7
    %v3227 = vsub.s32 %v3224, %v3226
    %v3228 = vrot.slane %v3220, %v3227
    %v3230 = vunpack.c.l.s4 1934713408
    %v3231 = vunpack.c.0.s8 %v3230
    %v3232 = vlaneseq
    %v3233 = vshrl.u32 %v3232, 7
    %v3234 = vsub.s32 %v3231, %v3233
    %v3235 = vrot.slane %v3221, %v3234
    %v3236 = vcombine.low %v3180, %v3212
    %v3237 = vcombine.high %v3180, %v3212
    %v3238 = vcombine.low %v3187, %v3219
    %v3239 = vcombine.high %v3187, %v3219
    %v3240 = vcombine.low %v3196, %v3228
    %v3241 = vcombine.high %v3196, %v3228
    %v3242 = vcombine.low %v3203, %v3235
    %v3243 = vcombine.high %v3203, %v3235
    %v3244 = vld [vmem:[%s2] sm:$0x1]
    %v3246 = vlaneseq
    %v3247 = vshrl.u32 %v3246, 7
    %v3248 = vsub.s32 0, %v3247
    %v3249 = vrot.slane %v3244, %v3248
    %vm3251 = vcmask 64512
    %v3253 = vsel %vm3251, %v740, 0
    %v3256 = vsel %vm3251, %v1644, 0
    %v3259 = vsel %vm3251, %v1780, 0
    %3261 = vmatprep.subr.mxu0 0.0
    %3262 = vmatpush1.xpose.msra.mxu0 %v3256
    %3263 = vmatprep.subr.mxu0 0.0
    %3264 = vmatpush1.xpose.msra.mxu0 %v3259
    %3265 = vmatprep.subr.mxu0 0.0
    %3266 = vmatpush1.xpose.msra.mxu0 0.0
    %3267 = vmatprep.subr.mxu0 0.0
    %3268 = vmatpush1.xpose.msra.mxu0 0.0
    %3269 = vmatprep.subr.mxu0 0.0
    %3270 = vmatpush1.xpose.msra.mxu0 0.0
    %3271 = vmatprep.subr.mxu0 0.0
    %3272 = vmatpush1.xpose.msra.mxu0 0.0
    %3273 = vmatprep.subr.mxu0 0.0
    %3274 = vmatpush1.xpose.msra.mxu0 0.0
    %3275 = vmatprep.subr.mxu0 0.0
    %3276 = vmatpush1.xpose.msra.mxu0 0.0
    %3277 = vmatprep.subr.mxu0 0.0
    %3278 = vmatpush1.xpose.msra.mxu0 0.0
    %3279 = vmatprep.subr.mxu0 0.0
    %3280 = vmatpush1.xpose.msra.mxu0 0.0
    %3281 = vmatprep.subr.mxu0 0.0
    %3282 = vmatpush1.xpose.msra.mxu0 0.0
    %3283 = vmatprep.subr.mxu0 0.0
    %3284 = vmatpush1.xpose.msra.mxu0 0.0
    %3285 = vmatprep.subr.mxu0 0.0
    %3286 = vmatpush1.xpose.msra.mxu0 0.0
    %3287 = vmatprep.subr.mxu0 0.0
    %3288 = vmatpush1.xpose.msra.mxu0 0.0
    %3289 = vmatprep.subr.mxu0 0.0
    %3290 = vmatpush1.xpose.msra.mxu0 0.0
    %3291 = vmatprep.subr.mxu0 0.0
    %3292 = vmatpush1.xpose.msra.mxu0 0.0
    %3293 = vmatprep.subr.mxu0 0.0
    %3294 = vmatpush1.xpose.msra.mxu0 0.0
    %3295 = vmatprep.subr.mxu0 0.0
    %3296 = vmatpush1.xpose.msra.mxu0 0.0
    %3297 = vmatprep.subr.mxu0 0.0
    %3298 = vmatpush1.xpose.msra.mxu0 0.0
    %3299 = vmatprep.subr.mxu0 0.0
    %3300 = vmatpush1.xpose.msra.mxu0 0.0
    %3301 = vmatprep.subr.mxu0 0.0
    %3302 = vmatpush1.xpose.msra.mxu0 0.0
    %3303 = vmatprep.subr.mxu0 0.0
    %3304 = vmatpush1.xpose.msra.mxu0 0.0
    %3305 = vmatprep.subr.mxu0 0.0
    %3306 = vmatpush1.xpose.msra.mxu0 0.0
    %3307 = vmatprep.subr.mxu0 0.0
    %3308 = vmatpush1.xpose.msra.mxu0 0.0
    %3309 = vmatprep.subr.mxu0 0.0
    %3310 = vmatpush1.xpose.msra.mxu0 0.0
    %3311 = vmatprep.subr.mxu0 0.0
    %3312 = vmatpush1.xpose.msra.mxu0 0.0
    %3313 = vmatprep.subr.mxu0 0.0
    %3314 = vmatpush1.xpose.msra.mxu0 0.0
    %3315 = vmatprep.subr.mxu0 0.0
    %3316 = vmatpush1.xpose.msra.mxu0 0.0
    %3317 = vmatprep.subr.mxu0 0.0
    %3318 = vmatpush1.xpose.msra.mxu0 0.0
    %3319 = vmatprep.subr.mxu0 0.0
    %3320 = vmatpush1.xpose.msra.mxu0 0.0
    %3321 = vmatprep.subr.mxu0 0.0
    %3322 = vmatpush1.xpose.msra.mxu0 0.0
    %3323 = vmatprep.subr.mxu0 0.0
    %3324 = vmatpush1.xpose.msra.mxu0 0.0
    %3325 = vmatprep.mubr.f32.mxu0 0.0
    %3326 = vmatmul.mubr.f32.gmra.mrb[0].mxu0 %v3253
    %v3327 = vpop.f32.mrb[0].mxu0
    %v3328 = vadd.f32 %v3249, %v3327
    %v3329 = vpop.f32.mrb[0].mxu0
    %3330 = vdwg.mxu0
    %v3332 = vsel %vm3251, %v741, 0
    %v3335 = vsel %vm3251, %v1645, 0
    %v3338 = vsel %vm3251, %v1781, 0
    %3340 = vmatprep.subr.mxu0 0.0
    %3341 = vmatpush1.xpose.msra.mxu0 %v3335
    %3342 = vmatprep.subr.mxu0 0.0
    %3343 = vmatpush1.xpose.msra.mxu0 %v3338
    %3344 = vmatprep.subr.mxu0 0.0
    %3345 = vmatpush1.xpose.msra.mxu0 0.0
    %3346 = vmatprep.subr.mxu0 0.0
    %3347 = vmatpush1.xpose.msra.mxu0 0.0
    %3348 = vmatprep.subr.mxu0 0.0
    %3349 = vmatpush1.xpose.msra.mxu0 0.0
    %3350 = vmatprep.subr.mxu0 0.0
    %3351 = vmatpush1.xpose.msra.mxu0 0.0
    %3352 = vmatprep.subr.mxu0 0.0
    %3353 = vmatpush1.xpose.msra.mxu0 0.0
    %3354 = vmatprep.subr.mxu0 0.0
    %3355 = vmatpush1.xpose.msra.mxu0 0.0
    %3356 = vmatprep.subr.mxu0 0.0
    %3357 = vmatpush1.xpose.msra.mxu0 0.0
    %3358 = vmatprep.subr.mxu0 0.0
    %3359 = vmatpush1.xpose.msra.mxu0 0.0
    %3360 = vmatprep.subr.mxu0 0.0
    %3361 = vmatpush1.xpose.msra.mxu0 0.0
    %3362 = vmatprep.subr.mxu0 0.0
    %3363 = vmatpush1.xpose.msra.mxu0 0.0
    %3364 = vmatprep.subr.mxu0 0.0
    %3365 = vmatpush1.xpose.msra.mxu0 0.0
    %3366 = vmatprep.subr.mxu0 0.0
    %3367 = vmatpush1.xpose.msra.mxu0 0.0
    %3368 = vmatprep.subr.mxu0 0.0
    %3369 = vmatpush1.xpose.msra.mxu0 0.0
    %3370 = vmatprep.subr.mxu0 0.0
    %3371 = vmatpush1.xpose.msra.mxu0 0.0
    %3372 = vmatprep.subr.mxu0 0.0
    %3373 = vmatpush1.xpose.msra.mxu0 0.0
    %3374 = vmatprep.subr.mxu0 0.0
    %3375 = vmatpush1.xpose.msra.mxu0 0.0
    %3376 = vmatprep.subr.mxu0 0.0
    %3377 = vmatpush1.xpose.msra.mxu0 0.0
    %3378 = vmatprep.subr.mxu0 0.0
    %3379 = vmatpush1.xpose.msra.mxu0 0.0
    %3380 = vmatprep.subr.mxu0 0.0
    %3381 = vmatpush1.xpose.msra.mxu0 0.0
    %3382 = vmatprep.subr.mxu0 0.0
    %3383 = vmatpush1.xpose.msra.mxu0 0.0
    %3384 = vmatprep.subr.mxu0 0.0
    %3385 = vmatpush1.xpose.msra.mxu0 0.0
    %3386 = vmatprep.subr.mxu0 0.0
    %3387 = vmatpush1.xpose.msra.mxu0 0.0
    %3388 = vmatprep.subr.mxu0 0.0
    %3389 = vmatpush1.xpose.msra.mxu0 0.0
    %3390 = vmatprep.subr.mxu0 0.0
    %3391 = vmatpush1.xpose.msra.mxu0 0.0
    %3392 = vmatprep.subr.mxu0 0.0
    %3393 = vmatpush1.xpose.msra.mxu0 0.0
    %3394 = vmatprep.subr.mxu0 0.0
    %3395 = vmatpush1.xpose.msra.mxu0 0.0
    %3396 = vmatprep.subr.mxu0 0.0
    %3397 = vmatpush1.xpose.msra.mxu0 0.0
    %3398 = vmatprep.subr.mxu0 0.0
    %3399 = vmatpush1.xpose.msra.mxu0 0.0
    %3400 = vmatprep.subr.mxu0 0.0
    %3401 = vmatpush1.xpose.msra.mxu0 0.0
    %3402 = vmatprep.subr.mxu0 0.0
    %3403 = vmatpush1.xpose.msra.mxu0 0.0
    %3404 = vmatprep.mubr.f32.mxu0 0.0
    %3405 = vmatmul.mubr.f32.gmra.mrb[0].mxu0 %v3332
    %v3406 = vpop.f32.mrb[0].mxu0
    %v3407 = vadd.f32 %v3249, %v3406
    %v3408 = vpop.f32.mrb[0].mxu0
    %3409 = vdwg.mxu0
    %v3411 = vsel %vm3251, %v742, 0
    %v3414 = vsel %vm3251, %v1646, 0
    %v3417 = vsel %vm3251, %v1782, 0
    %3419 = vmatprep.subr.mxu0 0.0
    %3420 = vmatpush1.xpose.msra.mxu0 %v3414
    %3421 = vmatprep.subr.mxu0 0.0
    %3422 = vmatpush1.xpose.msra.mxu0 %v3417
    %3423 = vmatprep.subr.mxu0 0.0
    %3424 = vmatpush1.xpose.msra.mxu0 0.0
    %3425 = vmatprep.subr.mxu0 0.0
    %3426 = vmatpush1.xpose.msra.mxu0 0.0
    %3427 = vmatprep.subr.mxu0 0.0
    %3428 = vmatpush1.xpose.msra.mxu0 0.0
    %3429 = vmatprep.subr.mxu0 0.0
    %3430 = vmatpush1.xpose.msra.mxu0 0.0
    %3431 = vmatprep.subr.mxu0 0.0
    %3432 = vmatpush1.xpose.msra.mxu0 0.0
    %3433 = vmatprep.subr.mxu0 0.0
    %3434 = vmatpush1.xpose.msra.mxu0 0.0
    %3435 = vmatprep.subr.mxu0 0.0
    %3436 = vmatpush1.xpose.msra.mxu0 0.0
    %3437 = vmatprep.subr.mxu0 0.0
    %3438 = vmatpush1.xpose.msra.mxu0 0.0
    %3439 = vmatprep.subr.mxu0 0.0
    %3440 = vmatpush1.xpose.msra.mxu0 0.0
    %3441 = vmatprep.subr.mxu0 0.0
    %3442 = vmatpush1.xpose.msra.mxu0 0.0
    %3443 = vmatprep.subr.mxu0 0.0
    %3444 = vmatpush1.xpose.msra.mxu0 0.0
    %3445 = vmatprep.subr.mxu0 0.0
    %3446 = vmatpush1.xpose.msra.mxu0 0.0
    %3447 = vmatprep.subr.mxu0 0.0
    %3448 = vmatpush1.xpose.msra.mxu0 0.0
    %3449 = vmatprep.subr.mxu0 0.0
    %3450 = vmatpush1.xpose.msra.mxu0 0.0
    %3451 = vmatprep.subr.mxu0 0.0
    %3452 = vmatpush1.xpose.msra.mxu0 0.0
    %3453 = vmatprep.subr.mxu0 0.0
    %3454 = vmatpush1.xpose.msra.mxu0 0.0
    %3455 = vmatprep.subr.mxu0 0.0
    %3456 = vmatpush1.xpose.msra.mxu0 0.0
    %3457 = vmatprep.subr.mxu0 0.0
    %3458 = vmatpush1.xpose.msra.mxu0 0.0
    %3459 = vmatprep.subr.mxu0 0.0
    %3460 = vmatpush1.xpose.msra.mxu0 0.0
    %3461 = vmatprep.subr.mxu0 0.0
    %3462 = vmatpush1.xpose.msra.mxu0 0.0
    %3463 = vmatprep.subr.mxu0 0.0
    %3464 = vmatpush1.xpose.msra.mxu0 0.0
    %3465 = vmatprep.subr.mxu0 0.0
    %3466 = vmatpush1.xpose.msra.mxu0 0.0
    %3467 = vmatprep.subr.mxu0 0.0
    %3468 = vmatpush1.xpose.msra.mxu0 0.0
    %3469 = vmatprep.subr.mxu0 0.0
    %3470 = vmatpush1.xpose.msra.mxu0 0.0
    %3471 = vmatprep.subr.mxu0 0.0
    %3472 = vmatpush1.xpose.msra.mxu0 0.0
    %3473 = vmatprep.subr.mxu0 0.0
    %3474 = vmatpush1.xpose.msra.mxu0 0.0
    %3475 = vmatprep.subr.mxu0 0.0
    %3476 = vmatpush1.xpose.msra.mxu0 0.0
    %3477 = vmatprep.subr.mxu0 0.0
    %3478 = vmatpush1.xpose.msra.mxu0 0.0
    %3479 = vmatprep.subr.mxu0 0.0
    %3480 = vmatpush1.xpose.msra.mxu0 0.0
    %3481 = vmatprep.subr.mxu0 0.0
    %3482 = vmatpush1.xpose.msra.mxu0 0.0
    %3483 = vmatprep.mubr.f32.mxu0 0.0
    %3484 = vmatmul.mubr.f32.gmra.mrb[0].mxu0 %v3411
    %v3485 = vpop.f32.mrb[0].mxu0
    %v3486 = vadd.f32 %v3249, %v3485
    %v3487 = vpop.f32.mrb[0].mxu0
    %3488 = vdwg.mxu0
    %v3490 = vsel %vm3251, %v743, 0
    %v3493 = vsel %vm3251, %v1647, 0
    %v3496 = vsel %vm3251, %v1783, 0
    %3498 = vmatprep.subr.mxu0 0.0
    %3499 = vmatpush1.xpose.msra.mxu0 %v3493
    %3500 = vmatprep.subr.mxu0 0.0
    %3501 = vmatpush1.xpose.msra.mxu0 %v3496
    %3502 = vmatprep.subr.mxu0 0.0
    %3503 = vmatpush1.xpose.msra.mxu0 0.0
    %3504 = vmatprep.subr.mxu0 0.0
    %3505 = vmatpush1.xpose.msra.mxu0 0.0
    %3506 = vmatprep.subr.mxu0 0.0
    %3507 = vmatpush1.xpose.msra.mxu0 0.0
    %3508 = vmatprep.subr.mxu0 0.0
    %3509 = vmatpush1.xpose.msra.mxu0 0.0
    %3510 = vmatprep.subr.mxu0 0.0
    %3511 = vmatpush1.xpose.msra.mxu0 0.0
    %3512 = vmatprep.subr.mxu0 0.0
    %3513 = vmatpush1.xpose.msra.mxu0 0.0
    %3514 = vmatprep.subr.mxu0 0.0
    %3515 = vmatpush1.xpose.msra.mxu0 0.0
    %3516 = vmatprep.subr.mxu0 0.0
    %3517 = vmatpush1.xpose.msra.mxu0 0.0
    %3518 = vmatprep.subr.mxu0 0.0
    %3519 = vmatpush1.xpose.msra.mxu0 0.0
    %3520 = vmatprep.subr.mxu0 0.0
    %3521 = vmatpush1.xpose.msra.mxu0 0.0
    %3522 = vmatprep.subr.mxu0 0.0
    %3523 = vmatpush1.xpose.msra.mxu0 0.0
    %3524 = vmatprep.subr.mxu0 0.0
    %3525 = vmatpush1.xpose.msra.mxu0 0.0
    %3526 = vmatprep.subr.mxu0 0.0
    %3527 = vmatpush1.xpose.msra.mxu0 0.0
    %3528 = vmatprep.subr.mxu0 0.0
    %3529 = vmatpush1.xpose.msra.mxu0 0.0
    %3530 = vmatprep.subr.mxu0 0.0
    %3531 = vmatpush1.xpose.msra.mxu0 0.0
    %3532 = vmatprep.subr.mxu0 0.0
    %3533 = vmatpush1.xpose.msra.mxu0 0.0
    %3534 = vmatprep.subr.mxu0 0.0
    %3535 = vmatpush1.xpose.msra.mxu0 0.0
    %3536 = vmatprep.subr.mxu0 0.0
    %3537 = vmatpush1.xpose.msra.mxu0 0.0
    %3538 = vmatprep.subr.mxu0 0.0
    %3539 = vmatpush1.xpose.msra.mxu0 0.0
    %3540 = vmatprep.subr.mxu0 0.0
    %3541 = vmatpush1.xpose.msra.mxu0 0.0
    %3542 = vmatprep.subr.mxu0 0.0
    %3543 = vmatpush1.xpose.msra.mxu0 0.0
    %3544 = vmatprep.subr.mxu0 0.0
    %3545 = vmatpush1.xpose.msra.mxu0 0.0
    %3546 = vmatprep.subr.mxu0 0.0
    %3547 = vmatpush1.xpose.msra.mxu0 0.0
    %3548 = vmatprep.subr.mxu0 0.0
    %3549 = vmatpush1.xpose.msra.mxu0 0.0
    %3550 = vmatprep.subr.mxu0 0.0
    %3551 = vmatpush1.xpose.msra.mxu0 0.0
    %3552 = vmatprep.subr.mxu0 0.0
    %3553 = vmatpush1.xpose.msra.mxu0 0.0
    %3554 = vmatprep.subr.mxu0 0.0
    %3555 = vmatpush1.xpose.msra.mxu0 0.0
    %3556 = vmatprep.subr.mxu0 0.0
    %3557 = vmatpush1.xpose.msra.mxu0 0.0
    %3558 = vmatprep.subr.mxu0 0.0
    %3559 = vmatpush1.xpose.msra.mxu0 0.0
    %3560 = vmatprep.subr.mxu0 0.0
    %3561 = vmatpush1.xpose.msra.mxu0 0.0
    %3562 = vmatprep.mubr.f32.mxu0 0.0
    %3563 = vmatmul.mubr.f32.gmra.mrb[0].mxu0 %v3490
    %v3564 = vpop.f32.mrb[0].mxu0
    %v3565 = vadd.f32 %v3249, %v3564
    %v3566 = vpop.f32.mrb[0].mxu0
    %3567 = vdwg.mxu0
    %v3569 = vsel %vm3251, %v744, 0
    %v3572 = vsel %vm3251, %v1648, 0
    %v3575 = vsel %vm3251, %v1784, 0
    %3577 = vmatprep.subr.mxu0 0.0
    %3578 = vmatpush1.xpose.msra.mxu0 %v3572
    %3579 = vmatprep.subr.mxu0 0.0
    %3580 = vmatpush1.xpose.msra.mxu0 %v3575
    %3581 = vmatprep.subr.mxu0 0.0
    %3582 = vmatpush1.xpose.msra.mxu0 0.0
    %3583 = vmatprep.subr.mxu0 0.0
    %3584 = vmatpush1.xpose.msra.mxu0 0.0
    %3585 = vmatprep.subr.mxu0 0.0
    %3586 = vmatpush1.xpose.msra.mxu0 0.0
    %3587 = vmatprep.subr.mxu0 0.0
    %3588 = vmatpush1.xpose.msra.mxu0 0.0
    %3589 = vmatprep.subr.mxu0 0.0
    %3590 = vmatpush1.xpose.msra.mxu0 0.0
    %3591 = vmatprep.subr.mxu0 0.0
    %3592 = vmatpush1.xpose.msra.mxu0 0.0
    %3593 = vmatprep.subr.mxu0 0.0
    %3594 = vmatpush1.xpose.msra.mxu0 0.0
    %3595 = vmatprep.subr.mxu0 0.0
    %3596 = vmatpush1.xpose.msra.mxu0 0.0
    %3597 = vmatprep.subr.mxu0 0.0
    %3598 = vmatpush1.xpose.msra.mxu0 0.0
    %3599 = vmatprep.subr.mxu0 0.0
    %3600 = vmatpush1.xpose.msra.mxu0 0.0
    %3601 = vmatprep.subr.mxu0 0.0
    %3602 = vmatpush1.xpose.msra.mxu0 0.0
    %3603 = vmatprep.subr.mxu0 0.0
    %3604 = vmatpush1.xpose.msra.mxu0 0.0
    %3605 = vmatprep.subr.mxu0 0.0
    %3606 = vmatpush1.xpose.msra.mxu0 0.0
    %3607 = vmatprep.subr.mxu0 0.0
    %3608 = vmatpush1.xpose.msra.mxu0 0.0
    %3609 = vmatprep.subr.mxu0 0.0
    %3610 = vmatpush1.xpose.msra.mxu0 0.0
    %3611 = vmatprep.subr.mxu0 0.0
    %3612 = vmatpush1.xpose.msra.mxu0 0.0
    %3613 = vmatprep.subr.mxu0 0.0
    %3614 = vmatpush1.xpose.msra.mxu0 0.0
    %3615 = vmatprep.subr.mxu0 0.0
    %3616 = vmatpush1.xpose.msra.mxu0 0.0
    %3617 = vmatprep.subr.mxu0 0.0
    %3618 = vmatpush1.xpose.msra.mxu0 0.0
    %3619 = vmatprep.subr.mxu0 0.0
    %3620 = vmatpush1.xpose.msra.mxu0 0.0
    %3621 = vmatprep.subr.mxu0 0.0
    %3622 = vmatpush1.xpose.msra.mxu0 0.0
    %3623 = vmatprep.subr.mxu0 0.0
    %3624 = vmatpush1.xpose.msra.mxu0 0.0
    %3625 = vmatprep.subr.mxu0 0.0
    %3626 = vmatpush1.xpose.msra.mxu0 0.0
    %3627 = vmatprep.subr.mxu0 0.0
    %3628 = vmatpush1.xpose.msra.mxu0 0.0
    %3629 = vmatprep.subr.mxu0 0.0
    %3630 = vmatpush1.xpose.msra.mxu0 0.0
    %3631 = vmatprep.subr.mxu0 0.0
    %3632 = vmatpush1.xpose.msra.mxu0 0.0
    %3633 = vmatprep.subr.mxu0 0.0
    %3634 = vmatpush1.xpose.msra.mxu0 0.0
    %3635 = vmatprep.subr.mxu0 0.0
    %3636 = vmatpush1.xpose.msra.mxu0 0.0
    %3637 = vmatprep.subr.mxu0 0.0
    %3638 = vmatpush1.xpose.msra.mxu0 0.0
    %3639 = vmatprep.subr.mxu0 0.0
    %3640 = vmatpush1.xpose.msra.mxu0 0.0
    %3641 = vmatprep.mubr.f32.mxu0 0.0
    %3642 = vmatmul.mubr.f32.gmra.mrb[0].mxu0 %v3569
    %v3643 = vpop.f32.mrb[0].mxu0
    %v3644 = vadd.f32 %v3249, %v3643
    %v3645 = vpop.f32.mrb[0].mxu0
    %3646 = vdwg.mxu0
    %v3648 = vsel %vm3251, %v745, 0
    %v3651 = vsel %vm3251, %v1649, 0
    %v3654 = vsel %vm3251, %v1785, 0
    %3656 = vmatprep.subr.mxu0 0.0
    %3657 = vmatpush1.xpose.msra.mxu0 %v3651
    %3658 = vmatprep.subr.mxu0 0.0
    %3659 = vmatpush1.xpose.msra.mxu0 %v3654
    %3660 = vmatprep.subr.mxu0 0.0
    %3661 = vmatpush1.xpose.msra.mxu0 0.0
    %3662 = vmatprep.subr.mxu0 0.0
    %3663 = vmatpush1.xpose.msra.mxu0 0.0
    %3664 = vmatprep.subr.mxu0 0.0
    %3665 = vmatpush1.xpose.msra.mxu0 0.0
    %3666 = vmatprep.subr.mxu0 0.0
    %3667 = vmatpush1.xpose.msra.mxu0 0.0
    %3668 = vmatprep.subr.mxu0 0.0
    %3669 = vmatpush1.xpose.msra.mxu0 0.0
    %3670 = vmatprep.subr.mxu0 0.0
    %3671 = vmatpush1.xpose.msra.mxu0 0.0
    %3672 = vmatprep.subr.mxu0 0.0
    %3673 = vmatpush1.xpose.msra.mxu0 0.0
    %3674 = vmatprep.subr.mxu0 0.0
    %3675 = vmatpush1.xpose.msra.mxu0 0.0
    %3676 = vmatprep.subr.mxu0 0.0
    %3677 = vmatpush1.xpose.msra.mxu0 0.0
    %3678 = vmatprep.subr.mxu0 0.0
    %3679 = vmatpush1.xpose.msra.mxu0 0.0
    %3680 = vmatprep.subr.mxu0 0.0
    %3681 = vmatpush1.xpose.msra.mxu0 0.0
    %3682 = vmatprep.subr.mxu0 0.0
    %3683 = vmatpush1.xpose.msra.mxu0 0.0
    %3684 = vmatprep.subr.mxu0 0.0
    %3685 = vmatpush1.xpose.msra.mxu0 0.0
    %3686 = vmatprep.subr.mxu0 0.0
    %3687 = vmatpush1.xpose.msra.mxu0 0.0
    %3688 = vmatprep.subr.mxu0 0.0
    %3689 = vmatpush1.xpose.msra.mxu0 0.0
    %3690 = vmatprep.subr.mxu0 0.0
    %3691 = vmatpush1.xpose.msra.mxu0 0.0
    %3692 = vmatprep.subr.mxu0 0.0
    %3693 = vmatpush1.xpose.msra.mxu0 0.0
    %3694 = vmatprep.subr.mxu0 0.0
    %3695 = vmatpush1.xpose.msra.mxu0 0.0
    %3696 = vmatprep.subr.mxu0 0.0
    %3697 = vmatpush1.xpose.msra.mxu0 0.0
    %3698 = vmatprep.subr.mxu0 0.0
    %3699 = vmatpush1.xpose.msra.mxu0 0.0
    %3700 = vmatprep.subr.mxu0 0.0
    %3701 = vmatpush1.xpose.msra.mxu0 0.0
    %3702 = vmatprep.subr.mxu0 0.0
    %3703 = vmatpush1.xpose.msra.mxu0 0.0
    %3704 = vmatprep.subr.mxu0 0.0
    %3705 = vmatpush1.xpose.msra.mxu0 0.0
    %3706 = vmatprep.subr.mxu0 0.0
    %3707 = vmatpush1.xpose.msra.mxu0 0.0
    %3708 = vmatprep.subr.mxu0 0.0
    %3709 = vmatpush1.xpose.msra.mxu0 0.0
    %3710 = vmatprep.subr.mxu0 0.0
    %3711 = vmatpush1.xpose.msra.mxu0 0.0
    %3712 = vmatprep.subr.mxu0 0.0
    %3713 = vmatpush1.xpose.msra.mxu0 0.0
    %3714 = vmatprep.subr.mxu0 0.0
    %3715 = vmatpush1.xpose.msra.mxu0 0.0
    %3716 = vmatprep.subr.mxu0 0.0
    %3717 = vmatpush1.xpose.msra.mxu0 0.0
    %3718 = vmatprep.subr.mxu0 0.0
    %3719 = vmatpush1.xpose.msra.mxu0 0.0
    %3720 = vmatprep.mubr.f32.mxu0 0.0
    %3721 = vmatmul.mubr.f32.gmra.mrb[0].mxu0 %v3648
    %v3722 = vpop.f32.mrb[0].mxu0
    %v3723 = vadd.f32 %v3249, %v3722
    %v3724 = vpop.f32.mrb[0].mxu0
    %3725 = vdwg.mxu0
    %v3727 = vsel %vm3251, %v746, 0
    %v3730 = vsel %vm3251, %v1650, 0
    %v3733 = vsel %vm3251, %v1786, 0
    %3735 = vmatprep.subr.mxu0 0.0
    %3736 = vmatpush1.xpose.msra.mxu0 %v3730
    %3737 = vmatprep.subr.mxu0 0.0
    %3738 = vmatpush1.xpose.msra.mxu0 %v3733
    %3739 = vmatprep.subr.mxu0 0.0
    %3740 = vmatpush1.xpose.msra.mxu0 0.0
    %3741 = vmatprep.subr.mxu0 0.0
    %3742 = vmatpush1.xpose.msra.mxu0 0.0
    %3743 = vmatprep.subr.mxu0 0.0
    %3744 = vmatpush1.xpose.msra.mxu0 0.0
    %3745 = vmatprep.subr.mxu0 0.0
    %3746 = vmatpush1.xpose.msra.mxu0 0.0
    %3747 = vmatprep.subr.mxu0 0.0
    %3748 = vmatpush1.xpose.msra.mxu0 0.0
    %3749 = vmatprep.subr.mxu0 0.0
    %3750 = vmatpush1.xpose.msra.mxu0 0.0
    %3751 = vmatprep.subr.mxu0 0.0
    %3752 = vmatpush1.xpose.msra.mxu0 0.0
    %3753 = vmatprep.subr.mxu0 0.0
    %3754 = vmatpush1.xpose.msra.mxu0 0.0
    %3755 = vmatprep.subr.mxu0 0.0
    %3756 = vmatpush1.xpose.msra.mxu0 0.0
    %3757 = vmatprep.subr.mxu0 0.0
    %3758 = vmatpush1.xpose.msra.mxu0 0.0
    %3759 = vmatprep.subr.mxu0 0.0
    %3760 = vmatpush1.xpose.msra.mxu0 0.0
    %3761 = vmatprep.subr.mxu0 0.0
    %3762 = vmatpush1.xpose.msra.mxu0 0.0
    %3763 = vmatprep.subr.mxu0 0.0
    %3764 = vmatpush1.xpose.msra.mxu0 0.0
    %3765 = vmatprep.subr.mxu0 0.0
    %3766 = vmatpush1.xpose.msra.mxu0 0.0
    %3767 = vmatprep.subr.mxu0 0.0
    %3768 = vmatpush1.xpose.msra.mxu0 0.0
    %3769 = vmatprep.subr.mxu0 0.0
    %3770 = vmatpush1.xpose.msra.mxu0 0.0
    %3771 = vmatprep.subr.mxu0 0.0
    %3772 = vmatpush1.xpose.msra.mxu0 0.0
    %3773 = vmatprep.subr.mxu0 0.0
    %3774 = vmatpush1.xpose.msra.mxu0 0.0
    %3775 = vmatprep.subr.mxu0 0.0
    %3776 = vmatpush1.xpose.msra.mxu0 0.0
    %3777 = vmatprep.subr.mxu0 0.0
    %3778 = vmatpush1.xpose.msra.mxu0 0.0
    %3779 = vmatprep.subr.mxu0 0.0
    %3780 = vmatpush1.xpose.msra.mxu0 0.0
    %3781 = vmatprep.subr.mxu0 0.0
    %3782 = vmatpush1.xpose.msra.mxu0 0.0
    %3783 = vmatprep.subr.mxu0 0.0
    %3784 = vmatpush1.xpose.msra.mxu0 0.0
    %3785 = vmatprep.subr.mxu0 0.0
    %3786 = vmatpush1.xpose.msra.mxu0 0.0
    %3787 = vmatprep.subr.mxu0 0.0
    %3788 = vmatpush1.xpose.msra.mxu0 0.0
    %3789 = vmatprep.subr.mxu0 0.0
    %3790 = vmatpush1.xpose.msra.mxu0 0.0
    %3791 = vmatprep.subr.mxu0 0.0
    %3792 = vmatpush1.xpose.msra.mxu0 0.0
    %3793 = vmatprep.subr.mxu0 0.0
    %3794 = vmatpush1.xpose.msra.mxu0 0.0
    %3795 = vmatprep.subr.mxu0 0.0
    %3796 = vmatpush1.xpose.msra.mxu0 0.0
    %3797 = vmatprep.subr.mxu0 0.0
    %3798 = vmatpush1.xpose.msra.mxu0 0.0
    %3799 = vmatprep.mubr.f32.mxu0 0.0
    %3800 = vmatmul.mubr.f32.gmra.mrb[0].mxu0 %v3727
    %v3801 = vpop.f32.mrb[0].mxu0
    %v3802 = vadd.f32 %v3249, %v3801
    %v3803 = vpop.f32.mrb[0].mxu0
    %3804 = vdwg.mxu0
    %v3806 = vsel %vm3251, %v747, 0
    %v3809 = vsel %vm3251, %v1651, 0
    %v3812 = vsel %vm3251, %v1787, 0
    %3814 = vmatprep.subr.mxu0 0.0
    %3815 = vmatpush1.xpose.msra.mxu0 %v3809
    %3816 = vmatprep.subr.mxu0 0.0
    %3817 = vmatpush1.xpose.msra.mxu0 %v3812
    %3818 = vmatprep.subr.mxu0 0.0
    %3819 = vmatpush1.xpose.msra.mxu0 0.0
    %3820 = vmatprep.subr.mxu0 0.0
    %3821 = vmatpush1.xpose.msra.mxu0 0.0
    %3822 = vmatprep.subr.mxu0 0.0
    %3823 = vmatpush1.xpose.msra.mxu0 0.0
    %3824 = vmatprep.subr.mxu0 0.0
    %3825 = vmatpush1.xpose.msra.mxu0 0.0
    %3826 = vmatprep.subr.mxu0 0.0
    %3827 = vmatpush1.xpose.msra.mxu0 0.0
    %3828 = vmatprep.subr.mxu0 0.0
    %3829 = vmatpush1.xpose.msra.mxu0 0.0
    %3830 = vmatprep.subr.mxu0 0.0
    %3831 = vmatpush1.xpose.msra.mxu0 0.0
    %3832 = vmatprep.subr.mxu0 0.0
    %3833 = vmatpush1.xpose.msra.mxu0 0.0
    %3834 = vmatprep.subr.mxu0 0.0
    %3835 = vmatpush1.xpose.msra.mxu0 0.0
    %3836 = vmatprep.subr.mxu0 0.0
    %3837 = vmatpush1.xpose.msra.mxu0 0.0
    %3838 = vmatprep.subr.mxu0 0.0
    %3839 = vmatpush1.xpose.msra.mxu0 0.0
    %3840 = vmatprep.subr.mxu0 0.0
    %3841 = vmatpush1.xpose.msra.mxu0 0.0
    %3842 = vmatprep.subr.mxu0 0.0
    %3843 = vmatpush1.xpose.msra.mxu0 0.0
    %3844 = vmatprep.subr.mxu0 0.0
    %3845 = vmatpush1.xpose.msra.mxu0 0.0
    %3846 = vmatprep.subr.mxu0 0.0
    %3847 = vmatpush1.xpose.msra.mxu0 0.0
    %3848 = vmatprep.subr.mxu0 0.0
    %3849 = vmatpush1.xpose.msra.mxu0 0.0
    %3850 = vmatprep.subr.mxu0 0.0
    %3851 = vmatpush1.xpose.msra.mxu0 0.0
    %3852 = vmatprep.subr.mxu0 0.0
    %3853 = vmatpush1.xpose.msra.mxu0 0.0
    %3854 = vmatprep.subr.mxu0 0.0
    %3855 = vmatpush1.xpose.msra.mxu0 0.0
    %3856 = vmatprep.subr.mxu0 0.0
    %3857 = vmatpush1.xpose.msra.mxu0 0.0
    %3858 = vmatprep.subr.mxu0 0.0
    %3859 = vmatpush1.xpose.msra.mxu0 0.0
    %3860 = vmatprep.subr.mxu0 0.0
    %3861 = vmatpush1.xpose.msra.mxu0 0.0
    %3862 = vmatprep.subr.mxu0 0.0
    %3863 = vmatpush1.xpose.msra.mxu0 0.0
    %3864 = vmatprep.subr.mxu0 0.0
    %3865 = vmatpush1.xpose.msra.mxu0 0.0
    %3866 = vmatprep.subr.mxu0 0.0
    %3867 = vmatpush1.xpose.msra.mxu0 0.0
    %3868 = vmatprep.subr.mxu0 0.0
    %3869 = vmatpush1.xpose.msra.mxu0 0.0
    %3870 = vmatprep.subr.mxu0 0.0
    %3871 = vmatpush1.xpose.msra.mxu0 0.0
    %3872 = vmatprep.subr.mxu0 0.0
    %3873 = vmatpush1.xpose.msra.mxu0 0.0
    %3874 = vmatprep.subr.mxu0 0.0
    %3875 = vmatpush1.xpose.msra.mxu0 0.0
    %3876 = vmatprep.subr.mxu0 0.0
    %3877 = vmatpush1.xpose.msra.mxu0 0.0
    %3878 = vmatprep.mubr.f32.mxu0 0.0
    %3879 = vmatmul.mubr.f32.gmra.mrb[0].mxu0 %v3806
    %v3880 = vpop.f32.mrb[0].mxu0
    %v3881 = vadd.f32 %v3249, %v3880
    %v3882 = vpop.f32.mrb[0].mxu0
    %3883 = vdwg.mxu0
    %vm3884 = vcmask 130048
    %v3885 = vsel %vm3884, %v3328, -inf
    %3886 = vmax.xlane.f32.xlu0 %v3885
    %v3887 = vpop.xlane.xlu0 %3886
    %v3888 = vsel %vm3884, %v3407, -inf
    %3889 = vmax.xlane.f32.xlu0 %v3888
    %v3890 = vpop.xlane.xlu0 %3889
    %v3891 = vsel %vm3884, %v3486, -inf
    %3892 = vmax.xlane.f32.xlu0 %v3891
    %v3893 = vpop.xlane.xlu0 %3892
    %v3894 = vsel %vm3884, %v3565, -inf
    %3895 = vmax.xlane.f32.xlu0 %v3894
    %v3896 = vpop.xlane.xlu0 %3895
    %v3897 = vsel %vm3884, %v3644, -inf
    %3898 = vmax.xlane.f32.xlu0 %v3897
    %v3899 = vpop.xlane.xlu0 %3898
    %v3900 = vsel %vm3884, %v3723, -inf
    %3901 = vmax.xlane.f32.xlu0 %v3900
    %v3902 = vpop.xlane.xlu0 %3901
    %v3903 = vsel %vm3884, %v3802, -inf
    %3904 = vmax.xlane.f32.xlu0 %v3903
    %v3905 = vpop.xlane.xlu0 %3904
    %v3906 = vsel %vm3884, %v3881, -inf
    %3907 = vmax.xlane.f32.xlu0 %v3906
    %v3908 = vpop.xlane.xlu0 %3907
    %v3909 = vsub.f32 %v3328, %v3887
    %v3910 = vsub.f32 %v3407, %v3890
    %v3911 = vsub.f32 %v3486, %v3893
    %v3912 = vsub.f32 %v3565, %v3896
    %v3913 = vsub.f32 %v3644, %v3899
    %v3914 = vsub.f32 %v3723, %v3902
    %v3915 = vsub.f32 %v3802, %v3905
    %v3916 = vsub.f32 %v3881, %v3908
    %v3917 = vmul.f32 %v3909, 1.442695
    %v3918 = vpow.pop %v3917
    %v3919 = vmul.f32 %v3910, 1.442695
    %v3920 = vpow.pop %v3919
    %v3921 = vmul.f32 %v3911, 1.442695
    %v3922 = vpow.pop %v3921
    %v3923 = vmul.f32 %v3912, 1.442695
    %v3924 = vpow.pop %v3923
    %v3925 = vmul.f32 %v3913, 1.442695
    %v3926 = vpow.pop %v3925
    %v3927 = vmul.f32 %v3914, 1.442695
    %v3928 = vpow.pop %v3927
    %v3929 = vmul.f32 %v3915, 1.442695
    %v3930 = vpow.pop %v3929
    %v3931 = vmul.f32 %v3916, 1.442695
    %v3932 = vpow.pop %v3931
    %v3933 = vsel %vm3884, %v3918, 0.0
    %3934 = vadd.xlane.f32.xlu0 %v3933
    %v3935 = vpop.xlane.xlu0 %3934
    %v3936 = vsel %vm3884, %v3920, 0.0
    %3937 = vadd.xlane.f32.xlu0 %v3936
    %v3938 = vpop.xlane.xlu0 %3937
    %v3939 = vsel %vm3884, %v3922, 0.0
    %3940 = vadd.xlane.f32.xlu0 %v3939
    %v3941 = vpop.xlane.xlu0 %3940
    %v3942 = vsel %vm3884, %v3924, 0.0
    %3943 = vadd.xlane.f32.xlu0 %v3942
    %v3944 = vpop.xlane.xlu0 %3943
    %v3945 = vsel %vm3884, %v3926, 0.0
    %3946 = vadd.xlane.f32.xlu0 %v3945
    %v3947 = vpop.xlane.xlu0 %3946
    %v3948 = vsel %vm3884, %v3928, 0.0
    %3949 = vadd.xlane.f32.xlu0 %v3948
    %v3950 = vpop.xlane.xlu0 %3949
    %v3951 = vsel %vm3884, %v3930, 0.0
    %3952 = vadd.xlane.f32.xlu0 %v3951
    %v3953 = vpop.xlane.xlu0 %3952
    %v3954 = vsel %vm3884, %v3932, 0.0
    %3955 = vadd.xlane.f32.xlu0 %v3954
    %v3956 = vpop.xlane.xlu0 %3955
    %v3957 = vrcp.pop %v3935
    %v3958 = vrcp.pop %v3938
    %v3959 = vrcp.pop %v3941
    %v3960 = vrcp.pop %v3944
    %v3961 = vrcp.pop %v3947
    %v3962 = vrcp.pop %v3950
    %v3963 = vrcp.pop %v3953
    %v3964 = vrcp.pop %v3956
    %v3965 = vmul.f32 %v3918, %v3957
    %v3966 = vmul.f32 %v3920, %v3958
    %v3967 = vmul.f32 %v3922, %v3959
    %v3968 = vmul.f32 %v3924, %v3960
    %v3969 = vmul.f32 %v3926, %v3961
    %v3970 = vmul.f32 %v3928, %v3962
    %v3971 = vmul.f32 %v3930, %v3963
    %v3972 = vmul.f32 %v3932, %v3964
    %v3974 = vsel %vm3884, %v3965, 0
    %3976 = vmatprep.subr.mxu0 0.0
    %3977 = vmatpush1.msra.mxu0 %v2828
    %3978 = vmatprep.subr.mxu0 0.0
    %3979 = vmatpush1.msra.mxu0 %v2964
    %3980 = vmatprep.subr.mxu0 0.0
    %3981 = vmatpush1.msra.mxu0 0.0
    %3982 = vmatprep.subr.mxu0 0.0
    %3983 = vmatpush1.msra.mxu0 0.0
    %3984 = vmatprep.subr.mxu0 0.0
    %3985 = vmatpush1.msra.mxu0 0.0
    %3986 = vmatprep.subr.mxu0 0.0
    %3987 = vmatpush1.msra.mxu0 0.0
    %3988 = vmatprep.subr.mxu0 0.0
    %3989 = vmatpush1.msra.mxu0 0.0
    %3990 = vmatprep.subr.mxu0 0.0
    %3991 = vmatpush1.msra.mxu0 0.0
    %3992 = vmatprep.subr.mxu0 0.0
    %3993 = vmatpush1.msra.mxu0 0.0
    %3994 = vmatprep.subr.mxu0 0.0
    %3995 = vmatpush1.msra.mxu0 0.0
    %3996 = vmatprep.subr.mxu0 0.0
    %3997 = vmatpush1.msra.mxu0 0.0
    %3998 = vmatprep.subr.mxu0 0.0
    %3999 = vmatpush1.msra.mxu0 0.0
    %4000 = vmatprep.subr.mxu0 0.0
    %4001 = vmatpush1.msra.mxu0 0.0
    %4002 = vmatprep.subr.mxu0 0.0
    %4003 = vmatpush1.msra.mxu0 0.0
    %4004 = vmatprep.subr.mxu0 0.0
    %4005 = vmatpush1.msra.mxu0 0.0
    %4006 = vmatprep.subr.mxu0 0.0
    %4007 = vmatpush1.msra.mxu0 0.0
    %4008 = vmatprep.subr.mxu0 0.0
    %4009 = vmatpush1.msra.mxu0 0.0
    %4010 = vmatprep.subr.mxu0 0.0
    %4011 = vmatpush1.msra.mxu0 0.0
    %4012 = vmatprep.subr.mxu0 0.0
    %4013 = vmatpush1.msra.mxu0 0.0
    %4014 = vmatprep.subr.mxu0 0.0
    %4015 = vmatpush1.msra.mxu0 0.0
    %4016 = vmatprep.subr.mxu0 0.0
    %4017 = vmatpush1.msra.mxu0 0.0
    %4018 = vmatprep.subr.mxu0 0.0
    %4019 = vmatpush1.msra.mxu0 0.0
    %4020 = vmatprep.subr.mxu0 0.0
    %4021 = vmatpush1.msra.mxu0 0.0
    %4022 = vmatprep.subr.mxu0 0.0
    %4023 = vmatpush1.msra.mxu0 0.0
    %4024 = vmatprep.subr.mxu0 0.0
    %4025 = vmatpush1.msra.mxu0 0.0
    %4026 = vmatprep.subr.mxu0 0.0
    %4027 = vmatpush1.msra.mxu0 0.0
    %4028 = vmatprep.subr.mxu0 0.0
    %4029 = vmatpush1.msra.mxu0 0.0
    %4030 = vmatprep.subr.mxu0 0.0
    %4031 = vmatpush1.msra.mxu0 0.0
    %4032 = vmatprep.subr.mxu0 0.0
    %4033 = vmatpush1.msra.mxu0 0.0
    %4034 = vmatprep.subr.mxu0 0.0
    %4035 = vmatpush1.msra.mxu0 0.0
    %4036 = vmatprep.subr.mxu0 0.0
    %4037 = vmatpush1.msra.mxu0 0.0
    %4038 = vmatprep.subr.mxu0 0.0
    %4039 = vmatpush1.msra.mxu0 0.0
    %4040 = vmatprep.mubr.f32.mxu0 0.0
    %4041 = vmatmul.mubr.f32.gmra.mrb[0].mxu0 %v3974
    %v4042 = vpop.f32.mrb[0].mxu0
    %v4043 = vadd.f32 0.0, %v4042
    %v4044 = vpop.f32.mrb[0].mxu0
    %4045 = vdwg.mxu0
    %v4047 = vsel %vm3884, %v3966, 0
    %4049 = vmatprep.subr.mxu0 0.0
    %4050 = vmatpush1.msra.mxu0 %v2829
    %4051 = vmatprep.subr.mxu0 0.0
    %4052 = vmatpush1.msra.mxu0 %v2965
    %4053 = vmatprep.subr.mxu0 0.0
    %4054 = vmatpush1.msra.mxu0 0.0
    %4055 = vmatprep.subr.mxu0 0.0
    %4056 = vmatpush1.msra.mxu0 0.0
    %4057 = vmatprep.subr.mxu0 0.0
    %4058 = vmatpush1.msra.mxu0 0.0
    %4059 = vmatprep.subr.mxu0 0.0
    %4060 = vmatpush1.msra.mxu0 0.0
    %4061 = vmatprep.subr.mxu0 0.0
    %4062 = vmatpush1.msra.mxu0 0.0
    %4063 = vmatprep.subr.mxu0 0.0
    %4064 = vmatpush1.msra.mxu0 0.0
    %4065 = vmatprep.subr.mxu0 0.0
    %4066 = vmatpush1.msra.mxu0 0.0
    %4067 = vmatprep.subr.mxu0 0.0
    %4068 = vmatpush1.msra.mxu0 0.0
    %4069 = vmatprep.subr.mxu0 0.0
    %4070 = vmatpush1.msra.mxu0 0.0
    %4071 = vmatprep.subr.mxu0 0.0
    %4072 = vmatpush1.msra.mxu0 0.0
    %4073 = vmatprep.subr.mxu0 0.0
    %4074 = vmatpush1.msra.mxu0 0.0
    %4075 = vmatprep.subr.mxu0 0.0
    %4076 = vmatpush1.msra.mxu0 0.0
    %4077 = vmatprep.subr.mxu0 0.0
    %4078 = vmatpush1.msra.mxu0 0.0
    %4079 = vmatprep.subr.mxu0 0.0
    %4080 = vmatpush1.msra.mxu0 0.0
    %4081 = vmatprep.subr.mxu0 0.0
    %4082 = vmatpush1.msra.mxu0 0.0
    %4083 = vmatprep.subr.mxu0 0.0
    %4084 = vmatpush1.msra.mxu0 0.0
    %4085 = vmatprep.subr.mxu0 0.0
    %4086 = vmatpush1.msra.mxu0 0.0
    %4087 = vmatprep.subr.mxu0 0.0
    %4088 = vmatpush1.msra.mxu0 0.0
    %4089 = vmatprep.subr.mxu0 0.0
    %4090 = vmatpush1.msra.mxu0 0.0
    %4091 = vmatprep.subr.mxu0 0.0
    %4092 = vmatpush1.msra.mxu0 0.0
    %4093 = vmatprep.subr.mxu0 0.0
    %4094 = vmatpush1.msra.mxu0 0.0
    %4095 = vmatprep.subr.mxu0 0.0
    %4096 = vmatpush1.msra.mxu0 0.0
    %4097 = vmatprep.subr.mxu0 0.0
    %4098 = vmatpush1.msra.mxu0 0.0
    %4099 = vmatprep.subr.mxu0 0.0
    %4100 = vmatpush1.msra.mxu0 0.0
    %4101 = vmatprep.subr.mxu0 0.0
    %4102 = vmatpush1.msra.mxu0 0.0
    %4103 = vmatprep.subr.mxu0 0.0
    %4104 = vmatpush1.msra.mxu0 0.0
    %4105 = vmatprep.subr.mxu0 0.0
    %4106 = vmatpush1.msra.mxu0 0.0
    %4107 = vmatprep.subr.mxu0 0.0
    %4108 = vmatpush1.msra.mxu0 0.0
    %4109 = vmatprep.subr.mxu0 0.0
    %4110 = vmatpush1.msra.mxu0 0.0
    %4111 = vmatprep.subr.mxu0 0.0
    %4112 = vmatpush1.msra.mxu0 0.0
    %4113 = vmatprep.mubr.f32.mxu0 0.0
    %4114 = vmatmul.mubr.f32.gmra.mrb[0].mxu0 %v4047
    %v4115 = vpop.f32.mrb[0].mxu0
    %v4116 = vadd.f32 0.0, %v4115
    %v4117 = vpop.f32.mrb[0].mxu0
    %4118 = vdwg.mxu0
    %v4120 = vsel %vm3884, %v3967, 0
    %4122 = vmatprep.subr.mxu0 0.0
    %4123 = vmatpush1.msra.mxu0 %v2830
    %4124 = vmatprep.subr.mxu0 0.0
    %4125 = vmatpush1.msra.mxu0 %v2966
    %4126 = vmatprep.subr.mxu0 0.0
    %4127 = vmatpush1.msra.mxu0 0.0
    %4128 = vmatprep.subr.mxu0 0.0
    %4129 = vmatpush1.msra.mxu0 0.0
    %4130 = vmatprep.subr.mxu0 0.0
    %4131 = vmatpush1.msra.mxu0 0.0
    %4132 = vmatprep.subr.mxu0 0.0
    %4133 = vmatpush1.msra.mxu0 0.0
    %4134 = vmatprep.subr.mxu0 0.0
    %4135 = vmatpush1.msra.mxu0 0.0
    %4136 = vmatprep.subr.mxu0 0.0
    %4137 = vmatpush1.msra.mxu0 0.0
    %4138 = vmatprep.subr.mxu0 0.0
    %4139 = vmatpush1.msra.mxu0 0.0
    %4140 = vmatprep.subr.mxu0 0.0
    %4141 = vmatpush1.msra.mxu0 0.0
    %4142 = vmatprep.subr.mxu0 0.0
    %4143 = vmatpush1.msra.mxu0 0.0
    %4144 = vmatprep.subr.mxu0 0.0
    %4145 = vmatpush1.msra.mxu0 0.0
    %4146 = vmatprep.subr.mxu0 0.0
    %4147 = vmatpush1.msra.mxu0 0.0
    %4148 = vmatprep.subr.mxu0 0.0
    %4149 = vmatpush1.msra.mxu0 0.0
    %4150 = vmatprep.subr.mxu0 0.0
    %4151 = vmatpush1.msra.mxu0 0.0
    %4152 = vmatprep.subr.mxu0 0.0
    %4153 = vmatpush1.msra.mxu0 0.0
    %4154 = vmatprep.subr.mxu0 0.0
    %4155 = vmatpush1.msra.mxu0 0.0
    %4156 = vmatprep.subr.mxu0 0.0
    %4157 = vmatpush1.msra.mxu0 0.0
    %4158 = vmatprep.subr.mxu0 0.0
    %4159 = vmatpush1.msra.mxu0 0.0
    %4160 = vmatprep.subr.mxu0 0.0
    %4161 = vmatpush1.msra.mxu0 0.0
    %4162 = vmatprep.subr.mxu0 0.0
    %4163 = vmatpush1.msra.mxu0 0.0
    %4164 = vmatprep.subr.mxu0 0.0
    %4165 = vmatpush1.msra.mxu0 0.0
    %4166 = vmatprep.subr.mxu0 0.0
    %4167 = vmatpush1.msra.mxu0 0.0
    %4168 = vmatprep.subr.mxu0 0.0
    %4169 = vmatpush1.msra.mxu0 0.0
    %4170 = vmatprep.subr.mxu0 0.0
    %4171 = vmatpush1.msra.mxu0 0.0
    %4172 = vmatprep.subr.mxu0 0.0
    %4173 = vmatpush1.msra.mxu0 0.0
    %4174 = vmatprep.subr.mxu0 0.0
    %4175 = vmatpush1.msra.mxu0 0.0
    %4176 = vmatprep.subr.mxu0 0.0
    %4177 = vmatpush1.msra.mxu0 0.0
    %4178 = vmatprep.subr.mxu0 0.0
    %4179 = vmatpush1.msra.mxu0 0.0
    %4180 = vmatprep.subr.mxu0 0.0
    %4181 = vmatpush1.msra.mxu0 0.0
    %4182 = vmatprep.subr.mxu0 0.0
    %4183 = vmatpush1.msra.mxu0 0.0
    %4184 = vmatprep.subr.mxu0 0.0
    %4185 = vmatpush1.msra.mxu0 0.0
    %4186 = vmatprep.mubr.f32.mxu0 0.0
    %4187 = vmatmul.mubr.f32.gmra.mrb[0].mxu0 %v4120
    %v4188 = vpop.f32.mrb[0].mxu0
    %v4189 = vadd.f32 0.0, %v4188
    %v4190 = vpop.f32.mrb[0].mxu0
    %4191 = vdwg.mxu0
    %v4193 = vsel %vm3884, %v3968, 0
    %4195 = vmatprep.subr.mxu0 0.0
    %4196 = vmatpush1.msra.mxu0 %v2831
    %4197 = vmatprep.subr.mxu0 0.0
    %4198 = vmatpush1.msra.mxu0 %v2967
    %4199 = vmatprep.subr.mxu0 0.0
    %4200 = vmatpush1.msra.mxu0 0.0
    %4201 = vmatprep.subr.mxu0 0.0
    %4202 = vmatpush1.msra.mxu0 0.0
    %4203 = vmatprep.subr.mxu0 0.0
    %4204 = vmatpush1.msra.mxu0 0.0
    %4205 = vmatprep.subr.mxu0 0.0
    %4206 = vmatpush1.msra.mxu0 0.0
    %4207 = vmatprep.subr.mxu0 0.0
    %4208 = vmatpush1.msra.mxu0 0.0
    %4209 = vmatprep.subr.mxu0 0.0
    %4210 = vmatpush1.msra.mxu0 0.0
    %4211 = vmatprep.subr.mxu0 0.0
    %4212 = vmatpush1.msra.mxu0 0.0
    %4213 = vmatprep.subr.mxu0 0.0
    %4214 = vmatpush1.msra.mxu0 0.0
    %4215 = vmatprep.subr.mxu0 0.0
    %4216 = vmatpush1.msra.mxu0 0.0
    %4217 = vmatprep.subr.mxu0 0.0
    %4218 = vmatpush1.msra.mxu0 0.0
    %4219 = vmatprep.subr.mxu0 0.0
    %4220 = vmatpush1.msra.mxu0 0.0
    %4221 = vmatprep.subr.mxu0 0.0
    %4222 = vmatpush1.msra.mxu0 0.0
    %4223 = vmatprep.subr.mxu0 0.0
    %4224 = vmatpush1.msra.mxu0 0.0
    %4225 = vmatprep.subr.mxu0 0.0
    %4226 = vmatpush1.msra.mxu0 0.0
    %4227 = vmatprep.subr.mxu0 0.0
    %4228 = vmatpush1.msra.mxu0 0.0
    %4229 = vmatprep.subr.mxu0 0.0
    %4230 = vmatpush1.msra.mxu0 0.0
    %4231 = vmatprep.subr.mxu0 0.0
    %4232 = vmatpush1.msra.mxu0 0.0
    %4233 = vmatprep.subr.mxu0 0.0
    %4234 = vmatpush1.msra.mxu0 0.0
    %4235 = vmatprep.subr.mxu0 0.0
    %4236 = vmatpush1.msra.mxu0 0.0
    %4237 = vmatprep.subr.mxu0 0.0
    %4238 = vmatpush1.msra.mxu0 0.0
    %4239 = vmatprep.subr.mxu0 0.0
    %4240 = vmatpush1.msra.mxu0 0.0
    %4241 = vmatprep.subr.mxu0 0.0
    %4242 = vmatpush1.msra.mxu0 0.0
    %4243 = vmatprep.subr.mxu0 0.0
    %4244 = vmatpush1.msra.mxu0 0.0
    %4245 = vmatprep.subr.mxu0 0.0
    %4246 = vmatpush1.msra.mxu0 0.0
    %4247 = vmatprep.subr.mxu0 0.0
    %4248 = vmatpush1.msra.mxu0 0.0
    %4249 = vmatprep.subr.mxu0 0.0
    %4250 = vmatpush1.msra.mxu0 0.0
    %4251 = vmatprep.subr.mxu0 0.0
    %4252 = vmatpush1.msra.mxu0 0.0
    %4253 = vmatprep.subr.mxu0 0.0
    %4254 = vmatpush1.msra.mxu0 0.0
    %4255 = vmatprep.subr.mxu0 0.0
    %4256 = vmatpush1.msra.mxu0 0.0
    %4257 = vmatprep.subr.mxu0 0.0
    %4258 = vmatpush1.msra.mxu0 0.0
    %4259 = vmatprep.mubr.f32.mxu0 0.0
    %4260 = vmatmul.mubr.f32.gmra.mrb[0].mxu0 %v4193
    %v4261 = vpop.f32.mrb[0].mxu0
    %v4262 = vadd.f32 0.0, %v4261
    %v4263 = vpop.f32.mrb[0].mxu0
    %4264 = vdwg.mxu0
    %v4266 = vsel %vm3884, %v3969, 0
    %4268 = vmatprep.subr.mxu0 0.0
    %4269 = vmatpush1.msra.mxu0 %v2832
    %4270 = vmatprep.subr.mxu0 0.0
    %4271 = vmatpush1.msra.mxu0 %v2968
    %4272 = vmatprep.subr.mxu0 0.0
    %4273 = vmatpush1.msra.mxu0 0.0
    %4274 = vmatprep.subr.mxu0 0.0
    %4275 = vmatpush1.msra.mxu0 0.0
    %4276 = vmatprep.subr.mxu0 0.0
    %4277 = vmatpush1.msra.mxu0 0.0
    %4278 = vmatprep.subr.mxu0 0.0
    %4279 = vmatpush1.msra.mxu0 0.0
    %4280 = vmatprep.subr.mxu0 0.0
    %4281 = vmatpush1.msra.mxu0 0.0
    %4282 = vmatprep.subr.mxu0 0.0
    %4283 = vmatpush1.msra.mxu0 0.0
    %4284 = vmatprep.subr.mxu0 0.0
    %4285 = vmatpush1.msra.mxu0 0.0
    %4286 = vmatprep.subr.mxu0 0.0
    %4287 = vmatpush1.msra.mxu0 0.0
    %4288 = vmatprep.subr.mxu0 0.0
    %4289 = vmatpush1.msra.mxu0 0.0
    %4290 = vmatprep.subr.mxu0 0.0
    %4291 = vmatpush1.msra.mxu0 0.0
    %4292 = vmatprep.subr.mxu0 0.0
    %4293 = vmatpush1.msra.mxu0 0.0
    %4294 = vmatprep.subr.mxu0 0.0
    %4295 = vmatpush1.msra.mxu0 0.0
    %4296 = vmatprep.subr.mxu0 0.0
    %4297 = vmatpush1.msra.mxu0 0.0
    %4298 = vmatprep.subr.mxu0 0.0
    %4299 = vmatpush1.msra.mxu0 0.0
    %4300 = vmatprep.subr.mxu0 0.0
    %4301 = vmatpush1.msra.mxu0 0.0
    %4302 = vmatprep.subr.mxu0 0.0
    %4303 = vmatpush1.msra.mxu0 0.0
    %4304 = vmatprep.subr.mxu0 0.0
    %4305 = vmatpush1.msra.mxu0 0.0
    %4306 = vmatprep.subr.mxu0 0.0
    %4307 = vmatpush1.msra.mxu0 0.0
    %4308 = vmatprep.subr.mxu0 0.0
    %4309 = vmatpush1.msra.mxu0 0.0
    %4310 = vmatprep.subr.mxu0 0.0
    %4311 = vmatpush1.msra.mxu0 0.0
    %4312 = vmatprep.subr.mxu0 0.0
    %4313 = vmatpush1.msra.mxu0 0.0
    %4314 = vmatprep.subr.mxu0 0.0
    %4315 = vmatpush1.msra.mxu0 0.0
    %4316 = vmatprep.subr.mxu0 0.0
    %4317 = vmatpush1.msra.mxu0 0.0
    %4318 = vmatprep.subr.mxu0 0.0
    %4319 = vmatpush1.msra.mxu0 0.0
    %4320 = vmatprep.subr.mxu0 0.0
    %4321 = vmatpush1.msra.mxu0 0.0
    %4322 = vmatprep.subr.mxu0 0.0
    %4323 = vmatpush1.msra.mxu0 0.0
    %4324 = vmatprep.subr.mxu0 0.0
    %4325 = vmatpush1.msra.mxu0 0.0
    %4326 = vmatprep.subr.mxu0 0.0
    %4327 = vmatpush1.msra.mxu0 0.0
    %4328 = vmatprep.subr.mxu0 0.0
    %4329 = vmatpush1.msra.mxu0 0.0
    %4330 = vmatprep.subr.mxu0 0.0
    %4331 = vmatpush1.msra.mxu0 0.0
    %4332 = vmatprep.mubr.f32.mxu0 0.0
    %4333 = vmatmul.mubr.f32.gmra.mrb[0].mxu0 %v4266
    %v4334 = vpop.f32.mrb[0].mxu0
    %v4335 = vadd.f32 0.0, %v4334
    %v4336 = vpop.f32.mrb[0].mxu0
    %4337 = vdwg.mxu0
    %v4339 = vsel %vm3884, %v3970, 0
    %4341 = vmatprep.subr.mxu0 0.0
    %4342 = vmatpush1.msra.mxu0 %v2833
    %4343 = vmatprep.subr.mxu0 0.0
    %4344 = vmatpush1.msra.mxu0 %v2969
    %4345 = vmatprep.subr.mxu0 0.0
    %4346 = vmatpush1.msra.mxu0 0.0
    %4347 = vmatprep.subr.mxu0 0.0
    %4348 = vmatpush1.msra.mxu0 0.0
    %4349 = vmatprep.subr.mxu0 0.0
    %4350 = vmatpush1.msra.mxu0 0.0
    %4351 = vmatprep.subr.mxu0 0.0
    %4352 = vmatpush1.msra.mxu0 0.0
    %4353 = vmatprep.subr.mxu0 0.0
    %4354 = vmatpush1.msra.mxu0 0.0
    %4355 = vmatprep.subr.mxu0 0.0
    %4356 = vmatpush1.msra.mxu0 0.0
    %4357 = vmatprep.subr.mxu0 0.0
    %4358 = vmatpush1.msra.mxu0 0.0
    %4359 = vmatprep.subr.mxu0 0.0
    %4360 = vmatpush1.msra.mxu0 0.0
    %4361 = vmatprep.subr.mxu0 0.0
    %4362 = vmatpush1.msra.mxu0 0.0
    %4363 = vmatprep.subr.mxu0 0.0
    %4364 = vmatpush1.msra.mxu0 0.0
    %4365 = vmatprep.subr.mxu0 0.0
    %4366 = vmatpush1.msra.mxu0 0.0
    %4367 = vmatprep.subr.mxu0 0.0
    %4368 = vmatpush1.msra.mxu0 0.0
    %4369 = vmatprep.subr.mxu0 0.0
    %4370 = vmatpush1.msra.mxu0 0.0
    %4371 = vmatprep.subr.mxu0 0.0
    %4372 = vmatpush1.msra.mxu0 0.0
    %4373 = vmatprep.subr.mxu0 0.0
    %4374 = vmatpush1.msra.mxu0 0.0
    %4375 = vmatprep.subr.mxu0 0.0
    %4376 = vmatpush1.msra.mxu0 0.0
    %4377 = vmatprep.subr.mxu0 0.0
    %4378 = vmatpush1.msra.mxu0 0.0
    %4379 = vmatprep.subr.mxu0 0.0
    %4380 = vmatpush1.msra.mxu0 0.0
    %4381 = vmatprep.subr.mxu0 0.0
    %4382 = vmatpush1.msra.mxu0 0.0
    %4383 = vmatprep.subr.mxu0 0.0
    %4384 = vmatpush1.msra.mxu0 0.0
    %4385 = vmatprep.subr.mxu0 0.0
    %4386 = vmatpush1.msra.mxu0 0.0
    %4387 = vmatprep.subr.mxu0 0.0
    %4388 = vmatpush1.msra.mxu0 0.0
    %4389 = vmatprep.subr.mxu0 0.0
    %4390 = vmatpush1.msra.mxu0 0.0
    %4391 = vmatprep.subr.mxu0 0.0
    %4392 = vmatpush1.msra.mxu0 0.0
    %4393 = vmatprep.subr.mxu0 0.0
    %4394 = vmatpush1.msra.mxu0 0.0
    %4395 = vmatprep.subr.mxu0 0.0
    %4396 = vmatpush1.msra.mxu0 0.0
    %4397 = vmatprep.subr.mxu0 0.0
    %4398 = vmatpush1.msra.mxu0 0.0
    %4399 = vmatprep.subr.mxu0 0.0
    %4400 = vmatpush1.msra.mxu0 0.0
    %4401 = vmatprep.subr.mxu0 0.0
    %4402 = vmatpush1.msra.mxu0 0.0
    %4403 = vmatprep.subr.mxu0 0.0
    %4404 = vmatpush1.msra.mxu0 0.0
    %4405 = vmatprep.mubr.f32.mxu0 0.0
    %4406 = vmatmul.mubr.f32.gmra.mrb[0].mxu0 %v4339
    %v4407 = vpop.f32.mrb[0].mxu0
    %v4408 = vadd.f32 0.0, %v4407
    %v4409 = vpop.f32.mrb[0].mxu0
    %4410 = vdwg.mxu0
    %v4412 = vsel %vm3884, %v3971, 0
    %4414 = vmatprep.subr.mxu0 0.0
    %4415 = vmatpush1.msra.mxu0 %v2834
    %4416 = vmatprep.subr.mxu0 0.0
    %4417 = vmatpush1.msra.mxu0 %v2970
    %4418 = vmatprep.subr.mxu0 0.0
    %4419 = vmatpush1.msra.mxu0 0.0
    %4420 = vmatprep.subr.mxu0 0.0
    %4421 = vmatpush1.msra.mxu0 0.0
    %4422 = vmatprep.subr.mxu0 0.0
    %4423 = vmatpush1.msra.mxu0 0.0
    %4424 = vmatprep.subr.mxu0 0.0
    %4425 = vmatpush1.msra.mxu0 0.0
    %4426 = vmatprep.subr.mxu0 0.0
    %4427 = vmatpush1.msra.mxu0 0.0
    %4428 = vmatprep.subr.mxu0 0.0
    %4429 = vmatpush1.msra.mxu0 0.0
    %4430 = vmatprep.subr.mxu0 0.0
    %4431 = vmatpush1.msra.mxu0 0.0
    %4432 = vmatprep.subr.mxu0 0.0
    %4433 = vmatpush1.msra.mxu0 0.0
    %4434 = vmatprep.subr.mxu0 0.0
    %4435 = vmatpush1.msra.mxu0 0.0
    %4436 = vmatprep.subr.mxu0 0.0
    %4437 = vmatpush1.msra.mxu0 0.0
    %4438 = vmatprep.subr.mxu0 0.0
    %4439 = vmatpush1.msra.mxu0 0.0
    %4440 = vmatprep.subr.mxu0 0.0
    %4441 = vmatpush1.msra.mxu0 0.0
    %4442 = vmatprep.subr.mxu0 0.0
    %4443 = vmatpush1.msra.mxu0 0.0
    %4444 = vmatprep.subr.mxu0 0.0
    %4445 = vmatpush1.msra.mxu0 0.0
    %4446 = vmatprep.subr.mxu0 0.0
    %4447 = vmatpush1.msra.mxu0 0.0
    %4448 = vmatprep.subr.mxu0 0.0
    %4449 = vmatpush1.msra.mxu0 0.0
    %4450 = vmatprep.subr.mxu0 0.0
    %4451 = vmatpush1.msra.mxu0 0.0
    %4452 = vmatprep.subr.mxu0 0.0
    %4453 = vmatpush1.msra.mxu0 0.0
    %4454 = vmatprep.subr.mxu0 0.0
    %4455 = vmatpush1.msra.mxu0 0.0
    %4456 = vmatprep.subr.mxu0 0.0
    %4457 = vmatpush1.msra.mxu0 0.0
    %4458 = vmatprep.subr.mxu0 0.0
    %4459 = vmatpush1.msra.mxu0 0.0
    %4460 = vmatprep.subr.mxu0 0.0
    %4461 = vmatpush1.msra.mxu0 0.0
    %4462 = vmatprep.subr.mxu0 0.0
    %4463 = vmatpush1.msra.mxu0 0.0
    %4464 = vmatprep.subr.mxu0 0.0
    %4465 = vmatpush1.msra.mxu0 0.0
    %4466 = vmatprep.subr.mxu0 0.0
    %4467 = vmatpush1.msra.mxu0 0.0
    %4468 = vmatprep.subr.mxu0 0.0
    %4469 = vmatpush1.msra.mxu0 0.0
    %4470 = vmatprep.subr.mxu0 0.0
    %4471 = vmatpush1.msra.mxu0 0.0
    %4472 = vmatprep.subr.mxu0 0.0
    %4473 = vmatpush1.msra.mxu0 0.0
    %4474 = vmatprep.subr.mxu0 0.0
    %4475 = vmatpush1.msra.mxu0 0.0
    %4476 = vmatprep.subr.mxu0 0.0
    %4477 = vmatpush1.msra.mxu0 0.0
    %4478 = vmatprep.mubr.f32.mxu0 0.0
    %4479 = vmatmul.mubr.f32.gmra.mrb[0].mxu0 %v4412
    %v4480 = vpop.f32.mrb[0].mxu0
    %v4481 = vadd.f32 0.0, %v4480
    %v4482 = vpop.f32.mrb[0].mxu0
    %4483 = vdwg.mxu0
    %v4485 = vsel %vm3884, %v3972, 0
    %4487 = vmatprep.subr.mxu0 0.0
    %4488 = vmatpush1.msra.mxu0 %v2835
    %4489 = vmatprep.subr.mxu0 0.0
    %4490 = vmatpush1.msra.mxu0 %v2971
    %4491 = vmatprep.subr.mxu0 0.0
    %4492 = vmatpush1.msra.mxu0 0.0
    %4493 = vmatprep.subr.mxu0 0.0
    %4494 = vmatpush1.msra.mxu0 0.0
    %4495 = vmatprep.subr.mxu0 0.0
    %4496 = vmatpush1.msra.mxu0 0.0
    %4497 = vmatprep.subr.mxu0 0.0
    %4498 = vmatpush1.msra.mxu0 0.0
    %4499 = vmatprep.subr.mxu0 0.0
    %4500 = vmatpush1.msra.mxu0 0.0
    %4501 = vmatprep.subr.mxu0 0.0
    %4502 = vmatpush1.msra.mxu0 0.0
    %4503 = vmatprep.subr.mxu0 0.0
    %4504 = vmatpush1.msra.mxu0 0.0
    %4505 = vmatprep.subr.mxu0 0.0
    %4506 = vmatpush1.msra.mxu0 0.0
    %4507 = vmatprep.subr.mxu0 0.0
    %4508 = vmatpush1.msra.mxu0 0.0
    %4509 = vmatprep.subr.mxu0 0.0
    %4510 = vmatpush1.msra.mxu0 0.0
    %4511 = vmatprep.subr.mxu0 0.0
    %4512 = vmatpush1.msra.mxu0 0.0
    %4513 = vmatprep.subr.mxu0 0.0
    %4514 = vmatpush1.msra.mxu0 0.0
    %4515 = vmatprep.subr.mxu0 0.0
    %4516 = vmatpush1.msra.mxu0 0.0
    %4517 = vmatprep.subr.mxu0 0.0
    %4518 = vmatpush1.msra.mxu0 0.0
    %4519 = vmatprep.subr.mxu0 0.0
    %4520 = vmatpush1.msra.mxu0 0.0
    %4521 = vmatprep.subr.mxu0 0.0
    %4522 = vmatpush1.msra.mxu0 0.0
    %4523 = vmatprep.subr.mxu0 0.0
    %4524 = vmatpush1.msra.mxu0 0.0
    %4525 = vmatprep.subr.mxu0 0.0
    %4526 = vmatpush1.msra.mxu0 0.0
    %4527 = vmatprep.subr.mxu0 0.0
    %4528 = vmatpush1.msra.mxu0 0.0
    %4529 = vmatprep.subr.mxu0 0.0
    %4530 = vmatpush1.msra.mxu0 0.0
    %4531 = vmatprep.subr.mxu0 0.0
    %4532 = vmatpush1.msra.mxu0 0.0
    %4533 = vmatprep.subr.mxu0 0.0
    %4534 = vmatpush1.msra.mxu0 0.0
    %4535 = vmatprep.subr.mxu0 0.0
    %4536 = vmatpush1.msra.mxu0 0.0
    %4537 = vmatprep.subr.mxu0 0.0
    %4538 = vmatpush1.msra.mxu0 0.0
    %4539 = vmatprep.subr.mxu0 0.0
    %4540 = vmatpush1.msra.mxu0 0.0
    %4541 = vmatprep.subr.mxu0 0.0
    %4542 = vmatpush1.msra.mxu0 0.0
    %4543 = vmatprep.subr.mxu0 0.0
    %4544 = vmatpush1.msra.mxu0 0.0
    %4545 = vmatprep.subr.mxu0 0.0
    %4546 = vmatpush1.msra.mxu0 0.0
    %4547 = vmatprep.subr.mxu0 0.0
    %4548 = vmatpush1.msra.mxu0 0.0
    %4549 = vmatprep.subr.mxu0 0.0
    %4550 = vmatpush1.msra.mxu0 0.0
    %4551 = vmatprep.mubr.f32.mxu0 0.0
    %4552 = vmatmul.mubr.f32.gmra.mrb[0].mxu0 %v4485
    %v4553 = vpop.f32.mrb[0].mxu0
    %v4554 = vadd.f32 0.0, %v4553
    %v4555 = vpop.f32.mrb[0].mxu0
    %4556 = vdwg.mxu0
    %s4557 = scalar_lea.vmem %s2, 1
    %v4558 = vld [vmem:[%s4557] sm:$0x1]
    %v4560 = vlaneseq
    %v4561 = vshrl.u32 %v4560, 7
    %v4562 = vsub.s32 0, %v4561
    %v4563 = vrot.slane %v4558, %v4562
    %v4566 = vsel %vm3251, %v876, 0
    %v4569 = vsel %vm3251, %v1916, 0
    %v4572 = vsel %vm3251, %v2052, 0
    %4574 = vmatprep.subr.mxu0 0.0
    %4575 = vmatpush1.xpose.msra.mxu0 %v4569
    %4576 = vmatprep.subr.mxu0 0.0
    %4577 = vmatpush1.xpose.msra.mxu0 %v4572
    %4578 = vmatprep.subr.mxu0 0.0
    %4579 = vmatpush1.xpose.msra.mxu0 0.0
    %4580 = vmatprep.subr.mxu0 0.0
    %4581 = vmatpush1.xpose.msra.mxu0 0.0
    %4582 = vmatprep.subr.mxu0 0.0
    %4583 = vmatpush1.xpose.msra.mxu0 0.0
    %4584 = vmatprep.subr.mxu0 0.0
    %4585 = vmatpush1.xpose.msra.mxu0 0.0
    %4586 = vmatprep.subr.mxu0 0.0
    %4587 = vmatpush1.xpose.msra.mxu0 0.0
    %4588 = vmatprep.subr.mxu0 0.0
    %4589 = vmatpush1.xpose.msra.mxu0 0.0
    %4590 = vmatprep.subr.mxu0 0.0
    %4591 = vmatpush1.xpose.msra.mxu0 0.0
    %4592 = vmatprep.subr.mxu0 0.0
    %4593 = vmatpush1.xpose.msra.mxu0 0.0
    %4594 = vmatprep.subr.mxu0 0.0
    %4595 = vmatpush1.xpose.msra.mxu0 0.0
    %4596 = vmatprep.subr.mxu0 0.0
    %4597 = vmatpush1.xpose.msra.mxu0 0.0
    %4598 = vmatprep.subr.mxu0 0.0
    %4599 = vmatpush1.xpose.msra.mxu0 0.0
    %4600 = vmatprep.subr.mxu0 0.0
    %4601 = vmatpush1.xpose.msra.mxu0 0.0
    %4602 = vmatprep.subr.mxu0 0.0
    %4603 = vmatpush1.xpose.msra.mxu0 0.0
    %4604 = vmatprep.subr.mxu0 0.0
    %4605 = vmatpush1.xpose.msra.mxu0 0.0
    %4606 = vmatprep.subr.mxu0 0.0
    %4607 = vmatpush1.xpose.msra.mxu0 0.0
    %4608 = vmatprep.subr.mxu0 0.0
    %4609 = vmatpush1.xpose.msra.mxu0 0.0
    %4610 = vmatprep.subr.mxu0 0.0
    %4611 = vmatpush1.xpose.msra.mxu0 0.0
    %4612 = vmatprep.subr.mxu0 0.0
    %4613 = vmatpush1.xpose.msra.mxu0 0.0
    %4614 = vmatprep.subr.mxu0 0.0
    %4615 = vmatpush1.xpose.msra.mxu0 0.0
    %4616 = vmatprep.subr.mxu0 0.0
    %4617 = vmatpush1.xpose.msra.mxu0 0.0
    %4618 = vmatprep.subr.mxu0 0.0
    %4619 = vmatpush1.xpose.msra.mxu0 0.0
    %4620 = vmatprep.subr.mxu0 0.0
    %4621 = vmatpush1.xpose.msra.mxu0 0.0
    %4622 = vmatprep.subr.mxu0 0.0
    %4623 = vmatpush1.xpose.msra.mxu0 0.0
    %4624 = vmatprep.subr.mxu0 0.0
    %4625 = vmatpush1.xpose.msra.mxu0 0.0
    %4626 = vmatprep.subr.mxu0 0.0
    %4627 = vmatpush1.xpose.msra.mxu0 0.0
    %4628 = vmatprep.subr.mxu0 0.0
    %4629 = vmatpush1.xpose.msra.mxu0 0.0
    %4630 = vmatprep.subr.mxu0 0.0
    %4631 = vmatpush1.xpose.msra.mxu0 0.0
    %4632 = vmatprep.subr.mxu0 0.0
    %4633 = vmatpush1.xpose.msra.mxu0 0.0
    %4634 = vmatprep.subr.mxu0 0.0
    %4635 = vmatpush1.xpose.msra.mxu0 0.0
    %4636 = vmatprep.subr.mxu0 0.0
    %4637 = vmatpush1.xpose.msra.mxu0 0.0
    %4638 = vmatprep.mubr.f32.mxu0 0.0
    %4639 = vmatmul.mubr.f32.gmra.mrb[0].mxu0 %v4566
    %v4640 = vpop.f32.mrb[0].mxu0
    %v4641 = vadd.f32 %v4563, %v4640
    %v4642 = vpop.f32.mrb[0].mxu0
    %4643 = vdwg.mxu0
    %v4645 = vsel %vm3251, %v877, 0
    %v4648 = vsel %vm3251, %v1917, 0
    %v4651 = vsel %vm3251, %v2053, 0
    %4653 = vmatprep.subr.mxu0 0.0
    %4654 = vmatpush1.xpose.msra.mxu0 %v4648
    %4655 = vmatprep.subr.mxu0 0.0
    %4656 = vmatpush1.xpose.msra.mxu0 %v4651
    %4657 = vmatprep.subr.mxu0 0.0
    %4658 = vmatpush1.xpose.msra.mxu0 0.0
    %4659 = vmatprep.subr.mxu0 0.0
    %4660 = vmatpush1.xpose.msra.mxu0 0.0
    %4661 = vmatprep.subr.mxu0 0.0
    %4662 = vmatpush1.xpose.msra.mxu0 0.0
    %4663 = vmatprep.subr.mxu0 0.0
    %4664 = vmatpush1.xpose.msra.mxu0 0.0
    %4665 = vmatprep.subr.mxu0 0.0
    %4666 = vmatpush1.xpose.msra.mxu0 0.0
    %4667 = vmatprep.subr.mxu0 0.0
    %4668 = vmatpush1.xpose.msra.mxu0 0.0
    %4669 = vmatprep.subr.mxu0 0.0
    %4670 = vmatpush1.xpose.msra.mxu0 0.0
    %4671 = vmatprep.subr.mxu0 0.0
    %4672 = vmatpush1.xpose.msra.mxu0 0.0
    %4673 = vmatprep.subr.mxu0 0.0
    %4674 = vmatpush1.xpose.msra.mxu0 0.0
    %4675 = vmatprep.subr.mxu0 0.0
    %4676 = vmatpush1.xpose.msra.mxu0 0.0
    %4677 = vmatprep.subr.mxu0 0.0
    %4678 = vmatpush1.xpose.msra.mxu0 0.0
    %4679 = vmatprep.subr.mxu0 0.0
    %4680 = vmatpush1.xpose.msra.mxu0 0.0
    %4681 = vmatprep.subr.mxu0 0.0
    %4682 = vmatpush1.xpose.msra.mxu0 0.0
    %4683 = vmatprep.subr.mxu0 0.0
    %4684 = vmatpush1.xpose.msra.mxu0 0.0
    %4685 = vmatprep.subr.mxu0 0.0
    %4686 = vmatpush1.xpose.msra.mxu0 0.0
    %4687 = vmatprep.subr.mxu0 0.0
    %4688 = vmatpush1.xpose.msra.mxu0 0.0
    %4689 = vmatprep.subr.mxu0 0.0
    %4690 = vmatpush1.xpose.msra.mxu0 0.0
    %4691 = vmatprep.subr.mxu0 0.0
    %4692 = vmatpush1.xpose.msra.mxu0 0.0
    %4693 = vmatprep.subr.mxu0 0.0
    %4694 = vmatpush1.xpose.msra.mxu0 0.0
    %4695 = vmatprep.subr.mxu0 0.0
    %4696 = vmatpush1.xpose.msra.mxu0 0.0
    %4697 = vmatprep.subr.mxu0 0.0
    %4698 = vmatpush1.xpose.msra.mxu0 0.0
    %4699 = vmatprep.subr.mxu0 0.0
    %4700 = vmatpush1.xpose.msra.mxu0 0.0
    %4701 = vmatprep.subr.mxu0 0.0
    %4702 = vmatpush1.xpose.msra.mxu0 0.0
    %4703 = vmatprep.subr.mxu0 0.0
    %4704 = vmatpush1.xpose.msra.mxu0 0.0
    %4705 = vmatprep.subr.mxu0 0.0
    %4706 = vmatpush1.xpose.msra.mxu0 0.0
    %4707 = vmatprep.subr.mxu0 0.0
    %4708 = vmatpush1.xpose.msra.mxu0 0.0
    %4709 = vmatprep.subr.mxu0 0.0
    %4710 = vmatpush1.xpose.msra.mxu0 0.0
    %4711 = vmatprep.subr.mxu0 0.0
    %4712 = vmatpush1.xpose.msra.mxu0 0.0
    %4713 = vmatprep.subr.mxu0 0.0
    %4714 = vmatpush1.xpose.msra.mxu0 0.0
    %4715 = vmatprep.subr.mxu0 0.0
    %4716 = vmatpush1.xpose.msra.mxu0 0.0
    %4717 = vmatprep.mubr.f32.mxu0 0.0
    %4718 = vmatmul.mubr.f32.gmra.mrb[0].mxu0 %v4645
    %v4719 = vpop.f32.mrb[0].mxu0
    %v4720 = vadd.f32 %v4563, %v4719
    %v4721 = vpop.f32.mrb[0].mxu0
    %4722 = vdwg.mxu0
    %v4724 = vsel %vm3251, %v878, 0
    %v4727 = vsel %vm3251, %v1918, 0
    %v4730 = vsel %vm3251, %v2054, 0
    %4732 = vmatprep.subr.mxu0 0.0
    %4733 = vmatpush1.xpose.msra.mxu0 %v4727
    %4734 = vmatprep.subr.mxu0 0.0
    %4735 = vmatpush1.xpose.msra.mxu0 %v4730
    %4736 = vmatprep.subr.mxu0 0.0
    %4737 = vmatpush1.xpose.msra.mxu0 0.0
    %4738 = vmatprep.subr.mxu0 0.0
    %4739 = vmatpush1.xpose.msra.mxu0 0.0
    %4740 = vmatprep.subr.mxu0 0.0
    %4741 = vmatpush1.xpose.msra.mxu0 0.0
    %4742 = vmatprep.subr.mxu0 0.0
    %4743 = vmatpush1.xpose.msra.mxu0 0.0
    %4744 = vmatprep.subr.mxu0 0.0
    %4745 = vmatpush1.xpose.msra.mxu0 0.0
    %4746 = vmatprep.subr.mxu0 0.0
    %4747 = vmatpush1.xpose.msra.mxu0 0.0
    %4748 = vmatprep.subr.mxu0 0.0
    %4749 = vmatpush1.xpose.msra.mxu0 0.0
    %4750 = vmatprep.subr.mxu0 0.0
    %4751 = vmatpush1.xpose.msra.mxu0 0.0
    %4752 = vmatprep.subr.mxu0 0.0
    %4753 = vmatpush1.xpose.msra.mxu0 0.0
    %4754 = vmatprep.subr.mxu0 0.0
    %4755 = vmatpush1.xpose.msra.mxu0 0.0
    %4756 = vmatprep.subr.mxu0 0.0
    %4757 = vmatpush1.xpose.msra.mxu0 0.0
    %4758 = vmatprep.subr.mxu0 0.0
    %4759 = vmatpush1.xpose.msra.mxu0 0.0
    %4760 = vmatprep.subr.mxu0 0.0
    %4761 = vmatpush1.xpose.msra.mxu0 0.0
    %4762 = vmatprep.subr.mxu0 0.0
    %4763 = vmatpush1.xpose.msra.mxu0 0.0
    %4764 = vmatprep.subr.mxu0 0.0
    %4765 = vmatpush1.xpose.msra.mxu0 0.0
    %4766 = vmatprep.subr.mxu0 0.0
    %4767 = vmatpush1.xpose.msra.mxu0 0.0
    %4768 = vmatprep.subr.mxu0 0.0
    %4769 = vmatpush1.xpose.msra.mxu0 0.0
    %4770 = vmatprep.subr.mxu0 0.0
    %4771 = vmatpush1.xpose.msra.mxu0 0.0
    %4772 = vmatprep.subr.mxu0 0.0
    %4773 = vmatpush1.xpose.msra.mxu0 0.0
    %4774 = vmatprep.subr.mxu0 0.0
    %4775 = vmatpush1.xpose.msra.mxu0 0.0
    %4776 = vmatprep.subr.mxu0 0.0
    %4777 = vmatpush1.xpose.msra.mxu0 0.0
    %4778 = vmatprep.subr.mxu0 0.0
    %4779 = vmatpush1.xpose.msra.mxu0 0.0
    %4780 = vmatprep.subr.mxu0 0.0
    %4781 = vmatpush1.xpose.msra.mxu0 0.0
    %4782 = vmatprep.subr.mxu0 0.0
    %4783 = vmatpush1.xpose.msra.mxu0 0.0
    %4784 = vmatprep.subr.mxu0 0.0
    %4785 = vmatpush1.xpose.msra.mxu0 0.0
    %4786 = vmatprep.subr.mxu0 0.0
    %4787 = vmatpush1.xpose.msra.mxu0 0.0
    %4788 = vmatprep.subr.mxu0 0.0
    %4789 = vmatpush1.xpose.msra.mxu0 0.0
    %4790 = vmatprep.subr.mxu0 0.0
    %4791 = vmatpush1.xpose.msra.mxu0 0.0
    %4792 = vmatprep.subr.mxu0 0.0
    %4793 = vmatpush1.xpose.msra.mxu0 0.0
    %4794 = vmatprep.subr.mxu0 0.0
    %4795 = vmatpush1.xpose.msra.mxu0 0.0
    %4796 = vmatprep.mubr.f32.mxu0 0.0
    %4797 = vmatmul.mubr.f32.gmra.mrb[0].mxu0 %v4724
    %v4798 = vpop.f32.mrb[0].mxu0
    %v4799 = vadd.f32 %v4563, %v4798
    %v4800 = vpop.f32.mrb[0].mxu0
    %4801 = vdwg.mxu0
    %v4803 = vsel %vm3251, %v879, 0
    %v4806 = vsel %vm3251, %v1919, 0
    %v4809 = vsel %vm3251, %v2055, 0
    %4811 = vmatprep.subr.mxu0 0.0
    %4812 = vmatpush1.xpose.msra.mxu0 %v4806
    %4813 = vmatprep.subr.mxu0 0.0
    %4814 = vmatpush1.xpose.msra.mxu0 %v4809
    %4815 = vmatprep.subr.mxu0 0.0
    %4816 = vmatpush1.xpose.msra.mxu0 0.0
    %4817 = vmatprep.subr.mxu0 0.0
    %4818 = vmatpush1.xpose.msra.mxu0 0.0
    %4819 = vmatprep.subr.mxu0 0.0
    %4820 = vmatpush1.xpose.msra.mxu0 0.0
    %4821 = vmatprep.subr.mxu0 0.0
    %4822 = vmatpush1.xpose.msra.mxu0 0.0
    %4823 = vmatprep.subr.mxu0 0.0
    %4824 = vmatpush1.xpose.msra.mxu0 0.0
    %4825 = vmatprep.subr.mxu0 0.0
    %4826 = vmatpush1.xpose.msra.mxu0 0.0
    %4827 = vmatprep.subr.mxu0 0.0
    %4828 = vmatpush1.xpose.msra.mxu0 0.0
    %4829 = vmatprep.subr.mxu0 0.0
    %4830 = vmatpush1.xpose.msra.mxu0 0.0
    %4831 = vmatprep.subr.mxu0 0.0
    %4832 = vmatpush1.xpose.msra.mxu0 0.0
    %4833 = vmatprep.subr.mxu0 0.0
    %4834 = vmatpush1.xpose.msra.mxu0 0.0
    %4835 = vmatprep.subr.mxu0 0.0
    %4836 = vmatpush1.xpose.msra.mxu0 0.0
    %4837 = vmatprep.subr.mxu0 0.0
    %4838 = vmatpush1.xpose.msra.mxu0 0.0
    %4839 = vmatprep.subr.mxu0 0.0
    %4840 = vmatpush1.xpose.msra.mxu0 0.0
    %4841 = vmatprep.subr.mxu0 0.0
    %4842 = vmatpush1.xpose.msra.mxu0 0.0
    %4843 = vmatprep.subr.mxu0 0.0
    %4844 = vmatpush1.xpose.msra.mxu0 0.0
    %4845 = vmatprep.subr.mxu0 0.0
    %4846 = vmatpush1.xpose.msra.mxu0 0.0
    %4847 = vmatprep.subr.mxu0 0.0
    %4848 = vmatpush1.xpose.msra.mxu0 0.0
    %4849 = vmatprep.subr.mxu0 0.0
    %4850 = vmatpush1.xpose.msra.mxu0 0.0
    %4851 = vmatprep.subr.mxu0 0.0
    %4852 = vmatpush1.xpose.msra.mxu0 0.0
    %4853 = vmatprep.subr.mxu0 0.0
    %4854 = vmatpush1.xpose.msra.mxu0 0.0
    %4855 = vmatprep.subr.mxu0 0.0
    %4856 = vmatpush1.xpose.msra.mxu0 0.0
    %4857 = vmatprep.subr.mxu0 0.0
    %4858 = vmatpush1.xpose.msra.mxu0 0.0
    %4859 = vmatprep.subr.mxu0 0.0
    %4860 = vmatpush1.xpose.msra.mxu0 0.0
    %4861 = vmatprep.subr.mxu0 0.0
    %4862 = vmatpush1.xpose.msra.mxu0 0.0
    %4863 = vmatprep.subr.mxu0 0.0
    %4864 = vmatpush1.xpose.msra.mxu0 0.0
    %4865 = vmatprep.subr.mxu0 0.0
    %4866 = vmatpush1.xpose.msra.mxu0 0.0
    %4867 = vmatprep.subr.mxu0 0.0
    %4868 = vmatpush1.xpose.msra.mxu0 0.0
    %4869 = vmatprep.subr.mxu0 0.0
    %4870 = vmatpush1.xpose.msra.mxu0 0.0
    %4871 = vmatprep.subr.mxu0 0.0
    %4872 = vmatpush1.xpose.msra.mxu0 0.0
    %4873 = vmatprep.subr.mxu0 0.0
    %4874 = vmatpush1.xpose.msra.mxu0 0.0
    %4875 = vmatprep.mubr.f32.mxu0 0.0
    %4876 = vmatmul.mubr.f32.gmra.mrb[0].mxu0 %v4803
    %v4877 = vpop.f32.mrb[0].mxu0
    %v4878 = vadd.f32 %v4563, %v4877
    %v4879 = vpop.f32.mrb[0].mxu0
    %4880 = vdwg.mxu0
    %v4882 = vsel %vm3251, %v880, 0
    %v4885 = vsel %vm3251, %v1920, 0
    %v4888 = vsel %vm3251, %v2056, 0
    %4890 = vmatprep.subr.mxu0 0.0
    %4891 = vmatpush1.xpose.msra.mxu0 %v4885
    %4892 = vmatprep.subr.mxu0 0.0
    %4893 = vmatpush1.xpose.msra.mxu0 %v4888
    %4894 = vmatprep.subr.mxu0 0.0
    %4895 = vmatpush1.xpose.msra.mxu0 0.0
    %4896 = vmatprep.subr.mxu0 0.0
    %4897 = vmatpush1.xpose.msra.mxu0 0.0
    %4898 = vmatprep.subr.mxu0 0.0
    %4899 = vmatpush1.xpose.msra.mxu0 0.0
    %4900 = vmatprep.subr.mxu0 0.0
    %4901 = vmatpush1.xpose.msra.mxu0 0.0
    %4902 = vmatprep.subr.mxu0 0.0
    %4903 = vmatpush1.xpose.msra.mxu0 0.0
    %4904 = vmatprep.subr.mxu0 0.0
    %4905 = vmatpush1.xpose.msra.mxu0 0.0
    %4906 = vmatprep.subr.mxu0 0.0
    %4907 = vmatpush1.xpose.msra.mxu0 0.0
    %4908 = vmatprep.subr.mxu0 0.0
    %4909 = vmatpush1.xpose.msra.mxu0 0.0
    %4910 = vmatprep.subr.mxu0 0.0
    %4911 = vmatpush1.xpose.msra.mxu0 0.0
    %4912 = vmatprep.subr.mxu0 0.0
    %4913 = vmatpush1.xpose.msra.mxu0 0.0
    %4914 = vmatprep.subr.mxu0 0.0
    %4915 = vmatpush1.xpose.msra.mxu0 0.0
    %4916 = vmatprep.subr.mxu0 0.0
    %4917 = vmatpush1.xpose.msra.mxu0 0.0
    %4918 = vmatprep.subr.mxu0 0.0
    %4919 = vmatpush1.xpose.msra.mxu0 0.0
    %4920 = vmatprep.subr.mxu0 0.0
    %4921 = vmatpush1.xpose.msra.mxu0 0.0
    %4922 = vmatprep.subr.mxu0 0.0
    %4923 = vmatpush1.xpose.msra.mxu0 0.0
    %4924 = vmatprep.subr.mxu0 0.0
    %4925 = vmatpush1.xpose.msra.mxu0 0.0
    %4926 = vmatprep.subr.mxu0 0.0
    %4927 = vmatpush1.xpose.msra.mxu0 0.0
    %4928 = vmatprep.subr.mxu0 0.0
    %4929 = vmatpush1.xpose.msra.mxu0 0.0
    %4930 = vmatprep.subr.mxu0 0.0
    %4931 = vmatpush1.xpose.msra.mxu0 0.0
    %4932 = vmatprep.subr.mxu0 0.0
    %4933 = vmatpush1.xpose.msra.mxu0 0.0
    %4934 = vmatprep.subr.mxu0 0.0
    %4935 = vmatpush1.xpose.msra.mxu0 0.0
    %4936 = vmatprep.subr.mxu0 0.0
    %4937 = vmatpush1.xpose.msra.mxu0 0.0
    %4938 = vmatprep.subr.mxu0 0.0
    %4939 = vmatpush1.xpose.msra.mxu0 0.0
    %4940 = vmatprep.subr.mxu0 0.0
    %4941 = vmatpush1.xpose.msra.mxu0 0.0
    %4942 = vmatprep.subr.mxu0 0.0
    %4943 = vmatpush1.xpose.msra.mxu0 0.0
    %4944 = vmatprep.subr.mxu0 0.0
    %4945 = vmatpush1.xpose.msra.mxu0 0.0
    %4946 = vmatprep.subr.mxu0 0.0
    %4947 = vmatpush1.xpose.msra.mxu0 0.0
    %4948 = vmatprep.subr.mxu0 0.0
    %4949 = vmatpush1.xpose.msra.mxu0 0.0
    %4950 = vmatprep.subr.mxu0 0.0
    %4951 = vmatpush1.xpose.msra.mxu0 0.0
    %4952 = vmatprep.subr.mxu0 0.0
    %4953 = vmatpush1.xpose.msra.mxu0 0.0
    %4954 = vmatprep.mubr.f32.mxu0 0.0
    %4955 = vmatmul.mubr.f32.gmra.mrb[0].mxu0 %v4882
    %v4956 = vpop.f32.mrb[0].mxu0
    %v4957 = vadd.f32 %v4563, %v4956
    %v4958 = vpop.f32.mrb[0].mxu0
    %4959 = vdwg.mxu0
    %v4961 = vsel %vm3251, %v881, 0
    %v4964 = vsel %vm3251, %v1921, 0
    %v4967 = vsel %vm3251, %v2057, 0
    %4969 = vmatprep.subr.mxu0 0.0
    %4970 = vmatpush1.xpose.msra.mxu0 %v4964
    %4971 = vmatprep.subr.mxu0 0.0
    %4972 = vmatpush1.xpose.msra.mxu0 %v4967
    %4973 = vmatprep.subr.mxu0 0.0
    %4974 = vmatpush1.xpose.msra.mxu0 0.0
    %4975 = vmatprep.subr.mxu0 0.0
    %4976 = vmatpush1.xpose.msra.mxu0 0.0
    %4977 = vmatprep.subr.mxu0 0.0
    %4978 = vmatpush1.xpose.msra.mxu0 0.0
    %4979 = vmatprep.subr.mxu0 0.0
    %4980 = vmatpush1.xpose.msra.mxu0 0.0
    %4981 = vmatprep.subr.mxu0 0.0
    %4982 = vmatpush1.xpose.msra.mxu0 0.0
    %4983 = vmatprep.subr.mxu0 0.0
    %4984 = vmatpush1.xpose.msra.mxu0 0.0
    %4985 = vmatprep.subr.mxu0 0.0
    %4986 = vmatpush1.xpose.msra.mxu0 0.0
    %4987 = vmatprep.subr.mxu0 0.0
    %4988 = vmatpush1.xpose.msra.mxu0 0.0
    %4989 = vmatprep.subr.mxu0 0.0
    %4990 = vmatpush1.xpose.msra.mxu0 0.0
    %4991 = vmatprep.subr.mxu0 0.0
    %4992 = vmatpush1.xpose.msra.mxu0 0.0
    %4993 = vmatprep.subr.mxu0 0.0
    %4994 = vmatpush1.xpose.msra.mxu0 0.0
    %4995 = vmatprep.subr.mxu0 0.0
    %4996 = vmatpush1.xpose.msra.mxu0 0.0
    %4997 = vmatprep.subr.mxu0 0.0
    %4998 = vmatpush1.xpose.msra.mxu0 0.0
    %4999 = vmatprep.subr.mxu0 0.0
    %5000 = vmatpush1.xpose.msra.mxu0 0.0
    %5001 = vmatprep.subr.mxu0 0.0
    %5002 = vmatpush1.xpose.msra.mxu0 0.0
    %5003 = vmatprep.subr.mxu0 0.0
    %5004 = vmatpush1.xpose.msra.mxu0 0.0
    %5005 = vmatprep.subr.mxu0 0.0
    %5006 = vmatpush1.xpose.msra.mxu0 0.0
    %5007 = vmatprep.subr.mxu0 0.0
    %5008 = vmatpush1.xpose.msra.mxu0 0.0
    %5009 = vmatprep.subr.mxu0 0.0
    %5010 = vmatpush1.xpose.msra.mxu0 0.0
    %5011 = vmatprep.subr.mxu0 0.0
    %5012 = vmatpush1.xpose.msra.mxu0 0.0
    %5013 = vmatprep.subr.mxu0 0.0
    %5014 = vmatpush1.xpose.msra.mxu0 0.0
    %5015 = vmatprep.subr.mxu0 0.0
    %5016 = vmatpush1.xpose.msra.mxu0 0.0
    %5017 = vmatprep.subr.mxu0 0.0
    %5018 = vmatpush1.xpose.msra.mxu0 0.0
    %5019 = vmatprep.subr.mxu0 0.0
    %5020 = vmatpush1.xpose.msra.mxu0 0.0
    %5021 = vmatprep.subr.mxu0 0.0
    %5022 = vmatpush1.xpose.msra.mxu0 0.0
    %5023 = vmatprep.subr.mxu0 0.0
    %5024 = vmatpush1.xpose.msra.mxu0 0.0
    %5025 = vmatprep.subr.mxu0 0.0
    %5026 = vmatpush1.xpose.msra.mxu0 0.0
    %5027 = vmatprep.subr.mxu0 0.0
    %5028 = vmatpush1.xpose.msra.mxu0 0.0
    %5029 = vmatprep.subr.mxu0 0.0
    %5030 = vmatpush1.xpose.msra.mxu0 0.0
    %5031 = vmatprep.subr.mxu0 0.0
    %5032 = vmatpush1.xpose.msra.mxu0 0.0
    %5033 = vmatprep.mubr.f32.mxu0 0.0
    %5034 = vmatmul.mubr.f32.gmra.mrb[0].mxu0 %v4961
    %v5035 = vpop.f32.mrb[0].mxu0
    %v5036 = vadd.f32 %v4563, %v5035
    %v5037 = vpop.f32.mrb[0].mxu0
    %5038 = vdwg.mxu0
    %v5040 = vsel %vm3251, %v882, 0
    %v5043 = vsel %vm3251, %v1922, 0
    %v5046 = vsel %vm3251, %v2058, 0
    %5048 = vmatprep.subr.mxu0 0.0
    %5049 = vmatpush1.xpose.msra.mxu0 %v5043
    %5050 = vmatprep.subr.mxu0 0.0
    %5051 = vmatpush1.xpose.msra.mxu0 %v5046
    %5052 = vmatprep.subr.mxu0 0.0
    %5053 = vmatpush1.xpose.msra.mxu0 0.0
    %5054 = vmatprep.subr.mxu0 0.0
    %5055 = vmatpush1.xpose.msra.mxu0 0.0
    %5056 = vmatprep.subr.mxu0 0.0
    %5057 = vmatpush1.xpose.msra.mxu0 0.0
    %5058 = vmatprep.subr.mxu0 0.0
    %5059 = vmatpush1.xpose.msra.mxu0 0.0
    %5060 = vmatprep.subr.mxu0 0.0
    %5061 = vmatpush1.xpose.msra.mxu0 0.0
    %5062 = vmatprep.subr.mxu0 0.0
    %5063 = vmatpush1.xpose.msra.mxu0 0.0
    %5064 = vmatprep.subr.mxu0 0.0
    %5065 = vmatpush1.xpose.msra.mxu0 0.0
    %5066 = vmatprep.subr.mxu0 0.0
    %5067 = vmatpush1.xpose.msra.mxu0 0.0
    %5068 = vmatprep.subr.mxu0 0.0
    %5069 = vmatpush1.xpose.msra.mxu0 0.0
    %5070 = vmatprep.subr.mxu0 0.0
    %5071 = vmatpush1.xpose.msra.mxu0 0.0
    %5072 = vmatprep.subr.mxu0 0.0
    %5073 = vmatpush1.xpose.msra.mxu0 0.0
    %5074 = vmatprep.subr.mxu0 0.0
    %5075 = vmatpush1.xpose.msra.mxu0 0.0
    %5076 = vmatprep.subr.mxu0 0.0
    %5077 = vmatpush1.xpose.msra.mxu0 0.0
    %5078 = vmatprep.subr.mxu0 0.0
    %5079 = vmatpush1.xpose.msra.mxu0 0.0
    %5080 = vmatprep.subr.mxu0 0.0
    %5081 = vmatpush1.xpose.msra.mxu0 0.0
    %5082 = vmatprep.subr.mxu0 0.0
    %5083 = vmatpush1.xpose.msra.mxu0 0.0
    %5084 = vmatprep.subr.mxu0 0.0
    %5085 = vmatpush1.xpose.msra.mxu0 0.0
    %5086 = vmatprep.subr.mxu0 0.0
    %5087 = vmatpush1.xpose.msra.mxu0 0.0
    %5088 = vmatprep.subr.mxu0 0.0
    %5089 = vmatpush1.xpose.msra.mxu0 0.0
    %5090 = vmatprep.subr.mxu0 0.0
    %5091 = vmatpush1.xpose.msra.mxu0 0.0
    %5092 = vmatprep.subr.mxu0 0.0
    %5093 = vmatpush1.xpose.msra.mxu0 0.0
    %5094 = vmatprep.subr.mxu0 0.0
    %5095 = vmatpush1.xpose.msra.mxu0 0.0
    %5096 = vmatprep.subr.mxu0 0.0
    %5097 = vmatpush1.xpose.msra.mxu0 0.0
    %5098 = vmatprep.subr.mxu0 0.0
    %5099 = vmatpush1.xpose.msra.mxu0 0.0
    %5100 = vmatprep.subr.mxu0 0.0
    %5101 = vmatpush1.xpose.msra.mxu0 0.0
    %5102 = vmatprep.subr.mxu0 0.0
    %5103 = vmatpush1.xpose.msra.mxu0 0.0
    %5104 = vmatprep.subr.mxu0 0.0
    %5105 = vmatpush1.xpose.msra.mxu0 0.0
    %5106 = vmatprep.subr.mxu0 0.0
    %5107 = vmatpush1.xpose.msra.mxu0 0.0
    %5108 = vmatprep.subr.mxu0 0.0
    %5109 = vmatpush1.xpose.msra.mxu0 0.0
    %5110 = vmatprep.subr.mxu0 0.0
    %5111 = vmatpush1.xpose.msra.mxu0 0.0
    %5112 = vmatprep.mubr.f32.mxu0 0.0
    %5113 = vmatmul.mubr.f32.gmra.mrb[0].mxu0 %v5040
    %v5114 = vpop.f32.mrb[0].mxu0
    %v5115 = vadd.f32 %v4563, %v5114
    %v5116 = vpop.f32.mrb[0].mxu0
    %5117 = vdwg.mxu0
    %v5119 = vsel %vm3251, %v883, 0
    %v5122 = vsel %vm3251, %v1923, 0
    %v5125 = vsel %vm3251, %v2059, 0
    %5127 = vmatprep.subr.mxu0 0.0
    %5128 = vmatpush1.xpose.msra.mxu0 %v5122
    %5129 = vmatprep.subr.mxu0 0.0
    %5130 = vmatpush1.xpose.msra.mxu0 %v5125
    %5131 = vmatprep.subr.mxu0 0.0
    %5132 = vmatpush1.xpose.msra.mxu0 0.0
    %5133 = vmatprep.subr.mxu0 0.0
    %5134 = vmatpush1.xpose.msra.mxu0 0.0
    %5135 = vmatprep.subr.mxu0 0.0
    %5136 = vmatpush1.xpose.msra.mxu0 0.0
    %5137 = vmatprep.subr.mxu0 0.0
    %5138 = vmatpush1.xpose.msra.mxu0 0.0
    %5139 = vmatprep.subr.mxu0 0.0
    %5140 = vmatpush1.xpose.msra.mxu0 0.0
    %5141 = vmatprep.subr.mxu0 0.0
    %5142 = vmatpush1.xpose.msra.mxu0 0.0
    %5143 = vmatprep.subr.mxu0 0.0
    %5144 = vmatpush1.xpose.msra.mxu0 0.0
    %5145 = vmatprep.subr.mxu0 0.0
    %5146 = vmatpush1.xpose.msra.mxu0 0.0
    %5147 = vmatprep.subr.mxu0 0.0
    %5148 = vmatpush1.xpose.msra.mxu0 0.0
    %5149 = vmatprep.subr.mxu0 0.0
    %5150 = vmatpush1.xpose.msra.mxu0 0.0
    %5151 = vmatprep.subr.mxu0 0.0
    %5152 = vmatpush1.xpose.msra.mxu0 0.0
    %5153 = vmatprep.subr.mxu0 0.0
    %5154 = vmatpush1.xpose.msra.mxu0 0.0
    %5155 = vmatprep.subr.mxu0 0.0
    %5156 = vmatpush1.xpose.msra.mxu0 0.0
    %5157 = vmatprep.subr.mxu0 0.0
    %5158 = vmatpush1.xpose.msra.mxu0 0.0
    %5159 = vmatprep.subr.mxu0 0.0
    %5160 = vmatpush1.xpose.msra.mxu0 0.0
    %5161 = vmatprep.subr.mxu0 0.0
    %5162 = vmatpush1.xpose.msra.mxu0 0.0
    %5163 = vmatprep.subr.mxu0 0.0
    %5164 = vmatpush1.xpose.msra.mxu0 0.0
    %5165 = vmatprep.subr.mxu0 0.0
    %5166 = vmatpush1.xpose.msra.mxu0 0.0
    %5167 = vmatprep.subr.mxu0 0.0
    %5168 = vmatpush1.xpose.msra.mxu0 0.0
    %5169 = vmatprep.subr.mxu0 0.0
    %5170 = vmatpush1.xpose.msra.mxu0 0.0
    %5171 = vmatprep.subr.mxu0 0.0
    %5172 = vmatpush1.xpose.msra.mxu0 0.0
    %5173 = vmatprep.subr.mxu0 0.0
    %5174 = vmatpush1.xpose.msra.mxu0 0.0
    %5175 = vmatprep.subr.mxu0 0.0
    %5176 = vmatpush1.xpose.msra.mxu0 0.0
    %5177 = vmatprep.subr.mxu0 0.0
    %5178 = vmatpush1.xpose.msra.mxu0 0.0
    %5179 = vmatprep.subr.mxu0 0.0
    %5180 = vmatpush1.xpose.msra.mxu0 0.0
    %5181 = vmatprep.subr.mxu0 0.0
    %5182 = vmatpush1.xpose.msra.mxu0 0.0
    %5183 = vmatprep.subr.mxu0 0.0
    %5184 = vmatpush1.xpose.msra.mxu0 0.0
    %5185 = vmatprep.subr.mxu0 0.0
    %5186 = vmatpush1.xpose.msra.mxu0 0.0
    %5187 = vmatprep.subr.mxu0 0.0
    %5188 = vmatpush1.xpose.msra.mxu0 0.0
    %5189 = vmatprep.subr.mxu0 0.0
    %5190 = vmatpush1.xpose.msra.mxu0 0.0
    %5191 = vmatprep.mubr.f32.mxu0 0.0
    %5192 = vmatmul.mubr.f32.gmra.mrb[0].mxu0 %v5119
    %v5193 = vpop.f32.mrb[0].mxu0
    %v5194 = vadd.f32 %v4563, %v5193
    %v5195 = vpop.f32.mrb[0].mxu0
    %5196 = vdwg.mxu0
    %v5197 = vsel %vm3884, %v4641, -inf
    %5198 = vmax.xlane.f32.xlu0 %v5197
    %v5199 = vpop.xlane.xlu0 %5198
    %v5200 = vsel %vm3884, %v4720, -inf
    %5201 = vmax.xlane.f32.xlu0 %v5200
    %v5202 = vpop.xlane.xlu0 %5201
    %v5203 = vsel %vm3884, %v4799, -inf
    %5204 = vmax.xlane.f32.xlu0 %v5203
    %v5205 = vpop.xlane.xlu0 %5204
    %v5206 = vsel %vm3884, %v4878, -inf
    %5207 = vmax.xlane.f32.xlu0 %v5206
    %v5208 = vpop.xlane.xlu0 %5207
    %v5209 = vsel %vm3884, %v4957, -inf
    %5210 = vmax.xlane.f32.xlu0 %v5209
    %v5211 = vpop.xlane.xlu0 %5210
    %v5212 = vsel %vm3884, %v5036, -inf
    %5213 = vmax.xlane.f32.xlu0 %v5212
    %v5214 = vpop.xlane.xlu0 %5213
    %v5215 = vsel %vm3884, %v5115, -inf
    %5216 = vmax.xlane.f32.xlu0 %v5215
    %v5217 = vpop.xlane.xlu0 %5216
    %v5218 = vsel %vm3884, %v5194, -inf
    %5219 = vmax.xlane.f32.xlu0 %v5218
    %v5220 = vpop.xlane.xlu0 %5219
    %v5221 = vsub.f32 %v4641, %v5199
    %v5222 = vsub.f32 %v4720, %v5202
    %v5223 = vsub.f32 %v4799, %v5205
    %v5224 = vsub.f32 %v4878, %v5208
    %v5225 = vsub.f32 %v4957, %v5211
    %v5226 = vsub.f32 %v5036, %v5214
    %v5227 = vsub.f32 %v5115, %v5217
    %v5228 = vsub.f32 %v5194, %v5220
    %v5229 = vmul.f32 %v5221, 1.442695
    %v5230 = vpow.pop %v5229
    %v5231 = vmul.f32 %v5222, 1.442695
    %v5232 = vpow.pop %v5231
    %v5233 = vmul.f32 %v5223, 1.442695
    %v5234 = vpow.pop %v5233
    %v5235 = vmul.f32 %v5224, 1.442695
    %v5236 = vpow.pop %v5235
    %v5237 = vmul.f32 %v5225, 1.442695
    %v5238 = vpow.pop %v5237
    %v5239 = vmul.f32 %v5226, 1.442695
    %v5240 = vpow.pop %v5239
    %v5241 = vmul.f32 %v5227, 1.442695
    %v5242 = vpow.pop %v5241
    %v5243 = vmul.f32 %v5228, 1.442695
    %v5244 = vpow.pop %v5243
    %v5245 = vsel %vm3884, %v5230, 0.0
    %5246 = vadd.xlane.f32.xlu0 %v5245
    %v5247 = vpop.xlane.xlu0 %5246
    %v5248 = vsel %vm3884, %v5232, 0.0
    %5249 = vadd.xlane.f32.xlu0 %v5248
    %v5250 = vpop.xlane.xlu0 %5249
    %v5251 = vsel %vm3884, %v5234, 0.0
    %5252 = vadd.xlane.f32.xlu0 %v5251
    %v5253 = vpop.xlane.xlu0 %5252
    %v5254 = vsel %vm3884, %v5236, 0.0
    %5255 = vadd.xlane.f32.xlu0 %v5254
    %v5256 = vpop.xlane.xlu0 %5255
    %v5257 = vsel %vm3884, %v5238, 0.0
    %5258 = vadd.xlane.f32.xlu0 %v5257
    %v5259 = vpop.xlane.xlu0 %5258
    %v5260 = vsel %vm3884, %v5240, 0.0
    %5261 = vadd.xlane.f32.xlu0 %v5260
    %v5262 = vpop.xlane.xlu0 %5261
    %v5263 = vsel %vm3884, %v5242, 0.0
    %5264 = vadd.xlane.f32.xlu0 %v5263
    %v5265 = vpop.xlane.xlu0 %5264
    %v5266 = vsel %vm3884, %v5244, 0.0
    %5267 = vadd.xlane.f32.xlu0 %v5266
    %v5268 = vpop.xlane.xlu0 %5267
    %v5269 = vrcp.pop %v5247
    %v5270 = vrcp.pop %v5250
    %v5271 = vrcp.pop %v5253
    %v5272 = vrcp.pop %v5256
    %v5273 = vrcp.pop %v5259
    %v5274 = vrcp.pop %v5262
    %v5275 = vrcp.pop %v5265
    %v5276 = vrcp.pop %v5268
    %v5277 = vmul.f32 %v5230, %v5269
    %v5278 = vmul.f32 %v5232, %v5270
    %v5279 = vmul.f32 %v5234, %v5271
    %v5280 = vmul.f32 %v5236, %v5272
    %v5281 = vmul.f32 %v5238, %v5273
    %v5282 = vmul.f32 %v5240, %v5274
    %v5283 = vmul.f32 %v5242, %v5275
    %v5284 = vmul.f32 %v5244, %v5276
    %v5286 = vsel %vm3884, %v5277, 0
    %5288 = vmatprep.subr.mxu0 0.0
    %5289 = vmatpush1.msra.mxu0 %v3100
    %5290 = vmatprep.subr.mxu0 0.0
    %5291 = vmatpush1.msra.mxu0 %v3236
    %5292 = vmatprep.subr.mxu0 0.0
    %5293 = vmatpush1.msra.mxu0 0.0
    %5294 = vmatprep.subr.mxu0 0.0
    %5295 = vmatpush1.msra.mxu0 0.0
    %5296 = vmatprep.subr.mxu0 0.0
    %5297 = vmatpush1.msra.mxu0 0.0
    %5298 = vmatprep.subr.mxu0 0.0
    %5299 = vmatpush1.msra.mxu0 0.0
    %5300 = vmatprep.subr.mxu0 0.0
    %5301 = vmatpush1.msra.mxu0 0.0
    %5302 = vmatprep.subr.mxu0 0.0
    %5303 = vmatpush1.msra.mxu0 0.0
    %5304 = vmatprep.subr.mxu0 0.0
    %5305 = vmatpush1.msra.mxu0 0.0
    %5306 = vmatprep.subr.mxu0 0.0
    %5307 = vmatpush1.msra.mxu0 0.0
    %5308 = vmatprep.subr.mxu0 0.0
    %5309 = vmatpush1.msra.mxu0 0.0
    %5310 = vmatprep.subr.mxu0 0.0
    %5311 = vmatpush1.msra.mxu0 0.0
    %5312 = vmatprep.subr.mxu0 0.0
    %5313 = vmatpush1.msra.mxu0 0.0
    %5314 = vmatprep.subr.mxu0 0.0
    %5315 = vmatpush1.msra.mxu0 0.0
    %5316 = vmatprep.subr.mxu0 0.0
    %5317 = vmatpush1.msra.mxu0 0.0
    %5318 = vmatprep.subr.mxu0 0.0
    %5319 = vmatpush1.msra.mxu0 0.0
    %5320 = vmatprep.subr.mxu0 0.0
    %5321 = vmatpush1.msra.mxu0 0.0
    %5322 = vmatprep.subr.mxu0 0.0
    %5323 = vmatpush1.msra.mxu0 0.0
    %5324 = vmatprep.subr.mxu0 0.0
    %5325 = vmatpush1.msra.mxu0 0.0
    %5326 = vmatprep.subr.mxu0 0.0
    %5327 = vmatpush1.msra.mxu0 0.0
    %5328 = vmatprep.subr.mxu0 0.0
    %5329 = vmatpush1.msra.mxu0 0.0
    %5330 = vmatprep.subr.mxu0 0.0
    %5331 = vmatpush1.msra.mxu0 0.0
    %5332 = vmatprep.subr.mxu0 0.0
    %5333 = vmatpush1.msra.mxu0 0.0
    %5334 = vmatprep.subr.mxu0 0.0
    %5335 = vmatpush1.msra.mxu0 0.0
    %5336 = vmatprep.subr.mxu0 0.0
    %5337 = vmatpush1.msra.mxu0 0.0
    %5338 = vmatprep.subr.mxu0 0.0
    %5339 = vmatpush1.msra.mxu0 0.0
    %5340 = vmatprep.subr.mxu0 0.0
    %5341 = vmatpush1.msra.mxu0 0.0
    %5342 = vmatprep.subr.mxu0 0.0
    %5343 = vmatpush1.msra.mxu0 0.0
    %5344 = vmatprep.subr.mxu0 0.0
    %5345 = vmatpush1.msra.mxu0 0.0
    %5346 = vmatprep.subr.mxu0 0.0
    %5347 = vmatpush1.msra.mxu0 0.0
    %5348 = vmatprep.subr.mxu0 0.0
    %5349 = vmatpush1.msra.mxu0 0.0
    %5350 = vmatprep.subr.mxu0 0.0
    %5351 = vmatpush1.msra.mxu0 0.0
    %5352 = vmatprep.mubr.f32.mxu0 0.0
    %5353 = vmatmul.mubr.f32.gmra.mrb[0].mxu0 %v5286
    %v5354 = vpop.f32.mrb[0].mxu0
    %v5355 = vadd.f32 0.0, %v5354
    %v5356 = vpop.f32.mrb[0].mxu0
    %5357 = vdwg.mxu0
    %v5359 = vsel %vm3884, %v5278, 0
    %5361 = vmatprep.subr.mxu0 0.0
    %5362 = vmatpush1.msra.mxu0 %v3101
    %5363 = vmatprep.subr.mxu0 0.0
    %5364 = vmatpush1.msra.mxu0 %v3237
    %5365 = vmatprep.subr.mxu0 0.0
    %5366 = vmatpush1.msra.mxu0 0.0
    %5367 = vmatprep.subr.mxu0 0.0
    %5368 = vmatpush1.msra.mxu0 0.0
    %5369 = vmatprep.subr.mxu0 0.0
    %5370 = vmatpush1.msra.mxu0 0.0
    %5371 = vmatprep.subr.mxu0 0.0
    %5372 = vmatpush1.msra.mxu0 0.0
    %5373 = vmatprep.subr.mxu0 0.0
    %5374 = vmatpush1.msra.mxu0 0.0
    %5375 = vmatprep.subr.mxu0 0.0
    %5376 = vmatpush1.msra.mxu0 0.0
    %5377 = vmatprep.subr.mxu0 0.0
    %5378 = vmatpush1.msra.mxu0 0.0
    %5379 = vmatprep.subr.mxu0 0.0
    %5380 = vmatpush1.msra.mxu0 0.0
    %5381 = vmatprep.subr.mxu0 0.0
    %5382 = vmatpush1.msra.mxu0 0.0
    %5383 = vmatprep.subr.mxu0 0.0
    %5384 = vmatpush1.msra.mxu0 0.0
    %5385 = vmatprep.subr.mxu0 0.0
    %5386 = vmatpush1.msra.mxu0 0.0
    %5387 = vmatprep.subr.mxu0 0.0
    %5388 = vmatpush1.msra.mxu0 0.0
    %5389 = vmatprep.subr.mxu0 0.0
    %5390 = vmatpush1.msra.mxu0 0.0
    %5391 = vmatprep.subr.mxu0 0.0
    %5392 = vmatpush1.msra.mxu0 0.0
    %5393 = vmatprep.subr.mxu0 0.0
    %5394 = vmatpush1.msra.mxu0 0.0
    %5395 = vmatprep.subr.mxu0 0.0
    %5396 = vmatpush1.msra.mxu0 0.0
    %5397 = vmatprep.subr.mxu0 0.0
    %5398 = vmatpush1.msra.mxu0 0.0
    %5399 = vmatprep.subr.mxu0 0.0
    %5400 = vmatpush1.msra.mxu0 0.0
    %5401 = vmatprep.subr.mxu0 0.0
    %5402 = vmatpush1.msra.mxu0 0.0
    %5403 = vmatprep.subr.mxu0 0.0
    %5404 = vmatpush1.msra.mxu0 0.0
    %5405 = vmatprep.subr.mxu0 0.0
    %5406 = vmatpush1.msra.mxu0 0.0
    %5407 = vmatprep.subr.mxu0 0.0
    %5408 = vmatpush1.msra.mxu0 0.0
    %5409 = vmatprep.subr.mxu0 0.0
    %5410 = vmatpush1.msra.mxu0 0.0
    %5411 = vmatprep.subr.mxu0 0.0
    %5412 = vmatpush1.msra.mxu0 0.0
    %5413 = vmatprep.subr.mxu0 0.0
    %5414 = vmatpush1.msra.mxu0 0.0
    %5415 = vmatprep.subr.mxu0 0.0
    %5416 = vmatpush1.msra.mxu0 0.0
    %5417 = vmatprep.subr.mxu0 0.0
    %5418 = vmatpush1.msra.mxu0 0.0
    %5419 = vmatprep.subr.mxu0 0.0
    %5420 = vmatpush1.msra.mxu0 0.0
    %5421 = vmatprep.subr.mxu0 0.0
    %5422 = vmatpush1.msra.mxu0 0.0
    %5423 = vmatprep.subr.mxu0 0.0
    %5424 = vmatpush1.msra.mxu0 0.0
    %5425 = vmatprep.mubr.f32.mxu0 0.0
    %5426 = vmatmul.mubr.f32.gmra.mrb[0].mxu0 %v5359
    %v5427 = vpop.f32.mrb[0].mxu0
    %v5428 = vadd.f32 0.0, %v5427
    %v5429 = vpop.f32.mrb[0].mxu0
    %5430 = vdwg.mxu0
    %v5432 = vsel %vm3884, %v5279, 0
    %5434 = vmatprep.subr.mxu0 0.0
    %5435 = vmatpush1.msra.mxu0 %v3102
    %5436 = vmatprep.subr.mxu0 0.0
    %5437 = vmatpush1.msra.mxu0 %v3238
    %5438 = vmatprep.subr.mxu0 0.0
    %5439 = vmatpush1.msra.mxu0 0.0
    %5440 = vmatprep.subr.mxu0 0.0
    %5441 = vmatpush1.msra.mxu0 0.0
    %5442 = vmatprep.subr.mxu0 0.0
    %5443 = vmatpush1.msra.mxu0 0.0
    %5444 = vmatprep.subr.mxu0 0.0
    %5445 = vmatpush1.msra.mxu0 0.0
    %5446 = vmatprep.subr.mxu0 0.0
    %5447 = vmatpush1.msra.mxu0 0.0
    %5448 = vmatprep.subr.mxu0 0.0
    %5449 = vmatpush1.msra.mxu0 0.0
    %5450 = vmatprep.subr.mxu0 0.0
    %5451 = vmatpush1.msra.mxu0 0.0
    %5452 = vmatprep.subr.mxu0 0.0
    %5453 = vmatpush1.msra.mxu0 0.0
    %5454 = vmatprep.subr.mxu0 0.0
    %5455 = vmatpush1.msra.mxu0 0.0
    %5456 = vmatprep.subr.mxu0 0.0
    %5457 = vmatpush1.msra.mxu0 0.0
    %5458 = vmatprep.subr.mxu0 0.0
    %5459 = vmatpush1.msra.mxu0 0.0
    %5460 = vmatprep.subr.mxu0 0.0
    %5461 = vmatpush1.msra.mxu0 0.0
    %5462 = vmatprep.subr.mxu0 0.0
    %5463 = vmatpush1.msra.mxu0 0.0
    %5464 = vmatprep.subr.mxu0 0.0
    %5465 = vmatpush1.msra.mxu0 0.0
    %5466 = vmatprep.subr.mxu0 0.0
    %5467 = vmatpush1.msra.mxu0 0.0
    %5468 = vmatprep.subr.mxu0 0.0
    %5469 = vmatpush1.msra.mxu0 0.0
    %5470 = vmatprep.subr.mxu0 0.0
    %5471 = vmatpush1.msra.mxu0 0.0
    %5472 = vmatprep.subr.mxu0 0.0
    %5473 = vmatpush1.msra.mxu0 0.0
    %5474 = vmatprep.subr.mxu0 0.0
    %5475 = vmatpush1.msra.mxu0 0.0
    %5476 = vmatprep.subr.mxu0 0.0
    %5477 = vmatpush1.msra.mxu0 0.0
    %5478 = vmatprep.subr.mxu0 0.0
    %5479 = vmatpush1.msra.mxu0 0.0
    %5480 = vmatprep.subr.mxu0 0.0
    %5481 = vmatpush1.msra.mxu0 0.0
    %5482 = vmatprep.subr.mxu0 0.0
    %5483 = vmatpush1.msra.mxu0 0.0
    %5484 = vmatprep.subr.mxu0 0.0
    %5485 = vmatpush1.msra.mxu0 0.0
    %5486 = vmatprep.subr.mxu0 0.0
    %5487 = vmatpush1.msra.mxu0 0.0
    %5488 = vmatprep.subr.mxu0 0.0
    %5489 = vmatpush1.msra.mxu0 0.0
    %5490 = vmatprep.subr.mxu0 0.0
    %5491 = vmatpush1.msra.mxu0 0.0
    %5492 = vmatprep.subr.mxu0 0.0
    %5493 = vmatpush1.msra.mxu0 0.0
    %5494 = vmatprep.subr.mxu0 0.0
    %5495 = vmatpush1.msra.mxu0 0.0
    %5496 = vmatprep.subr.mxu0 0.0
    %5497 = vmatpush1.msra.mxu0 0.0
    %5498 = vmatprep.mubr.f32.mxu0 0.0
    %5499 = vmatmul.mubr.f32.gmra.mrb[0].mxu0 %v5432
    %v5500 = vpop.f32.mrb[0].mxu0
    %v5501 = vadd.f32 0.0, %v5500
    %v5502 = vpop.f32.mrb[0].mxu0
    %5503 = vdwg.mxu0
    %v5505 = vsel %vm3884, %v5280, 0
    %5507 = vmatprep.subr.mxu0 0.0
    %5508 = vmatpush1.msra.mxu0 %v3103
    %5509 = vmatprep.subr.mxu0 0.0
    %5510 = vmatpush1.msra.mxu0 %v3239
    %5511 = vmatprep.subr.mxu0 0.0
    %5512 = vmatpush1.msra.mxu0 0.0
    %5513 = vmatprep.subr.mxu0 0.0
    %5514 = vmatpush1.msra.mxu0 0.0
    %5515 = vmatprep.subr.mxu0 0.0
    %5516 = vmatpush1.msra.mxu0 0.0
    %5517 = vmatprep.subr.mxu0 0.0
    %5518 = vmatpush1.msra.mxu0 0.0
    %5519 = vmatprep.subr.mxu0 0.0
    %5520 = vmatpush1.msra.mxu0 0.0
    %5521 = vmatprep.subr.mxu0 0.0
    %5522 = vmatpush1.msra.mxu0 0.0
    %5523 = vmatprep.subr.mxu0 0.0
    %5524 = vmatpush1.msra.mxu0 0.0
    %5525 = vmatprep.subr.mxu0 0.0
    %5526 = vmatpush1.msra.mxu0 0.0
    %5527 = vmatprep.subr.mxu0 0.0
    %5528 = vmatpush1.msra.mxu0 0.0
    %5529 = vmatprep.subr.mxu0 0.0
    %5530 = vmatpush1.msra.mxu0 0.0
    %5531 = vmatprep.subr.mxu0 0.0
    %5532 = vmatpush1.msra.mxu0 0.0
    %5533 = vmatprep.subr.mxu0 0.0
    %5534 = vmatpush1.msra.mxu0 0.0
    %5535 = vmatprep.subr.mxu0 0.0
    %5536 = vmatpush1.msra.mxu0 0.0
    %5537 = vmatprep.subr.mxu0 0.0
    %5538 = vmatpush1.msra.mxu0 0.0
    %5539 = vmatprep.subr.mxu0 0.0
    %5540 = vmatpush1.msra.mxu0 0.0
    %5541 = vmatprep.subr.mxu0 0.0
    %5542 = vmatpush1.msra.mxu0 0.0
    %5543 = vmatprep.subr.mxu0 0.0
    %5544 = vmatpush1.msra.mxu0 0.0
    %5545 = vmatprep.subr.mxu0 0.0
    %5546 = vmatpush1.msra.mxu0 0.0
    %5547 = vmatprep.subr.mxu0 0.0
    %5548 = vmatpush1.msra.mxu0 0.0
    %5549 = vmatprep.subr.mxu0 0.0
    %5550 = vmatpush1.msra.mxu0 0.0
    %5551 = vmatprep.subr.mxu0 0.0
    %5552 = vmatpush1.msra.mxu0 0.0
    %5553 = vmatprep.subr.mxu0 0.0
    %5554 = vmatpush1.msra.mxu0 0.0
    %5555 = vmatprep.subr.mxu0 0.0
    %5556 = vmatpush1.msra.mxu0 0.0
    %5557 = vmatprep.subr.mxu0 0.0
    %5558 = vmatpush1.msra.mxu0 0.0
    %5559 = vmatprep.subr.mxu0 0.0
    %5560 = vmatpush1.msra.mxu0 0.0
    %5561 = vmatprep.subr.mxu0 0.0
    %5562 = vmatpush1.msra.mxu0 0.0
    %5563 = vmatprep.subr.mxu0 0.0
    %5564 = vmatpush1.msra.mxu0 0.0
    %5565 = vmatprep.subr.mxu0 0.0
    %5566 = vmatpush1.msra.mxu0 0.0
    %5567 = vmatprep.subr.mxu0 0.0
    %5568 = vmatpush1.msra.mxu0 0.0
    %5569 = vmatprep.subr.mxu0 0.0
    %5570 = vmatpush1.msra.mxu0 0.0
    %5571 = vmatprep.mubr.f32.mxu0 0.0
    %5572 = vmatmul.mubr.f32.gmra.mrb[0].mxu0 %v5505
    %v5573 = vpop.f32.mrb[0].mxu0
    %v5574 = vadd.f32 0.0, %v5573
    %v5575 = vpop.f32.mrb[0].mxu0
    %5576 = vdwg.mxu0
    %v5578 = vsel %vm3884, %v5281, 0
    %5580 = vmatprep.subr.mxu0 0.0
    %5581 = vmatpush1.msra.mxu0 %v3104
    %5582 = vmatprep.subr.mxu0 0.0
    %5583 = vmatpush1.msra.mxu0 %v3240
    %5584 = vmatprep.subr.mxu0 0.0
    %5585 = vmatpush1.msra.mxu0 0.0
    %5586 = vmatprep.subr.mxu0 0.0
    %5587 = vmatpush1.msra.mxu0 0.0
    %5588 = vmatprep.subr.mxu0 0.0
    %5589 = vmatpush1.msra.mxu0 0.0
    %5590 = vmatprep.subr.mxu0 0.0
    %5591 = vmatpush1.msra.mxu0 0.0
    %5592 = vmatprep.subr.mxu0 0.0
    %5593 = vmatpush1.msra.mxu0 0.0
    %5594 = vmatprep.subr.mxu0 0.0
    %5595 = vmatpush1.msra.mxu0 0.0
    %5596 = vmatprep.subr.mxu0 0.0
    %5597 = vmatpush1.msra.mxu0 0.0
    %5598 = vmatprep.subr.mxu0 0.0
    %5599 = vmatpush1.msra.mxu0 0.0
    %5600 = vmatprep.subr.mxu0 0.0
    %5601 = vmatpush1.msra.mxu0 0.0
    %5602 = vmatprep.subr.mxu0 0.0
    %5603 = vmatpush1.msra.mxu0 0.0
    %5604 = vmatprep.subr.mxu0 0.0
    %5605 = vmatpush1.msra.mxu0 0.0
    %5606 = vmatprep.subr.mxu0 0.0
    %5607 = vmatpush1.msra.mxu0 0.0
    %5608 = vmatprep.subr.mxu0 0.0
    %5609 = vmatpush1.msra.mxu0 0.0
    %5610 = vmatprep.subr.mxu0 0.0
    %5611 = vmatpush1.msra.mxu0 0.0
    %5612 = vmatprep.subr.mxu0 0.0
    %5613 = vmatpush1.msra.mxu0 0.0
    %5614 = vmatprep.subr.mxu0 0.0
    %5615 = vmatpush1.msra.mxu0 0.0
    %5616 = vmatprep.subr.mxu0 0.0
    %5617 = vmatpush1.msra.mxu0 0.0
    %5618 = vmatprep.subr.mxu0 0.0
    %5619 = vmatpush1.msra.mxu0 0.0
    %5620 = vmatprep.subr.mxu0 0.0
    %5621 = vmatpush1.msra.mxu0 0.0
    %5622 = vmatprep.subr.mxu0 0.0
    %5623 = vmatpush1.msra.mxu0 0.0
    %5624 = vmatprep.subr.mxu0 0.0
    %5625 = vmatpush1.msra.mxu0 0.0
    %5626 = vmatprep.subr.mxu0 0.0
    %5627 = vmatpush1.msra.mxu0 0.0
    %5628 = vmatprep.subr.mxu0 0.0
    %5629 = vmatpush1.msra.mxu0 0.0
    %5630 = vmatprep.subr.mxu0 0.0
    %5631 = vmatpush1.msra.mxu0 0.0
    %5632 = vmatprep.subr.mxu0 0.0
    %5633 = vmatpush1.msra.mxu0 0.0
    %5634 = vmatprep.subr.mxu0 0.0
    %5635 = vmatpush1.msra.mxu0 0.0
    %5636 = vmatprep.subr.mxu0 0.0
    %5637 = vmatpush1.msra.mxu0 0.0
    %5638 = vmatprep.subr.mxu0 0.0
    %5639 = vmatpush1.msra.mxu0 0.0
    %5640 = vmatprep.subr.mxu0 0.0
    %5641 = vmatpush1.msra.mxu0 0.0
    %5642 = vmatprep.subr.mxu0 0.0
    %5643 = vmatpush1.msra.mxu0 0.0
    %5644 = vmatprep.mubr.f32.mxu0 0.0
    %5645 = vmatmul.mubr.f32.gmra.mrb[0].mxu0 %v5578
    %v5646 = vpop.f32.mrb[0].mxu0
    %v5647 = vadd.f32 0.0, %v5646
    %v5648 = vpop.f32.mrb[0].mxu0
    %5649 = vdwg.mxu0
    %v5651 = vsel %vm3884, %v5282, 0
    %5653 = vmatprep.subr.mxu0 0.0
    %5654 = vmatpush1.msra.mxu0 %v3105
    %5655 = vmatprep.subr.mxu0 0.0
    %5656 = vmatpush1.msra.mxu0 %v3241
    %5657 = vmatprep.subr.mxu0 0.0
    %5658 = vmatpush1.msra.mxu0 0.0
    %5659 = vmatprep.subr.mxu0 0.0
    %5660 = vmatpush1.msra.mxu0 0.0
    %5661 = vmatprep.subr.mxu0 0.0
    %5662 = vmatpush1.msra.mxu0 0.0
    %5663 = vmatprep.subr.mxu0 0.0
    %5664 = vmatpush1.msra.mxu0 0.0
    %5665 = vmatprep.subr.mxu0 0.0
    %5666 = vmatpush1.msra.mxu0 0.0
    %5667 = vmatprep.subr.mxu0 0.0
    %5668 = vmatpush1.msra.mxu0 0.0
    %5669 = vmatprep.subr.mxu0 0.0
    %5670 = vmatpush1.msra.mxu0 0.0
    %5671 = vmatprep.subr.mxu0 0.0
    %5672 = vmatpush1.msra.mxu0 0.0
    %5673 = vmatprep.subr.mxu0 0.0
    %5674 = vmatpush1.msra.mxu0 0.0
    %5675 = vmatprep.subr.mxu0 0.0
    %5676 = vmatpush1.msra.mxu0 0.0
    %5677 = vmatprep.subr.mxu0 0.0
    %5678 = vmatpush1.msra.mxu0 0.0
    %5679 = vmatprep.subr.mxu0 0.0
    %5680 = vmatpush1.msra.mxu0 0.0
    %5681 = vmatprep.subr.mxu0 0.0
    %5682 = vmatpush1.msra.mxu0 0.0
    %5683 = vmatprep.subr.mxu0 0.0
    %5684 = vmatpush1.msra.mxu0 0.0
    %5685 = vmatprep.subr.mxu0 0.0
    %5686 = vmatpush1.msra.mxu0 0.0
    %5687 = vmatprep.subr.mxu0 0.0
    %5688 = vmatpush1.msra.mxu0 0.0
    %5689 = vmatprep.subr.mxu0 0.0
    %5690 = vmatpush1.msra.mxu0 0.0
    %5691 = vmatprep.subr.mxu0 0.0
    %5692 = vmatpush1.msra.mxu0 0.0
    %5693 = vmatprep.subr.mxu0 0.0
    %5694 = vmatpush1.msra.mxu0 0.0
    %5695 = vmatprep.subr.mxu0 0.0
    %5696 = vmatpush1.msra.mxu0 0.0
    %5697 = vmatprep.subr.mxu0 0.0
    %5698 = vmatpush1.msra.mxu0 0.0
    %5699 = vmatprep.subr.mxu0 0.0
    %5700 = vmatpush1.msra.mxu0 0.0
    %5701 = vmatprep.subr.mxu0 0.0
    %5702 = vmatpush1.msra.mxu0 0.0
    %5703 = vmatprep.subr.mxu0 0.0
    %5704 = vmatpush1.msra.mxu0 0.0
    %5705 = vmatprep.subr.mxu0 0.0
    %5706 = vmatpush1.msra.mxu0 0.0
    %5707 = vmatprep.subr.mxu0 0.0
    %5708 = vmatpush1.msra.mxu0 0.0
    %5709 = vmatprep.subr.mxu0 0.0
    %5710 = vmatpush1.msra.mxu0 0.0
    %5711 = vmatprep.subr.mxu0 0.0
    %5712 = vmatpush1.msra.mxu0 0.0
    %5713 = vmatprep.subr.mxu0 0.0
    %5714 = vmatpush1.msra.mxu0 0.0
    %5715 = vmatprep.subr.mxu0 0.0
    %5716 = vmatpush1.msra.mxu0 0.0
    %5717 = vmatprep.mubr.f32.mxu0 0.0
    %5718 = vmatmul.mubr.f32.gmra.mrb[0].mxu0 %v5651
    %v5719 = vpop.f32.mrb[0].mxu0
    %v5720 = vadd.f32 0.0, %v5719
    %v5721 = vpop.f32.mrb[0].mxu0
    %5722 = vdwg.mxu0
    %v5724 = vsel %vm3884, %v5283, 0
    %5726 = vmatprep.subr.mxu0 0.0
    %5727 = vmatpush1.msra.mxu0 %v3106
    %5728 = vmatprep.subr.mxu0 0.0
    %5729 = vmatpush1.msra.mxu0 %v3242
    %5730 = vmatprep.subr.mxu0 0.0
    %5731 = vmatpush1.msra.mxu0 0.0
    %5732 = vmatprep.subr.mxu0 0.0
    %5733 = vmatpush1.msra.mxu0 0.0
    %5734 = vmatprep.subr.mxu0 0.0
    %5735 = vmatpush1.msra.mxu0 0.0
    %5736 = vmatprep.subr.mxu0 0.0
    %5737 = vmatpush1.msra.mxu0 0.0
    %5738 = vmatprep.subr.mxu0 0.0
    %5739 = vmatpush1.msra.mxu0 0.0
    %5740 = vmatprep.subr.mxu0 0.0
    %5741 = vmatpush1.msra.mxu0 0.0
    %5742 = vmatprep.subr.mxu0 0.0
    %5743 = vmatpush1.msra.mxu0 0.0
    %5744 = vmatprep.subr.mxu0 0.0
    %5745 = vmatpush1.msra.mxu0 0.0
    %5746 = vmatprep.subr.mxu0 0.0
    %5747 = vmatpush1.msra.mxu0 0.0
    %5748 = vmatprep.subr.mxu0 0.0
    %5749 = vmatpush1.msra.mxu0 0.0
    %5750 = vmatprep.subr.mxu0 0.0
    %5751 = vmatpush1.msra.mxu0 0.0
    %5752 = vmatprep.subr.mxu0 0.0
    %5753 = vmatpush1.msra.mxu0 0.0
    %5754 = vmatprep.subr.mxu0 0.0
    %5755 = vmatpush1.msra.mxu0 0.0
    %5756 = vmatprep.subr.mxu0 0.0
    %5757 = vmatpush1.msra.mxu0 0.0
    %5758 = vmatprep.subr.mxu0 0.0
    %5759 = vmatpush1.msra.mxu0 0.0
    %5760 = vmatprep.subr.mxu0 0.0
    %5761 = vmatpush1.msra.mxu0 0.0
    %5762 = vmatprep.subr.mxu0 0.0
    %5763 = vmatpush1.msra.mxu0 0.0
    %5764 = vmatprep.subr.mxu0 0.0
    %5765 = vmatpush1.msra.mxu0 0.0
    %5766 = vmatprep.subr.mxu0 0.0
    %5767 = vmatpush1.msra.mxu0 0.0
    %5768 = vmatprep.subr.mxu0 0.0
    %5769 = vmatpush1.msra.mxu0 0.0
    %5770 = vmatprep.subr.mxu0 0.0
    %5771 = vmatpush1.msra.mxu0 0.0
    %5772 = vmatprep.subr.mxu0 0.0
    %5773 = vmatpush1.msra.mxu0 0.0
    %5774 = vmatprep.subr.mxu0 0.0
    %5775 = vmatpush1.msra.mxu0 0.0
    %5776 = vmatprep.subr.mxu0 0.0
    %5777 = vmatpush1.msra.mxu0 0.0
    %5778 = vmatprep.subr.mxu0 0.0
    %5779 = vmatpush1.msra.mxu0 0.0
    %5780 = vmatprep.subr.mxu0 0.0
    %5781 = vmatpush1.msra.mxu0 0.0
    %5782 = vmatprep.subr.mxu0 0.0
    %5783 = vmatpush1.msra.mxu0 0.0
    %5784 = vmatprep.subr.mxu0 0.0
    %5785 = vmatpush1.msra.mxu0 0.0
    %5786 = vmatprep.subr.mxu0 0.0
    %5787 = vmatpush1.msra.mxu0 0.0
    %5788 = vmatprep.subr.mxu0 0.0
    %5789 = vmatpush1.msra.mxu0 0.0
    %5790 = vmatprep.mubr.f32.mxu0 0.0
    %5791 = vmatmul.mubr.f32.gmra.mrb[0].mxu0 %v5724
    %v5792 = vpop.f32.mrb[0].mxu0
    %v5793 = vadd.f32 0.0, %v5792
    %v5794 = vpop.f32.mrb[0].mxu0
    %5795 = vdwg.mxu0
    %v5797 = vsel %vm3884, %v5284, 0
    %5799 = vmatprep.subr.mxu0 0.0
    %5800 = vmatpush1.msra.mxu0 %v3107
    %5801 = vmatprep.subr.mxu0 0.0
    %5802 = vmatpush1.msra.mxu0 %v3243
    %5803 = vmatprep.subr.mxu0 0.0
    %5804 = vmatpush1.msra.mxu0 0.0
    %5805 = vmatprep.subr.mxu0 0.0
    %5806 = vmatpush1.msra.mxu0 0.0
    %5807 = vmatprep.subr.mxu0 0.0
    %5808 = vmatpush1.msra.mxu0 0.0
    %5809 = vmatprep.subr.mxu0 0.0
    %5810 = vmatpush1.msra.mxu0 0.0
    %5811 = vmatprep.subr.mxu0 0.0
    %5812 = vmatpush1.msra.mxu0 0.0
    %5813 = vmatprep.subr.mxu0 0.0
    %5814 = vmatpush1.msra.mxu0 0.0
    %5815 = vmatprep.subr.mxu0 0.0
    %5816 = vmatpush1.msra.mxu0 0.0
    %5817 = vmatprep.subr.mxu0 0.0
    %5818 = vmatpush1.msra.mxu0 0.0
    %5819 = vmatprep.subr.mxu0 0.0
    %5820 = vmatpush1.msra.mxu0 0.0
    %5821 = vmatprep.subr.mxu0 0.0
    %5822 = vmatpush1.msra.mxu0 0.0
    %5823 = vmatprep.subr.mxu0 0.0
    %5824 = vmatpush1.msra.mxu0 0.0
    %5825 = vmatprep.subr.mxu0 0.0
    %5826 = vmatpush1.msra.mxu0 0.0
    %5827 = vmatprep.subr.mxu0 0.0
    %5828 = vmatpush1.msra.mxu0 0.0
    %5829 = vmatprep.subr.mxu0 0.0
    %5830 = vmatpush1.msra.mxu0 0.0
    %5831 = vmatprep.subr.mxu0 0.0
    %5832 = vmatpush1.msra.mxu0 0.0
    %5833 = vmatprep.subr.mxu0 0.0
    %5834 = vmatpush1.msra.mxu0 0.0
    %5835 = vmatprep.subr.mxu0 0.0
    %5836 = vmatpush1.msra.mxu0 0.0
    %5837 = vmatprep.subr.mxu0 0.0
    %5838 = vmatpush1.msra.mxu0 0.0
    %5839 = vmatprep.subr.mxu0 0.0
    %5840 = vmatpush1.msra.mxu0 0.0
    %5841 = vmatprep.subr.mxu0 0.0
    %5842 = vmatpush1.msra.mxu0 0.0
    %5843 = vmatprep.subr.mxu0 0.0
    %5844 = vmatpush1.msra.mxu0 0.0
    %5845 = vmatprep.subr.mxu0 0.0
    %5846 = vmatpush1.msra.mxu0 0.0
    %5847 = vmatprep.subr.mxu0 0.0
    %5848 = vmatpush1.msra.mxu0 0.0
    %5849 = vmatprep.subr.mxu0 0.0
    %5850 = vmatpush1.msra.mxu0 0.0
    %5851 = vmatprep.subr.mxu0 0.0
    %5852 = vmatpush1.msra.mxu0 0.0
    %5853 = vmatprep.subr.mxu0 0.0
    %5854 = vmatpush1.msra.mxu0 0.0
    %5855 = vmatprep.subr.mxu0 0.0
    %5856 = vmatpush1.msra.mxu0 0.0
    %5857 = vmatprep.subr.mxu0 0.0
    %5858 = vmatpush1.msra.mxu0 0.0
    %5859 = vmatprep.subr.mxu0 0.0
    %5860 = vmatpush1.msra.mxu0 0.0
    %5861 = vmatprep.subr.mxu0 0.0
    %5862 = vmatpush1.msra.mxu0 0.0
    %5863 = vmatprep.mubr.f32.mxu0 0.0
    %5864 = vmatmul.mubr.f32.gmra.mrb[0].mxu0 %v5797
    %v5865 = vpop.f32.mrb[0].mxu0
    %v5866 = vadd.f32 0.0, %v5865
    %v5867 = vpop.f32.mrb[0].mxu0
    %5868 = vdwg.mxu0
    %v5869 = vcombine.low %v4043, %v4189
    %v5870 = vcombine.high %v4043, %v4189
    %v5872 = vunpack.c.l.s4 1983009808
    %v5873 = vunpack.c.0.s8 %v5872
    %v5874 = vlaneseq
    %v5875 = vshrl.u32 %v5874, 7
    %v5876 = vsub.s32 %v5873, %v5875
    %v5877 = vrot.slane %v5869, %v5876
    %v5879 = vunpack.c.l.s4 1983009808
    %v5880 = vunpack.c.0.s8 %v5879
    %v5881 = vlaneseq
    %v5882 = vshrl.u32 %v5881, 7
    %v5883 = vsub.s32 %v5880, %v5882
    %v5884 = vrot.slane %v5870, %v5883
    %v5885 = vcombine.low %v4116, %v4262
    %v5886 = vcombine.high %v4116, %v4262
    %v5888 = vunpack.c.l.s4 1983009808
    %v5889 = vunpack.c.0.s8 %v5888
    %v5890 = vlaneseq
    %v5891 = vshrl.u32 %v5890, 7
    %v5892 = vsub.s32 %v5889, %v5891
    %v5893 = vrot.slane %v5885, %v5892
    %v5895 = vunpack.c.l.s4 1983009808
    %v5896 = vunpack.c.0.s8 %v5895
    %v5897 = vlaneseq
    %v5898 = vshrl.u32 %v5897, 7
    %v5899 = vsub.s32 %v5896, %v5898
    %v5900 = vrot.slane %v5886, %v5899
    %v5901 = vcombine.low %v4335, %v4481
    %v5902 = vcombine.high %v4335, %v4481
    %v5904 = vunpack.c.l.s4 1983009808
    %v5905 = vunpack.c.0.s8 %v5904
    %v5906 = vlaneseq
    %v5907 = vshrl.u32 %v5906, 7
    %v5908 = vsub.s32 %v5905, %v5907
    %v5909 = vrot.slane %v5901, %v5908
    %v5911 = vunpack.c.l.s4 1983009808
    %v5912 = vunpack.c.0.s8 %v5911
    %v5913 = vlaneseq
    %v5914 = vshrl.u32 %v5913, 7
    %v5915 = vsub.s32 %v5912, %v5914
    %v5916 = vrot.slane %v5902, %v5915
    %v5917 = vcombine.low %v4408, %v4554
    %v5918 = vcombine.high %v4408, %v4554
    %v5920 = vunpack.c.l.s4 1983009808
    %v5921 = vunpack.c.0.s8 %v5920
    %v5922 = vlaneseq
    %v5923 = vshrl.u32 %v5922, 7
    %v5924 = vsub.s32 %v5921, %v5923
    %v5925 = vrot.slane %v5917, %v5924
    %v5927 = vunpack.c.l.s4 1983009808
    %v5928 = vunpack.c.0.s8 %v5927
    %v5929 = vlaneseq
    %v5930 = vshrl.u32 %v5929, 7
    %v5931 = vsub.s32 %v5928, %v5930
    %v5932 = vrot.slane %v5918, %v5931
    %v5933 = vcombine.low %v5877, %v5893
    %v5934 = vcombine.high %v5877, %v5893
    %v5936 = vunpack.c.l.s4 1934713408
    %v5937 = vunpack.c.0.s8 %v5936
    %v5938 = vlaneseq
    %v5939 = vshrl.u32 %v5938, 7
    %v5940 = vsub.s32 %v5937, %v5939
    %v5941 = vrot.slane %v5933, %v5940
    %v5943 = vunpack.c.l.s4 1934713408
    %v5944 = vunpack.c.0.s8 %v5943
    %v5945 = vlaneseq
    %v5946 = vshrl.u32 %v5945, 7
    %v5947 = vsub.s32 %v5944, %v5946
    %v5948 = vrot.slane %v5934, %v5947
    %v5949 = vcombine.low %v5884, %v5900
    %v5950 = vcombine.high %v5884, %v5900
    %v5952 = vunpack.c.l.s4 1934713408
    %v5953 = vunpack.c.0.s8 %v5952
    %v5954 = vlaneseq
    %v5955 = vshrl.u32 %v5954, 7
    %v5956 = vsub.s32 %v5953, %v5955
    %v5957 = vrot.slane %v5949, %v5956
    %v5959 = vunpack.c.l.s4 1934713408
    %v5960 = vunpack.c.0.s8 %v5959
    %v5961 = vlaneseq
    %v5962 = vshrl.u32 %v5961, 7
    %v5963 = vsub.s32 %v5960, %v5962
    %v5964 = vrot.slane %v5950, %v5963
    %v5965 = vcombine.low %v5909, %v5925
    %v5966 = vcombine.high %v5909, %v5925
    %v5968 = vunpack.c.l.s4 1934713408
    %v5969 = vunpack.c.0.s8 %v5968
    %v5970 = vlaneseq
    %v5971 = vshrl.u32 %v5970, 7
    %v5972 = vsub.s32 %v5969, %v5971
    %v5973 = vrot.slane %v5965, %v5972
    %v5975 = vunpack.c.l.s4 1934713408
    %v5976 = vunpack.c.0.s8 %v5975
    %v5977 = vlaneseq
    %v5978 = vshrl.u32 %v5977, 7
    %v5979 = vsub.s32 %v5976, %v5978
    %v5980 = vrot.slane %v5966, %v5979
    %v5981 = vcombine.low %v5916, %v5932
    %v5982 = vcombine.high %v5916, %v5932
    %v5984 = vunpack.c.l.s4 1934713408
    %v5985 = vunpack.c.0.s8 %v5984
    %v5986 = vlaneseq
    %v5987 = vshrl.u32 %v5986, 7
    %v5988 = vsub.s32 %v5985, %v5987
    %v5989 = vrot.slane %v5981, %v5988
    %v5991 = vunpack.c.l.s4 1934713408
    %v5992 = vunpack.c.0.s8 %v5991
    %v5993 = vlaneseq
    %v5994 = vshrl.u32 %v5993, 7
    %v5995 = vsub.s32 %v5992, %v5994
    %v5996 = vrot.slane %v5982, %v5995
    %v5997 = vcombine.low %v5941, %v5973
    %v5998 = vcombine.high %v5941, %v5973
    %v5999 = vcombine.low %v5948, %v5980
    %v6000 = vcombine.high %v5948, %v5980
    %v6001 = vcombine.low %v5957, %v5989
    %v6002 = vcombine.high %v5957, %v5989
    %v6003 = vcombine.low %v5964, %v5996
    %v6004 = vcombine.high %v5964, %v5996
    %v6005 = vcombine.low %v5355, %v5501
    %v6006 = vcombine.high %v5355, %v5501
    %v6008 = vunpack.c.l.s4 1983009808
    %v6009 = vunpack.c.0.s8 %v6008
    %v6010 = vlaneseq
    %v6011 = vshrl.u32 %v6010, 7
    %v6012 = vsub.s32 %v6009, %v6011
    %v6013 = vrot.slane %v6005, %v6012
    %v6015 = vunpack.c.l.s4 1983009808
    %v6016 = vunpack.c.0.s8 %v6015
    %v6017 = vlaneseq
    %v6018 = vshrl.u32 %v6017, 7
    %v6019 = vsub.s32 %v6016, %v6018
    %v6020 = vrot.slane %v6006, %v6019
    %v6021 = vcombine.low %v5428, %v5574
    %v6022 = vcombine.high %v5428, %v5574
    %v6024 = vunpack.c.l.s4 1983009808
    %v6025 = vunpack.c.0.s8 %v6024
    %v6026 = vlaneseq
    %v6027 = vshrl.u32 %v6026, 7
    %v6028 = vsub.s32 %v6025, %v6027
    %v6029 = vrot.slane %v6021, %v6028
    %v6031 = vunpack.c.l.s4 1983009808
    %v6032 = vunpack.c.0.s8 %v6031
    %v6033 = vlaneseq
    %v6034 = vshrl.u32 %v6033, 7
    %v6035 = vsub.s32 %v6032, %v6034
    %v6036 = vrot.slane %v6022, %v6035
    %v6037 = vcombine.low %v5647, %v5793
    %v6038 = vcombine.high %v5647, %v5793
    %v6040 = vunpack.c.l.s4 1983009808
    %v6041 = vunpack.c.0.s8 %v6040
    %v6042 = vlaneseq
    %v6043 = vshrl.u32 %v6042, 7
    %v6044 = vsub.s32 %v6041, %v6043
    %v6045 = vrot.slane %v6037, %v6044
    %v6047 = vunpack.c.l.s4 1983009808
    %v6048 = vunpack.c.0.s8 %v6047
    %v6049 = vlaneseq
    %v6050 = vshrl.u32 %v6049, 7
    %v6051 = vsub.s32 %v6048, %v6050
    %v6052 = vrot.slane %v6038, %v6051
    %v6053 = vcombine.low %v5720, %v5866
    %v6054 = vcombine.high %v5720, %v5866
    %v6056 = vunpack.c.l.s4 1983009808
    %v6057 = vunpack.c.0.s8 %v6056
    %v6058 = vlaneseq
    %v6059 = vshrl.u32 %v6058, 7
    %v6060 = vsub.s32 %v6057, %v6059
    %v6061 = vrot.slane %v6053, %v6060
    %v6063 = vunpack.c.l.s4 1983009808
    %v6064 = vunpack.c.0.s8 %v6063
    %v6065 = vlaneseq
    %v6066 = vshrl.u32 %v6065, 7
    %v6067 = vsub.s32 %v6064, %v6066
    %v6068 = vrot.slane %v6054, %v6067
    %v6069 = vcombine.low %v6013, %v6029
    %v6070 = vcombine.high %v6013, %v6029
    %v6072 = vunpack.c.l.s4 1934713408
    %v6073 = vunpack.c.0.s8 %v6072
    %v6074 = vlaneseq
    %v6075 = vshrl.u32 %v6074, 7
    %v6076 = vsub.s32 %v6073, %v6075
    %v6077 = vrot.slane %v6069, %v6076
    %v6079 = vunpack.c.l.s4 1934713408
    %v6080 = vunpack.c.0.s8 %v6079
    %v6081 = vlaneseq
    %v6082 = vshrl.u32 %v6081, 7
    %v6083 = vsub.s32 %v6080, %v6082
    %v6084 = vrot.slane %v6070, %v6083
    %v6085 = vcombine.low %v6020, %v6036
    %v6086 = vcombine.high %v6020, %v6036
    %v6088 = vunpack.c.l.s4 1934713408
    %v6089 = vunpack.c.0.s8 %v6088
    %v6090 = vlaneseq
    %v6091 = vshrl.u32 %v6090, 7
    %v6092 = vsub.s32 %v6089, %v6091
    %v6093 = vrot.slane %v6085, %v6092
    %v6095 = vunpack.c.l.s4 1934713408
    %v6096 = vunpack.c.0.s8 %v6095
    %v6097 = vlaneseq
    %v6098 = vshrl.u32 %v6097, 7
    %v6099 = vsub.s32 %v6096, %v6098
    %v6100 = vrot.slane %v6086, %v6099
    %v6101 = vcombine.low %v6045, %v6061
    %v6102 = vcombine.high %v6045, %v6061
    %v6104 = vunpack.c.l.s4 1934713408
    %v6105 = vunpack.c.0.s8 %v6104
    %v6106 = vlaneseq
    %v6107 = vshrl.u32 %v6106, 7
    %v6108 = vsub.s32 %v6105, %v6107
    %v6109 = vrot.slane %v6101, %v6108
    %v6111 = vunpack.c.l.s4 1934713408
    %v6112 = vunpack.c.0.s8 %v6111
    %v6113 = vlaneseq
    %v6114 = vshrl.u32 %v6113, 7
    %v6115 = vsub.s32 %v6112, %v6114
    %v6116 = vrot.slane %v6102, %v6115
    %v6117 = vcombine.low %v6052, %v6068
    %v6118 = vcombine.high %v6052, %v6068
    %v6120 = vunpack.c.l.s4 1934713408
    %v6121 = vunpack.c.0.s8 %v6120
    %v6122 = vlaneseq
    %v6123 = vshrl.u32 %v6122, 7
    %v6124 = vsub.s32 %v6121, %v6123
    %v6125 = vrot.slane %v6117, %v6124
    %v6127 = vunpack.c.l.s4 1934713408
    %v6128 = vunpack.c.0.s8 %v6127
    %v6129 = vlaneseq
    %v6130 = vshrl.u32 %v6129, 7
    %v6131 = vsub.s32 %v6128, %v6130
    %v6132 = vrot.slane %v6118, %v6131
    %v6133 = vcombine.low %v6077, %v6109
    %v6134 = vcombine.high %v6077, %v6109
    %v6135 = vcombine.low %v6084, %v6116
    %v6136 = vcombine.high %v6084, %v6116
    %v6137 = vcombine.low %v6093, %v6125
    %v6138 = vcombine.high %v6093, %v6125
    %v6139 = vcombine.low %v6100, %v6132
    %v6140 = vcombine.high %v6100, %v6132
    %v6141 = vcombine.low %v5997, %v5999
    %v6142 = vcombine.high %v5997, %v5999
    %v6144 = vunpack.c.l.s4 1983009808
    %v6145 = vunpack.c.0.s8 %v6144
    %v6146 = vlaneseq
    %v6147 = vshrl.u32 %v6146, 7
    %v6148 = vsub.s32 %v6145, %v6147
    %v6149 = vrot.slane %v6141, %v6148
    %v6151 = vunpack.c.l.s4 1983009808
    %v6152 = vunpack.c.0.s8 %v6151
    %v6153 = vlaneseq
    %v6154 = vshrl.u32 %v6153, 7
    %v6155 = vsub.s32 %v6152, %v6154
    %v6156 = vrot.slane %v6142, %v6155
    %v6157 = vcombine.low %v5998, %v6000
    %v6158 = vcombine.high %v5998, %v6000
    %v6160 = vunpack.c.l.s4 1983009808
    %v6161 = vunpack.c.0.s8 %v6160
    %v6162 = vlaneseq
    %v6163 = vshrl.u32 %v6162, 7
    %v6164 = vsub.s32 %v6161, %v6163
    %v6165 = vrot.slane %v6157, %v6164
    %v6167 = vunpack.c.l.s4 1983009808
    %v6168 = vunpack.c.0.s8 %v6167
    %v6169 = vlaneseq
    %v6170 = vshrl.u32 %v6169, 7
    %v6171 = vsub.s32 %v6168, %v6170
    %v6172 = vrot.slane %v6158, %v6171
    %v6173 = vcombine.low %v6001, %v6003
    %v6174 = vcombine.high %v6001, %v6003
    %v6176 = vunpack.c.l.s4 1983009808
    %v6177 = vunpack.c.0.s8 %v6176
    %v6178 = vlaneseq
    %v6179 = vshrl.u32 %v6178, 7
    %v6180 = vsub.s32 %v6177, %v6179
    %v6181 = vrot.slane %v6173, %v6180
    %v6183 = vunpack.c.l.s4 1983009808
    %v6184 = vunpack.c.0.s8 %v6183
    %v6185 = vlaneseq
    %v6186 = vshrl.u32 %v6185, 7
    %v6187 = vsub.s32 %v6184, %v6186
    %v6188 = vrot.slane %v6174, %v6187
    %v6189 = vcombine.low %v6002, %v6004
    %v6190 = vcombine.high %v6002, %v6004
    %v6192 = vunpack.c.l.s4 1983009808
    %v6193 = vunpack.c.0.s8 %v6192
    %v6194 = vlaneseq
    %v6195 = vshrl.u32 %v6194, 7
    %v6196 = vsub.s32 %v6193, %v6195
    %v6197 = vrot.slane %v6189, %v6196
    %v6199 = vunpack.c.l.s4 1983009808
    %v6200 = vunpack.c.0.s8 %v6199
    %v6201 = vlaneseq
    %v6202 = vshrl.u32 %v6201, 7
    %v6203 = vsub.s32 %v6200, %v6202
    %v6204 = vrot.slane %v6190, %v6203
    %v6205 = vcombine.low %v6149, %v6165
    %v6206 = vcombine.high %v6149, %v6165
    %v6208 = vunpack.c.l.s4 1934713408
    %v6209 = vunpack.c.0.s8 %v6208
    %v6210 = vlaneseq
    %v6211 = vshrl.u32 %v6210, 7
    %v6212 = vsub.s32 %v6209, %v6211
    %v6213 = vrot.slane %v6205, %v6212
    %v6215 = vunpack.c.l.s4 1934713408
    %v6216 = vunpack.c.0.s8 %v6215
    %v6217 = vlaneseq
    %v6218 = vshrl.u32 %v6217, 7
    %v6219 = vsub.s32 %v6216, %v6218
    %v6220 = vrot.slane %v6206, %v6219
    %v6221 = vcombine.low %v6156, %v6172
    %v6222 = vcombine.high %v6156, %v6172
    %v6224 = vunpack.c.l.s4 1934713408
    %v6225 = vunpack.c.0.s8 %v6224
    %v6226 = vlaneseq
    %v6227 = vshrl.u32 %v6226, 7
    %v6228 = vsub.s32 %v6225, %v6227
    %v6229 = vrot.slane %v6221, %v6228
    %v6231 = vunpack.c.l.s4 1934713408
    %v6232 = vunpack.c.0.s8 %v6231
    %v6233 = vlaneseq
    %v6234 = vshrl.u32 %v6233, 7
    %v6235 = vsub.s32 %v6232, %v6234
    %v6236 = vrot.slane %v6222, %v6235
    %v6237 = vcombine.low %v6181, %v6197
    %v6238 = vcombine.high %v6181, %v6197
    %v6240 = vunpack.c.l.s4 1934713408
    %v6241 = vunpack.c.0.s8 %v6240
    %v6242 = vlaneseq
    %v6243 = vshrl.u32 %v6242, 7
    %v6244 = vsub.s32 %v6241, %v6243
    %v6245 = vrot.slane %v6237, %v6244
    %v6247 = vunpack.c.l.s4 1934713408
    %v6248 = vunpack.c.0.s8 %v6247
    %v6249 = vlaneseq
    %v6250 = vshrl.u32 %v6249, 7
    %v6251 = vsub.s32 %v6248, %v6250
    %v6252 = vrot.slane %v6238, %v6251
    %v6253 = vcombine.low %v6188, %v6204
    %v6254 = vcombine.high %v6188, %v6204
    %v6256 = vunpack.c.l.s4 1934713408
    %v6257 = vunpack.c.0.s8 %v6256
    %v6258 = vlaneseq
    %v6259 = vshrl.u32 %v6258, 7
    %v6260 = vsub.s32 %v6257, %v6259
    %v6261 = vrot.slane %v6253, %v6260
    %v6263 = vunpack.c.l.s4 1934713408
    %v6264 = vunpack.c.0.s8 %v6263
    %v6265 = vlaneseq
    %v6266 = vshrl.u32 %v6265, 7
    %v6267 = vsub.s32 %v6264, %v6266
    %v6268 = vrot.slane %v6254, %v6267
    %v6269 = vcombine.low %v6213, %v6245
    %v6270 = vcombine.high %v6213, %v6245
    %v6271 = vcombine.low %v6220, %v6252
    %v6272 = vcombine.high %v6220, %v6252
    %v6273 = vcombine.low %v6229, %v6261
    %v6274 = vcombine.high %v6229, %v6261
    %v6275 = vcombine.low %v6236, %v6268
    %v6276 = vcombine.high %v6236, %v6268
    %v6277 = vcombine.low %v6133, %v6135
    %v6278 = vcombine.high %v6133, %v6135
    %v6280 = vunpack.c.l.s4 1983009808
    %v6281 = vunpack.c.0.s8 %v6280
    %v6282 = vlaneseq
    %v6283 = vshrl.u32 %v6282, 7
    %v6284 = vsub.s32 %v6281, %v6283
    %v6285 = vrot.slane %v6277, %v6284
    %v6287 = vunpack.c.l.s4 1983009808
    %v6288 = vunpack.c.0.s8 %v6287
    %v6289 = vlaneseq
    %v6290 = vshrl.u32 %v6289, 7
    %v6291 = vsub.s32 %v6288, %v6290
    %v6292 = vrot.slane %v6278, %v6291
    %v6293 = vcombine.low %v6134, %v6136
    %v6294 = vcombine.high %v6134, %v6136
    %v6296 = vunpack.c.l.s4 1983009808
    %v6297 = vunpack.c.0.s8 %v6296
    %v6298 = vlaneseq
    %v6299 = vshrl.u32 %v6298, 7
    %v6300 = vsub.s32 %v6297, %v6299
    %v6301 = vrot.slane %v6293, %v6300
    %v6303 = vunpack.c.l.s4 1983009808
    %v6304 = vunpack.c.0.s8 %v6303
    %v6305 = vlaneseq
    %v6306 = vshrl.u32 %v6305, 7
    %v6307 = vsub.s32 %v6304, %v6306
    %v6308 = vrot.slane %v6294, %v6307
    %v6309 = vcombine.low %v6137, %v6139
    %v6310 = vcombine.high %v6137, %v6139
    %v6312 = vunpack.c.l.s4 1983009808
    %v6313 = vunpack.c.0.s8 %v6312
    %v6314 = vlaneseq
    %v6315 = vshrl.u32 %v6314, 7
    %v6316 = vsub.s32 %v6313, %v6315
    %v6317 = vrot.slane %v6309, %v6316
    %v6319 = vunpack.c.l.s4 1983009808
    %v6320 = vunpack.c.0.s8 %v6319
    %v6321 = vlaneseq
    %v6322 = vshrl.u32 %v6321, 7
    %v6323 = vsub.s32 %v6320, %v6322
    %v6324 = vrot.slane %v6310, %v6323
    %v6325 = vcombine.low %v6138, %v6140
    %v6326 = vcombine.high %v6138, %v6140
    %v6328 = vunpack.c.l.s4 1983009808
    %v6329 = vunpack.c.0.s8 %v6328
    %v6330 = vlaneseq
    %v6331 = vshrl.u32 %v6330, 7
    %v6332 = vsub.s32 %v6329, %v6331
    %v6333 = vrot.slane %v6325, %v6332
    %v6335 = vunpack.c.l.s4 1983009808
    %v6336 = vunpack.c.0.s8 %v6335
    %v6337 = vlaneseq
    %v6338 = vshrl.u32 %v6337, 7
    %v6339 = vsub.s32 %v6336, %v6338
    %v6340 = vrot.slane %v6326, %v6339
    %v6341 = vcombine.low %v6285, %v6301
    %v6342 = vcombine.high %v6285, %v6301
    %v6344 = vunpack.c.l.s4 1934713408
    %v6345 = vunpack.c.0.s8 %v6344
    %v6346 = vlaneseq
    %v6347 = vshrl.u32 %v6346, 7
    %v6348 = vsub.s32 %v6345, %v6347
    %v6349 = vrot.slane %v6341, %v6348
    %v6351 = vunpack.c.l.s4 1934713408
    %v6352 = vunpack.c.0.s8 %v6351
    %v6353 = vlaneseq
    %v6354 = vshrl.u32 %v6353, 7
    %v6355 = vsub.s32 %v6352, %v6354
    %v6356 = vrot.slane %v6342, %v6355
    %v6357 = vcombine.low %v6292, %v6308
    %v6358 = vcombine.high %v6292, %v6308
    %v6360 = vunpack.c.l.s4 1934713408
    %v6361 = vunpack.c.0.s8 %v6360
    %v6362 = vlaneseq
    %v6363 = vshrl.u32 %v6362, 7
    %v6364 = vsub.s32 %v6361, %v6363
    %v6365 = vrot.slane %v6357, %v6364
    %v6367 = vunpack.c.l.s4 1934713408
    %v6368 = vunpack.c.0.s8 %v6367
    %v6369 = vlaneseq
    %v6370 = vshrl.u32 %v6369, 7
    %v6371 = vsub.s32 %v6368, %v6370
    %v6372 = vrot.slane %v6358, %v6371
    %v6373 = vcombine.low %v6317, %v6333
    %v6374 = vcombine.high %v6317, %v6333
    %v6376 = vunpack.c.l.s4 1934713408
    %v6377 = vunpack.c.0.s8 %v6376
    %v6378 = vlaneseq
    %v6379 = vshrl.u32 %v6378, 7
    %v6380 = vsub.s32 %v6377, %v6379
    %v6381 = vrot.slane %v6373, %v6380
    %v6383 = vunpack.c.l.s4 1934713408
    %v6384 = vunpack.c.0.s8 %v6383
    %v6385 = vlaneseq
    %v6386 = vshrl.u32 %v6385, 7
    %v6387 = vsub.s32 %v6384, %v6386
    %v6388 = vrot.slane %v6374, %v6387
    %v6389 = vcombine.low %v6324, %v6340
    %v6390 = vcombine.high %v6324, %v6340
    %v6392 = vunpack.c.l.s4 1934713408
    %v6393 = vunpack.c.0.s8 %v6392
    %v6394 = vlaneseq
    %v6395 = vshrl.u32 %v6394, 7
    %v6396 = vsub.s32 %v6393, %v6395
    %v6397 = vrot.slane %v6389, %v6396
    %v6399 = vunpack.c.l.s4 1934713408
    %v6400 = vunpack.c.0.s8 %v6399
    %v6401 = vlaneseq
    %v6402 = vshrl.u32 %v6401, 7
    %v6403 = vsub.s32 %v6400, %v6402
    %v6404 = vrot.slane %v6390, %v6403
    %v6405 = vcombine.low %v6349, %v6381
    %v6406 = vcombine.high %v6349, %v6381
    %v6407 = vcombine.low %v6356, %v6388
    %v6408 = vcombine.high %v6356, %v6388
    %v6409 = vcombine.low %v6365, %v6397
    %v6410 = vcombine.high %v6365, %v6397
    %v6411 = vcombine.low %v6372, %v6404
    %v6412 = vcombine.high %v6372, %v6404
    %6415 = vrot.lane.b32.xlu0 %v6270, 8
    %v6416 = vpop.permute.xlu0 %6415
    %6417 = vrot.lane.b32.xlu0 %v6406, 8
    %v6418 = vpop.permute.xlu0 %6417
    %6423 = vrot.lane.b32.xlu0 %v6271, 16
    %v6424 = vpop.permute.xlu0 %6423
    %6425 = vrot.lane.b32.xlu0 %v6407, 16
    %v6426 = vpop.permute.xlu0 %6425
    %6431 = vrot.lane.b32.xlu0 %v6272, 24
    %v6432 = vpop.permute.xlu0 %6431
    %6433 = vrot.lane.b32.xlu0 %v6408, 24
    %v6434 = vpop.permute.xlu0 %6433
    %6439 = vrot.lane.b32.xlu0 %v6273, 32
    %v6440 = vpop.permute.xlu0 %6439
    %6441 = vrot.lane.b32.xlu0 %v6409, 32
    %v6442 = vpop.permute.xlu0 %6441
    %6447 = vrot.lane.b32.xlu0 %v6274, 40
    %v6448 = vpop.permute.xlu0 %6447
    %6449 = vrot.lane.b32.xlu0 %v6410, 40
    %v6450 = vpop.permute.xlu0 %6449
    %6455 = vrot.lane.b32.xlu0 %v6275, 48
    %v6456 = vpop.permute.xlu0 %6455
    %6457 = vrot.lane.b32.xlu0 %v6411, 48
    %v6458 = vpop.permute.xlu0 %6457
    %6463 = vrot.lane.b32.xlu0 %v6276, 56
    %v6464 = vpop.permute.xlu0 %6463
    %6465 = vrot.lane.b32.xlu0 %v6412, 56
    %v6466 = vpop.permute.xlu0 %6465
    %v6469 = vsel %vm3251, %v6269, %v6416
    %v6470 = vsel %vm3251, %v6405, %v6418
    %v6471 = vsel %vm3884, %v6469, %v6424
    %v6472 = vsel %vm3884, %v6470, %v6426
    %vm6473 = vcmask 195584
    %v6474 = vsel %vm6473, %v6471, %v6432
    %v6475 = vsel %vm6473, %v6472, %v6434
    %vm6476 = vcmask 261120
    %v6477 = vsel %vm6476, %v6474, %v6440
    %v6478 = vsel %vm6476, %v6475, %v6442
    %vm6479 = vcmask 326656
    %v6480 = vsel %vm6479, %v6477, %v6448
    %v6481 = vsel %vm6479, %v6478, %v6450
    %vm6482 = vcmask 392192
    %v6483 = vsel %vm6482, %v6480, %v6456
    %v6484 = vsel %vm6482, %v6481, %v6458
    %vm6485 = vcmask 457728
    %v6486 = vsel %vm6485, %v6483, %v6464
    %v6487 = vsel %vm6485, %v6484, %v6466
    %v6488 = vld [vmem:[#allocation10] sm:$0xff]
    %v6489 = vld [vmem:[#allocation10 + $0x8] sm:$0xff]
    %v6490 = vld [vmem:[#allocation10 + $0x10] sm:$0xff]
    %v6491 = vld [vmem:[#allocation10 + $0x18] sm:$0xff]
    %v6492 = vld [vmem:[#allocation10 + $0x20] sm:$0xff]
    %v6493 = vld [vmem:[#allocation10 + $0x28] sm:$0xff]
    %v6494 = vld [vmem:[#allocation10 + $0x30] sm:$0xff]
    %v6495 = vld [vmem:[#allocation10 + $0x38] sm:$0xff]
    %v6496 = vld [vmem:[%s6] sm:$0x1]
    %v6498 = vlaneseq
    %v6499 = vshrl.u32 %v6498, 7
    %v6500 = vsub.s32 0, %v6499
    %v6501 = vrot.slane %v6496, %v6500
    %v6504 = vsel %vm105, %v6486, 0
    %v6507 = vsel %vm105, %v6487, 0
    %6509 = vmatprep.subr.mxu0 0.0
    %6510 = vmatpush1.msra.mxu0 %v6488
    %6511 = vmatprep.subr.mxu0 0.0
    %6512 = vmatpush1.msra.mxu0 %v6489
    %6513 = vmatprep.subr.mxu0 0.0
    %6514 = vmatpush1.msra.mxu0 %v6490
    %6515 = vmatprep.subr.mxu0 0.0
    %6516 = vmatpush1.msra.mxu0 %v6491
    %6517 = vmatprep.subr.mxu0 0.0
    %6518 = vmatpush1.msra.mxu0 %v6492
    %6519 = vmatprep.subr.mxu0 0.0
    %6520 = vmatpush1.msra.mxu0 %v6493
    %6521 = vmatprep.subr.mxu0 0.0
    %6522 = vmatpush1.msra.mxu0 %v6494
    %6523 = vmatprep.subr.mxu0 0.0
    %6524 = vmatpush1.msra.mxu0 %v6495
    %6525 = vmatprep.subr.mxu0 0.0
    %6526 = vmatpush1.msra.mxu0 0.0
    %6527 = vmatprep.subr.mxu0 0.0
    %6528 = vmatpush1.msra.mxu0 0.0
    %6529 = vmatprep.subr.mxu0 0.0
    %6530 = vmatpush1.msra.mxu0 0.0
    %6531 = vmatprep.subr.mxu0 0.0
    %6532 = vmatpush1.msra.mxu0 0.0
    %6533 = vmatprep.subr.mxu0 0.0
    %6534 = vmatpush1.msra.mxu0 0.0
    %6535 = vmatprep.subr.mxu0 0.0
    %6536 = vmatpush1.msra.mxu0 0.0
    %6537 = vmatprep.subr.mxu0 0.0
    %6538 = vmatpush1.msra.mxu0 0.0
    %6539 = vmatprep.subr.mxu0 0.0
    %6540 = vmatpush1.msra.mxu0 0.0
    %6541 = vmatprep.subr.mxu0 0.0
    %6542 = vmatpush1.msra.mxu0 0.0
    %6543 = vmatprep.subr.mxu0 0.0
    %6544 = vmatpush1.msra.mxu0 0.0
    %6545 = vmatprep.subr.mxu0 0.0
    %6546 = vmatpush1.msra.mxu0 0.0
    %6547 = vmatprep.subr.mxu0 0.0
    %6548 = vmatpush1.msra.mxu0 0.0
    %6549 = vmatprep.subr.mxu0 0.0
    %6550 = vmatpush1.msra.mxu0 0.0
    %6551 = vmatprep.subr.mxu0 0.0
    %6552 = vmatpush1.msra.mxu0 0.0
    %6553 = vmatprep.subr.mxu0 0.0
    %6554 = vmatpush1.msra.mxu0 0.0
    %6555 = vmatprep.subr.mxu0 0.0
    %6556 = vmatpush1.msra.mxu0 0.0
    %6557 = vmatprep.subr.mxu0 0.0
    %6558 = vmatpush1.msra.mxu0 0.0
    %6559 = vmatprep.subr.mxu0 0.0
    %6560 = vmatpush1.msra.mxu0 0.0
    %6561 = vmatprep.subr.mxu0 0.0
    %6562 = vmatpush1.msra.mxu0 0.0
    %6563 = vmatprep.subr.mxu0 0.0
    %6564 = vmatpush1.msra.mxu0 0.0
    %6565 = vmatprep.subr.mxu0 0.0
    %6566 = vmatpush1.msra.mxu0 0.0
    %6567 = vmatprep.subr.mxu0 0.0
    %6568 = vmatpush1.msra.mxu0 0.0
    %6569 = vmatprep.subr.mxu0 0.0
    %6570 = vmatpush1.msra.mxu0 0.0
    %6571 = vmatprep.subr.mxu0 0.0
    %6572 = vmatpush1.msra.mxu0 0.0
    %6573 = vmatprep.mubr.f32.mxu0 0.0
    %6574 = vmatmul.mubr.f32.gmra.mrb[0].mxu0 %v6504
    %v6575 = vpop.f32.mrb[0].mxu0
    %v6576 = vadd.f32 %v6501, %v6575
    %v6577 = vpop.f32.mrb[0].mxu0
    %6578 = vmatprep.mubr.f32.mxu0 0.0
    %6579 = vmatmul.mubr.f32.gmra.mrb[0].mxu0 %v6507
    %v6580 = vpop.f32.mrb[0].mxu0
    %v6581 = vadd.f32 %v6501, %v6580
    %v6582 = vpop.f32.mrb[0].mxu0
    %6583 = vdwg.mxu0
    %6584 = vst.msk [vmem:[#allocation11] sm:$0xff] %vm105, %v6576
    %6585 = vst.msk [vmem:[#allocation11 + $0x8] sm:$0xff] %vm105, %v6581
    // Predicated region
    $region50: #{tpu_custom_call.1} parent=1 // pred_check
      _
    $region51: #{tpu_custom_call.1} parent=1 // pred_check_branch
      %6587 = sbr.rel (0) target = $region53
    $region52: #{tpu_custom_call.1} parent=1 // pred_region
      %s6589 = ssub.s32 256, 256
      %6590 = vsyncadd [#allocation4], %s6589
      %s6591 = sshll.u32 [#allocation11], 4
      %s6592 = int_to_ptr.vmem [resolvable:$true] %s6591
      %6597 = dma.vmem_to_hbm [thread:$0]  %s6592, 256, %s7, [#allocation4], 128, 128, 8
    $region53: #{tpu_custom_call.1} parent=1 // pred_fallthru
      _
    // Predicated region
    $region54: #{tpu_custom_call.1} parent=1 // pred_check
      _
    $region55: #{tpu_custom_call.1} parent=1 // pred_check_branch
      %6599 = sbr.rel (0) target = $region57
    $region56: #{tpu_custom_call.1} parent=1 // pred_region
      %6600 = dma.done [#allocation4], 256
    $region57: #{tpu_custom_call.1} parent=1 // pred_fallthru
      _
    %6601 = vsyncpa [#allocation3], 1
    %6602 = vsyncpa [#allocation6], 1
    %6603 = vsyncpa [#allocation9], 1
    %6604 = vsyncpa [#allocation4], 1

</llo_original>
